<compile_context>
chip_gen: v7x
topology: tpu7x:2x2x1
jax: 0.10.0
libtpu: 0.0.40
codegen_flags: <defaults>
</compile_context>

<pallas_src>
import functools

import jax
import jax.numpy as jnp
from jax import lax
from jax.experimental import pallas as pl
from jax.experimental.pallas import tpu as pltpu

_LANE = 128      # lane tile (last dim)
_SUBLANE = 8     # f32 sublane tile (second-to-last dim)

# PyTorch gate order is (i, f, g, o); kernel layout is (i, f, o, g) so the
# three sigmoids form one contiguous lane block.  Kernel block k holds the
# PyTorch gate _GATE_PERM[k].
_GATE_PERM = (0, 1, 3, 2)


def _round_up(x, m):
    return (x + m - 1) // m * m


def _pick_time_chunk(T, max_chunk=32):
    """Largest divisor of T that is <= max_chunk (bounds gx scratch VMEM)."""
    tc = min(T, max_chunk)
    while T % tc:
        tc -= 1
    return tc


# ----------------------- fused LSTM stack + FC kernel ------------------------

def _fused_lstm_fc_kernel(num_layers, T, Tc, Bp, Hp, *refs):
    """refs = (x, [wih_l, whh_l, b_l] * L, fc_w, fc_b, out, seq_sc, gx_sc).

    x      : (T*Bp, Ep)  f32   time-major, batch/lane padded layer-0 input
    wih_l  : (F_l, 4*Hp) bf16  input->gates weights (gate blocks lane-aligned)
    whh_l  : (Hp, 4*Hp)  bf16  hidden->gates weights
    b_l    : (1, 4*Hp)   f32   combined bias (b_ih + b_hh)
    fc_w   : (Hp, Op)    bf16  final linear weights
    fc_b   : (1, Op)     f32
    out    : (Bp, Op)    f32   logits (padded)
    seq_sc : (T*Bp, Hp)          f32 VMEM scratch, inter-layer hidden sequence
    gx_sc  : (n_buf, Tc*Bp, 4Hp) f32 VMEM scratch, chunked input projections
    """
    x_ref = refs[0]
    layer_refs = refs[1:1 + 3 * num_layers]
    fcw_ref = refs[1 + 3 * num_layers]
    fcb_ref = refs[2 + 3 * num_layers]
    out_ref = refs[3 + 3 * num_layers]
    seq_sc = refs[4 + 3 * num_layers]
    gx_sc = refs[5 + 3 * num_layers]

    n_chunks = T // Tc
    chunk_rows = Tc * Bp
    n_buf = gx_sc.shape[0]
    inner_unroll = Tc if Tc <= 8 else 8

    cur_in = x_ref
    h_last = None
    for l in range(num_layers):
        wih_ref = layer_refs[3 * l + 0]
        whh_ref = layer_refs[3 * l + 1]
        b_ref = layer_refs[3 * l + 2]
        write_seq = l < num_layers - 1   # last layer only needs the final h

        def project(chunk, slot, _cur_in=cur_in, _wih_ref=wih_ref,
                    _b_ref=b_ref):
            # One (Tc*Bp, F) @ (F, 4*Hp) bf16 matmul, f32 accumulation + bias.
            row = chunk * chunk_rows
            if not isinstance(row, int):
                row = pl.multiple_of(row, chunk_rows)
            xin = _cur_in[pl.ds(row, chunk_rows), :].astype(jnp.bfloat16)
            gx_sc[slot] = (
                jnp.dot(xin, _wih_ref[...], preferred_element_type=jnp.float32)
                + _b_ref[...])

        # Prime the first chunk's hoisted input projection (slot 0).
        project(0, 0)

        def chunk_body(k, carry, _project=project, _whh_ref=whh_ref,
                       _write_seq=write_seq):
            h0, c0 = carry
            slot = lax.rem(k, n_buf)

            # Prefetch the NEXT chunk's input projection into the other buffer;
            # it is independent of the recurrence below, so the MXU work can
            # overlap the latency-bound serial steps.
            @pl.when(k + 1 < n_chunks)
            def _():
                _project(k + 1, lax.rem(k + 1, n_buf))

            def step(t, hc):
                h_t, c_t = hc
                row = pl.multiple_of(t * Bp, Bp)
                gates = (gx_sc[slot, pl.ds(row, Bp), :]
                         + jnp.dot(h_t.astype(jnp.bfloat16), _whh_ref[...],
                                   preferred_element_type=jnp.float32))
                # Kernel gate layout [i | f | o | g]:
                # one wide sigmoid (3*Hp lanes) + one tanh (Hp lanes).
                sig = jax.nn.sigmoid(gates[:, :3 * Hp])
                g = jnp.tanh(gates[:, 3 * Hp:])
                i = sig[:, 0 * Hp:1 * Hp]
                f = sig[:, 1 * Hp:2 * Hp]
                o = sig[:, 2 * Hp:3 * Hp]
                c_new = f * c_t + i * g
                h_new = o * jnp.tanh(c_new)
                if _write_seq:
                    abs_row = pl.multiple_of(k * chunk_rows + t * Bp, Bp)
                    seq_sc[pl.ds(abs_row, Bp), :] = h_new
                return (h_new, c_new)

            return lax.fori_loop(0, Tc, step, (h0, c0), unroll=inner_unroll)

        init = (jnp.zeros((Bp, Hp), jnp.float32),
                jnp.zeros((Bp, Hp), jnp.float32))
        h_last, _ = lax.fori_loop(0, n_chunks, chunk_body, init)
        cur_in = seq_sc

    # Final linear layer on the last timestep's hidden state (lane-dense out).
    out_ref[...] = (jnp.dot(h_last.astype(jnp.bfloat16), fcw_ref[...],
                            preferred_element_type=jnp.float32)
                    + fcb_ref[...]).astype(out_ref.dtype)


# ----------------------- parameter prep (done once) --------------------------

def prepare_params(params):
    """Transpose, combine biases, reorder gates, pad and cast to kernel layout."""
    H = params["lstm"][0]["w_hh"].shape[1]
    Hp = _round_up(H, _LANE)
    O = params["fc_w"].shape[0]
    Op = _round_up(O, _LANE)
    E = params["embedding"].shape[1]
    Ep = _round_up(E, _LANE)

    def pad_gate_cols(w_t):
        # w_t: (rows, 4H), PyTorch gate order (i,f,g,o) -> (rows, 4*Hp) with the
        # kernel order (i,f,o,g), each gate in a lane-aligned block of width Hp.
        rows = w_t.shape[0]
        out = jnp.zeros((rows, 4 * Hp), jnp.float32)
        for kblk, kpt in enumerate(_GATE_PERM):
            out = out.at[:, kblk * Hp:kblk * Hp + H].set(
                w_t[:, kpt * H:(kpt + 1) * H])
        return out

    layers = []
    for li, layer in enumerate(params["lstm"]):
        w_ih = jnp.asarray(layer["w_ih"], jnp.float32)          # (4H, F)
        w_hh = jnp.asarray(layer["w_hh"], jnp.float32)          # (4H, H)
        F = w_ih.shape[1]
        Fp = Ep if li == 0 else Hp
        wih_t = jnp.zeros((Fp, 4 * Hp), jnp.float32)
        wih_t = wih_t.at[:F, :].set(pad_gate_cols(w_ih.T))
        whh_t = jnp.zeros((Hp, 4 * Hp), jnp.float32)
        whh_t = whh_t.at[:H, :].set(pad_gate_cols(w_hh.T))
        bias = pad_gate_cols(
            (layer["b_ih"] + layer["b_hh"]).reshape(1, 4 * H).astype(jnp.float32))
        layers.append((wih_t.astype(jnp.bfloat16),   # matmul weights in bf16
                       whh_t.astype(jnp.bfloat16),
                       bias))                        # bias stays f32

    fc_w = jnp.zeros((Hp, Op), jnp.float32)
    fc_w = fc_w.at[:H, :O].set(jnp.asarray(params["fc_w"], jnp.float32).T)
    fc_b = jnp.zeros((1, Op), jnp.float32)
    fc_b = fc_b.at[0, :O].set(jnp.asarray(params["fc_b"], jnp.float32))

    return {
        "embedding": jnp.asarray(params["embedding"], jnp.float32),
        "layers": layers,
        "fc_w": fc_w.astype(jnp.bfloat16),
        "fc_b": fc_b,
        "H": H, "Hp": Hp, "O": O, "Op": Op, "E": E, "Ep": Ep,
    }


# ------------------------------ full forward ----------------------------------

def lstm_model_forward(prepped, token_ids, *, max_time_chunk=32):
    """token_ids: (B, T) int32 -> logits (B, output_size)."""
    # Embedding lookup is a gather -> plain JAX glue outside the kernel.
    emb = jnp.take(prepped["embedding"], token_ids, axis=0)     # (B, T, E)
    B, T, E = emb.shape
    Bp = _round_up(B, _SUBLANE)
    Hp, Op, Ep = prepped["Hp"], prepped["Op"], prepped["Ep"]
    num_layers = len(prepped["layers"])

    Tc = _pick_time_chunk(T, max_time_chunk)
    n_chunks = T // Tc
    n_buf = 2 if n_chunks > 1 else 1

    # time-major, batch padded to 8-row sublane tile, embedding padded to a
    # 128-lane multiple, flattened to (T*Bp, Ep)
    x = jnp.transpose(emb, (1, 0, 2)).astype(jnp.float32)       # (T, B, E)
    x = jnp.pad(x, ((0, 0), (0, Bp - B), (0, Ep - E)))
    x = x.reshape(T * Bp, Ep)

    flat_weights = []
    for (wih, whh, b) in prepped["layers"]:
        flat_weights += [wih, whh, b]
    inputs = [x] + flat_weights + [prepped["fc_w"], prepped["fc_b"]]

    scratch_shapes = [
        pltpu.VMEM((T * Bp, Hp), jnp.float32),              # inter-layer seq
        pltpu.VMEM((n_buf, Tc * Bp, 4 * Hp), jnp.float32),  # chunked gate proj
    ]

    # Explicit scoped-VMEM budget (defaults are 16/32 MiB); cap at 64 MiB so
    # the same sizing is valid on v7x.
    def _nbytes(a):
        return a.size * a.dtype.itemsize
    scratch_bytes = (T * Bp * Hp * 4) + (n_buf * Tc * Bp * 4 * Hp * 4)
    need = sum(_nbytes(a) for a in inputs) + Bp * Op * 4 + scratch_bytes
    vmem_limit = min(64 * 1024 * 1024,
                     max(32 * 1024 * 1024, int(need * 1.5) + (4 << 20)))

    kernel = functools.partial(_fused_lstm_fc_kernel, num_layers, T, Tc, Bp, Hp)

    # Whole-array VMEM residency (no grid -> no pipelining / no wasted second
    # buffer per input).
    vmem_spec = pl.BlockSpec(memory_space=pltpu.MemorySpace.VMEM)

    out_pad = pl.pallas_call(
        kernel,
        out_shape=jax.ShapeDtypeStruct((Bp, Op), jnp.float32),
        in_specs=[vmem_spec for _ in inputs],
        out_specs=vmem_spec,
        scratch_shapes=scratch_shapes,
        compiler_params=pltpu.CompilerParams(vmem_limit_bytes=vmem_limit),
    )(*inputs)

    return out_pad[:B, :prepped["O"]]


# ----------------------- pure-JAX reference (for checking) --------------------

def _reference_forward(params, token_ids):
    emb = jnp.take(params["embedding"], token_ids, axis=0)      # (B, T, E)
    x = emb.astype(jnp.float32)
    B, T, _ = x.shape
    for layer in params["lstm"]:
        H = layer["w_hh"].shape[1]
        h = jnp.zeros((B, H), jnp.float32)
        c = jnp.zeros((B, H), jnp.float32)
        outs = []
        for t in range(T):
            gates = (x[:, t, :] @ layer["w_ih"].T + layer["b_ih"]
                     + h @ layer["w_hh"].T + layer["b_hh"])
            i = jax.nn.sigmoid(gates[:, 0 * H:1 * H])
            f = jax.nn.sigmoid(gates[:, 1 * H:2 * H])
            g = jnp.tanh(gates[:, 2 * H:3 * H])
            o = jax.nn.sigmoid(gates[:, 3 * H:4 * H])
            c = f * c + i * g
            h = o * jnp.tanh(c)
            outs.append(h)
        x = jnp.stack(outs, axis=1)                             # (B, T, H)
    return x[:, -1, :] @ params["fc_w"].T + params["fc_b"]


# ----------------------------------- main -------------------------------------

def make_params(key, vocab_size, embedding_dim, hidden_size, num_layers,
                output_size):
    ks = jax.random.split(key, 2 + 4 * num_layers + 2)
    idx = 0
    params = {}
    params["embedding"] = jax.random.normal(
        ks[idx], (vocab_size, embedding_dim), jnp.float32) * 0.1
    idx += 1
    layers = []
    for l in range(num_layers):
        in_dim = embedding_dim if l == 0 else hidden_size
        layers.append({
            "w_ih": jax.random.normal(ks[idx + 0], (4 * hidden_size, in_dim),
                                      jnp.float32) * 0.1,
            "w_hh": jax.random.normal(ks[idx + 1], (4 * hidden_size, hidden_size),
                                      jnp.float32) * 0.1,
            "b_ih": jax.random.normal(ks[idx + 2], (4 * hidden_size,),
                                      jnp.float32) * 0.1,
            "b_hh": jax.random.normal(ks[idx + 3], (4 * hidden_size,),
                                      jnp.float32) * 0.1,
        })
        idx += 4
    params["lstm"] = layers
    params["fc_w"] = jax.random.normal(ks[idx], (output_size, hidden_size),
                                       jnp.float32) * 0.1
    params["fc_b"] = jax.random.normal(ks[idx + 1], (output_size,),
                                       jnp.float32) * 0.1
    return params


if __name__ == "__main__":
    vocab_size, embedding_dim, hidden_size = 50, 16, 32
    num_layers, output_size = 2, 10
    batch, seq = 2, 8

    key = jax.random.PRNGKey(0)
    pkey, xkey = jax.random.split(key)
    params = make_params(pkey, vocab_size, embedding_dim, hidden_size,
                         num_layers, output_size)
    token_ids = jax.random.randint(xkey, (batch, seq), 0, vocab_size,
                                   dtype=jnp.int32)

    prepped = prepare_params(params)          # one-time weight layout prep
    out = lstm_model_forward(prepped, token_ids)
    out = jax.block_until_ready(out)

    ref = jax.block_until_ready(_reference_forward(params, token_ids))
    assert out.shape == (batch, output_size)
    # bf16 matmul operands (f32 accumulation) -> loosened tolerance vs f32 ref.
    assert jnp.allclose(out, ref, atol=1e-2, rtol=1e-2), "mismatch vs reference"

    print("KERNEL_OK")
</pallas_src>

<mosaic_0001>
module attributes {stable_mosaic.version = 11 : i64} {
  func.func @_fused_lstm_fc_kernel(%arg0: memref<64x128xf32, #tpu.memory_space<vmem>>, %arg1: memref<128x512xbf16, #tpu.memory_space<vmem>>, %arg2: memref<128x512xbf16, #tpu.memory_space<vmem>>, %arg3: memref<1x512xf32, #tpu.memory_space<vmem>>, %arg4: memref<128x512xbf16, #tpu.memory_space<vmem>>, %arg5: memref<128x512xbf16, #tpu.memory_space<vmem>>, %arg6: memref<1x512xf32, #tpu.memory_space<vmem>>, %arg7: memref<128x128xbf16, #tpu.memory_space<vmem>>, %arg8: memref<1x128xf32, #tpu.memory_space<vmem>>, %arg9: memref<8x128xf32, #tpu.memory_space<vmem>>, %arg10: memref<64x128xf32, #tpu.memory_space<vmem>>, %arg11: memref<1x64x512xf32, #tpu.memory_space<vmem>>) attributes {dimension_semantics = [], scalar_prefetch = 0 : i64, scratch_operands = 2 : i64, tpu.core_type = #tpu.core_type<tc>} {
    %c0 = arith.constant 0 : index
    %c0_0 = arith.constant 0 : index
    %0 = vector.load %arg0[%c0, %c0_0] : memref<64x128xf32, #tpu.memory_space<vmem>>, vector<64x128xf32>
    %1 = arith.truncf %0 : vector<64x128xf32> to vector<64x128xbf16>
    %c0_1 = arith.constant 0 : index
    %c0_2 = arith.constant 0 : index
    %2 = vector.load %arg1[%c0_1, %c0_2] : memref<128x512xbf16, #tpu.memory_space<vmem>>, vector<128x512xbf16>
    %cst = arith.constant dense<0.000000e+00> : vector<64x512xf32>
    %3 = tpu.matmul %1, %2, %cst {dimension_numbers = #tpu.dot_dimension_numbers<[1], [0], [0], [1], [0, 0, 1, 1], [], []>} : vector<64x128xbf16>, vector<128x512xbf16>, vector<64x512xf32> -> vector<64x512xf32>
    %c0_3 = arith.constant 0 : index
    %c0_4 = arith.constant 0 : index
    %4 = vector.load %arg3[%c0_3, %c0_4] : memref<1x512xf32, #tpu.memory_space<vmem>>, vector<1x512xf32>
    %5 = vector.broadcast %4 : vector<1x512xf32> to vector<64x512xf32>
    %6 = arith.addf %3, %5 : vector<64x512xf32>
    %c0_5 = arith.constant 0 : index
    %c0_6 = arith.constant 0 : index
    %c0_7 = arith.constant 0 : index
    %7 = vector.load %arg11[%c0_5, %c0_6, %c0_7] : memref<1x64x512xf32, #tpu.memory_space<vmem>>, vector<1x64x512xf32>
    %8 = vector.shape_cast %7 : vector<1x64x512xf32> to vector<64x512xf32>
    %9 = vector.shape_cast %6 : vector<64x512xf32> to vector<1x64x512xf32>
    tpu.vector_store %arg11[%c0_5, %c0_6, %c0_7], %9 {strides = array<i32>} : memref<1x64x512xf32, #tpu.memory_space<vmem>>, vector<1x64x512xf32>,
    %cst_8 = arith.constant 0.000000e+00 : f32
    %10 = vector.broadcast %cst_8 : f32 to vector<8x128xf32>
    %cst_9 = arith.constant 0.000000e+00 : f32
    %11 = vector.broadcast %cst_9 : f32 to vector<8x128xf32>
    %c0_i32 = arith.constant 0 : i32
    %c1_i32 = arith.constant 1 : i32
    %12 = arith.remsi %c0_i32, %c1_i32 : i32
    %c1_i32_10 = arith.constant 1 : i32
    %13 = arith.addi %c0_i32, %c1_i32_10 : i32
    %c1_i32_11 = arith.constant 1 : i32
    %14 = arith.cmpi slt, %13, %c1_i32_11 : i32
    %15 = arith.extui %14 : i1 to i32
    %c0_i32_12 = arith.constant 0 : i32
    %16 = arith.cmpi ne, %15, %c0_i32_12 : i32
    scf.if %16 {
      %c1_i32_169 = arith.constant 1 : i32
      %505 = arith.addi %c0_i32, %c1_i32_169 : i32
      %c1_i32_170 = arith.constant 1 : i32
      %506 = arith.addi %c0_i32, %c1_i32_170 : i32
      %c1_i32_171 = arith.constant 1 : i32
      %507 = arith.remsi %506, %c1_i32_171 : i32
      %c64_i32_172 = arith.constant 64 : i32
      %508 = arith.muli %505, %c64_i32_172 : i32
      %509 = tpu.assume_multiple %508, 64 : i32
      %510 = arith.index_cast %509 : i32 to index
      %c0_173 = arith.constant 0 : index
      %511 = vector.load %arg0[%510, %c0_173] : memref<64x128xf32, #tpu.memory_space<vmem>>, vector<64x128xf32>
      %512 = arith.truncf %511 : vector<64x128xf32> to vector<64x128xbf16>
      %c0_174 = arith.constant 0 : index
      %c0_175 = arith.constant 0 : index
      %513 = vector.load %arg1[%c0_174, %c0_175] : memref<128x512xbf16, #tpu.memory_space<vmem>>, vector<128x512xbf16>
      %cst_176 = arith.constant dense<0.000000e+00> : vector<64x512xf32>
      %514 = tpu.matmul %512, %513, %cst_176 {dimension_numbers = #tpu.dot_dimension_numbers<[1], [0], [0], [1], [0, 0, 1, 1], [], []>} : vector<64x128xbf16>, vector<128x512xbf16>, vector<64x512xf32> -> vector<64x512xf32>
      %c0_177 = arith.constant 0 : index
      %c0_178 = arith.constant 0 : index
      %515 = vector.load %arg3[%c0_177, %c0_178] : memref<1x512xf32, #tpu.memory_space<vmem>>, vector<1x512xf32>
      %516 = vector.broadcast %515 : vector<1x512xf32> to vector<64x512xf32>
      %517 = arith.addf %514, %516 : vector<64x512xf32>
      %518 = arith.index_cast %507 : i32 to index
      %c0_179 = arith.constant 0 : index
      %c0_180 = arith.constant 0 : index
      %519 = vector.load %arg11[%518, %c0_179, %c0_180] : memref<1x64x512xf32, #tpu.memory_space<vmem>>, vector<1x64x512xf32>
      %520 = vector.shape_cast %519 : vector<1x64x512xf32> to vector<64x512xf32>
      %521 = vector.shape_cast %517 : vector<64x512xf32> to vector<1x64x512xf32>
      tpu.vector_store %arg11[%518, %c0_179, %c0_180], %521 {strides = array<i32>} : memref<1x64x512xf32, #tpu.memory_space<vmem>>, vector<1x64x512xf32>,
    } else {
    }
    %c0_i32_13 = arith.constant 0 : i32
    %c8_i32 = arith.constant 8 : i32
    %17 = arith.muli %c0_i32_13, %c8_i32 : i32
    %18 = tpu.assume_multiple %17, 8 : i32
    %19 = arith.index_cast %12 : i32 to index
    %20 = arith.index_cast %18 : i32 to index
    %c0_14 = arith.constant 0 : index
    %21 = vector.load %arg11[%19, %20, %c0_14] : memref<1x64x512xf32, #tpu.memory_space<vmem>>, vector<1x8x512xf32>
    %22 = vector.shape_cast %21 : vector<1x8x512xf32> to vector<8x512xf32>
    %23 = arith.truncf %10 : vector<8x128xf32> to vector<8x128xbf16>
    %c0_15 = arith.constant 0 : index
    %c0_16 = arith.constant 0 : index
    %24 = vector.load %arg2[%c0_15, %c0_16] : memref<128x512xbf16, #tpu.memory_space<vmem>>, vector<128x512xbf16>
    %cst_17 = arith.constant dense<0.000000e+00> : vector<8x512xf32>
    %25 = tpu.matmul %23, %24, %cst_17 {dimension_numbers = #tpu.dot_dimension_numbers<[1], [0], [0], [1], [0, 0, 1, 1], [], []>} : vector<8x128xbf16>, vector<128x512xbf16>, vector<8x512xf32> -> vector<8x512xf32>
    %26 = arith.addf %22, %25 : vector<8x512xf32>
    %27 = vector.extract_strided_slice %26 {offsets = [0, 0], sizes = [8, 384], strides = [1, 1]} : vector<8x512xf32> to vector<8x384xf32>
    %28 = arith.negf %27 : vector<8x384xf32>
    %29 = math.exp %28 : vector<8x384xf32>
    %cst_18 = arith.constant 1.000000e+00 : f32
    %30 = vector.broadcast %cst_18 : f32 to vector<8x384xf32>
    %31 = arith.addf %30, %29 : vector<8x384xf32>
    %32 = arith.divf %30, %31 : vector<8x384xf32>
    %33 = vector.extract_strided_slice %26 {offsets = [0, 384], sizes = [8, 128], strides = [1, 1]} : vector<8x512xf32> to vector<8x128xf32>
    %34 = math.tanh %33 : vector<8x128xf32>
    %35 = vector.extract_strided_slice %32 {offsets = [0, 0], sizes = [8, 128], strides = [1, 1]} : vector<8x384xf32> to vector<8x128xf32>
    %36 = vector.extract_strided_slice %32 {offsets = [0, 128], sizes = [8, 128], strides = [1, 1]} : vector<8x384xf32> to vector<8x128xf32>
    %37 = vector.extract_strided_slice %32 {offsets = [0, 256], sizes = [8, 128], strides = [1, 1]} : vector<8x384xf32> to vector<8x128xf32>
    %38 = arith.mulf %36, %11 : vector<8x128xf32>
    %39 = arith.mulf %35, %34 : vector<8x128xf32>
    %40 = arith.addf %38, %39 : vector<8x128xf32>
    %41 = math.tanh %40 : vector<8x128xf32>
    %42 = arith.mulf %37, %41 : vector<8x128xf32>
    %c64_i32 = arith.constant 64 : i32
    %43 = arith.muli %c0_i32, %c64_i32 : i32
    %c8_i32_19 = arith.constant 8 : i32
    %44 = arith.muli %c0_i32_13, %c8_i32_19 : i32
    %45 = arith.addi %43, %44 : i32
    %46 = tpu.assume_multiple %45, 8 : i32
    %47 = arith.index_cast %46 : i32 to index
    %c0_20 = arith.constant 0 : index
    %48 = vector.load %arg10[%47, %c0_20] : memref<64x128xf32, #tpu.memory_space<vmem>>, vector<8x128xf32>
    tpu.vector_store %arg10[%47, %c0_20], %42 {strides = array<i32>} : memref<64x128xf32, #tpu.memory_space<vmem>>, vector<8x128xf32>,
    %c1_i32_21 = arith.constant 1 : i32
    %c8_i32_22 = arith.constant 8 : i32
    %49 = arith.muli %c1_i32_21, %c8_i32_22 : i32
    %50 = tpu.assume_multiple %49, 8 : i32
    %51 = arith.index_cast %12 : i32 to index
    %52 = arith.index_cast %50 : i32 to index
    %c0_23 = arith.constant 0 : index
    %53 = vector.load %arg11[%51, %52, %c0_23] : memref<1x64x512xf32, #tpu.memory_space<vmem>>, vector<1x8x512xf32>
    %54 = vector.shape_cast %53 : vector<1x8x512xf32> to vector<8x512xf32>
    %55 = arith.truncf %42 : vector<8x128xf32> to vector<8x128xbf16>
    %c0_24 = arith.constant 0 : index
    %c0_25 = arith.constant 0 : index
    %56 = vector.load %arg2[%c0_24, %c0_25] : memref<128x512xbf16, #tpu.memory_space<vmem>>, vector<128x512xbf16>
    %cst_26 = arith.constant dense<0.000000e+00> : vector<8x512xf32>
    %57 = tpu.matmul %55, %56, %cst_26 {dimension_numbers = #tpu.dot_dimension_numbers<[1], [0], [0], [1], [0, 0, 1, 1], [], []>} : vector<8x128xbf16>, vector<128x512xbf16>, vector<8x512xf32> -> vector<8x512xf32>
    %58 = arith.addf %54, %57 : vector<8x512xf32>
    %59 = vector.extract_strided_slice %58 {offsets = [0, 0], sizes = [8, 384], strides = [1, 1]} : vector<8x512xf32> to vector<8x384xf32>
    %60 = arith.negf %59 : vector<8x384xf32>
    %61 = math.exp %60 : vector<8x384xf32>
    %cst_27 = arith.constant 1.000000e+00 : f32
    %62 = vector.broadcast %cst_27 : f32 to vector<8x384xf32>
    %63 = arith.addf %62, %61 : vector<8x384xf32>
    %64 = arith.divf %62, %63 : vector<8x384xf32>
    %65 = vector.extract_strided_slice %58 {offsets = [0, 384], sizes = [8, 128], strides = [1, 1]} : vector<8x512xf32> to vector<8x128xf32>
    %66 = math.tanh %65 : vector<8x128xf32>
    %67 = vector.extract_strided_slice %64 {offsets = [0, 0], sizes = [8, 128], strides = [1, 1]} : vector<8x384xf32> to vector<8x128xf32>
    %68 = vector.extract_strided_slice %64 {offsets = [0, 128], sizes = [8, 128], strides = [1, 1]} : vector<8x384xf32> to vector<8x128xf32>
    %69 = vector.extract_strided_slice %64 {offsets = [0, 256], sizes = [8, 128], strides = [1, 1]} : vector<8x384xf32> to vector<8x128xf32>
    %70 = arith.mulf %68, %40 : vector<8x128xf32>
    %71 = arith.mulf %67, %66 : vector<8x128xf32>
    %72 = arith.addf %70, %71 : vector<8x128xf32>
    %73 = math.tanh %72 : vector<8x128xf32>
    %74 = arith.mulf %69, %73 : vector<8x128xf32>
    %c64_i32_28 = arith.constant 64 : i32
    %75 = arith.muli %c0_i32, %c64_i32_28 : i32
    %c8_i32_29 = arith.constant 8 : i32
    %76 = arith.muli %c1_i32_21, %c8_i32_29 : i32
    %77 = arith.addi %75, %76 : i32
    %78 = tpu.assume_multiple %77, 8 : i32
    %79 = arith.index_cast %78 : i32 to index
    %c0_30 = arith.constant 0 : index
    %80 = vector.load %arg10[%79, %c0_30] : memref<64x128xf32, #tpu.memory_space<vmem>>, vector<8x128xf32>
    tpu.vector_store %arg10[%79, %c0_30], %74 {strides = array<i32>} : memref<64x128xf32, #tpu.memory_space<vmem>>, vector<8x128xf32>,
    %c2_i32 = arith.constant 2 : i32
    %c8_i32_31 = arith.constant 8 : i32
    %81 = arith.muli %c2_i32, %c8_i32_31 : i32
    %82 = tpu.assume_multiple %81, 8 : i32
    %83 = arith.index_cast %12 : i32 to index
    %84 = arith.index_cast %82 : i32 to index
    %c0_32 = arith.constant 0 : index
    %85 = vector.load %arg11[%83, %84, %c0_32] : memref<1x64x512xf32, #tpu.memory_space<vmem>>, vector<1x8x512xf32>
    %86 = vector.shape_cast %85 : vector<1x8x512xf32> to vector<8x512xf32>
    %87 = arith.truncf %74 : vector<8x128xf32> to vector<8x128xbf16>
    %c0_33 = arith.constant 0 : index
    %c0_34 = arith.constant 0 : index
    %88 = vector.load %arg2[%c0_33, %c0_34] : memref<128x512xbf16, #tpu.memory_space<vmem>>, vector<128x512xbf16>
    %cst_35 = arith.constant dense<0.000000e+00> : vector<8x512xf32>
    %89 = tpu.matmul %87, %88, %cst_35 {dimension_numbers = #tpu.dot_dimension_numbers<[1], [0], [0], [1], [0, 0, 1, 1], [], []>} : vector<8x128xbf16>, vector<128x512xbf16>, vector<8x512xf32> -> vector<8x512xf32>
    %90 = arith.addf %86, %89 : vector<8x512xf32>
    %91 = vector.extract_strided_slice %90 {offsets = [0, 0], sizes = [8, 384], strides = [1, 1]} : vector<8x512xf32> to vector<8x384xf32>
    %92 = arith.negf %91 : vector<8x384xf32>
    %93 = math.exp %92 : vector<8x384xf32>
    %cst_36 = arith.constant 1.000000e+00 : f32
    %94 = vector.broadcast %cst_36 : f32 to vector<8x384xf32>
    %95 = arith.addf %94, %93 : vector<8x384xf32>
    %96 = arith.divf %94, %95 : vector<8x384xf32>
    %97 = vector.extract_strided_slice %90 {offsets = [0, 384], sizes = [8, 128], strides = [1, 1]} : vector<8x512xf32> to vector<8x128xf32>
    %98 = math.tanh %97 : vector<8x128xf32>
    %99 = vector.extract_strided_slice %96 {offsets = [0, 0], sizes = [8, 128], strides = [1, 1]} : vector<8x384xf32> to vector<8x128xf32>
    %100 = vector.extract_strided_slice %96 {offsets = [0, 128], sizes = [8, 128], strides = [1, 1]} : vector<8x384xf32> to vector<8x128xf32>
    %101 = vector.extract_strided_slice %96 {offsets = [0, 256], sizes = [8, 128], strides = [1, 1]} : vector<8x384xf32> to vector<8x128xf32>
    %102 = arith.mulf %100, %72 : vector<8x128xf32>
    %103 = arith.mulf %99, %98 : vector<8x128xf32>
    %104 = arith.addf %102, %103 : vector<8x128xf32>
    %105 = math.tanh %104 : vector<8x128xf32>
    %106 = arith.mulf %101, %105 : vector<8x128xf32>
    %c64_i32_37 = arith.constant 64 : i32
    %107 = arith.muli %c0_i32, %c64_i32_37 : i32
    %c8_i32_38 = arith.constant 8 : i32
    %108 = arith.muli %c2_i32, %c8_i32_38 : i32
    %109 = arith.addi %107, %108 : i32
    %110 = tpu.assume_multiple %109, 8 : i32
    %111 = arith.index_cast %110 : i32 to index
    %c0_39 = arith.constant 0 : index
    %112 = vector.load %arg10[%111, %c0_39] : memref<64x128xf32, #tpu.memory_space<vmem>>, vector<8x128xf32>
    tpu.vector_store %arg10[%111, %c0_39], %106 {strides = array<i32>} : memref<64x128xf32, #tpu.memory_space<vmem>>, vector<8x128xf32>,
    %c3_i32 = arith.constant 3 : i32
    %c8_i32_40 = arith.constant 8 : i32
    %113 = arith.muli %c3_i32, %c8_i32_40 : i32
    %114 = tpu.assume_multiple %113, 8 : i32
    %115 = arith.index_cast %12 : i32 to index
    %116 = arith.index_cast %114 : i32 to index
    %c0_41 = arith.constant 0 : index
    %117 = vector.load %arg11[%115, %116, %c0_41] : memref<1x64x512xf32, #tpu.memory_space<vmem>>, vector<1x8x512xf32>
    %118 = vector.shape_cast %117 : vector<1x8x512xf32> to vector<8x512xf32>
    %119 = arith.truncf %106 : vector<8x128xf32> to vector<8x128xbf16>
    %c0_42 = arith.constant 0 : index
    %c0_43 = arith.constant 0 : index
    %120 = vector.load %arg2[%c0_42, %c0_43] : memref<128x512xbf16, #tpu.memory_space<vmem>>, vector<128x512xbf16>
    %cst_44 = arith.constant dense<0.000000e+00> : vector<8x512xf32>
    %121 = tpu.matmul %119, %120, %cst_44 {dimension_numbers = #tpu.dot_dimension_numbers<[1], [0], [0], [1], [0, 0, 1, 1], [], []>} : vector<8x128xbf16>, vector<128x512xbf16>, vector<8x512xf32> -> vector<8x512xf32>
    %122 = arith.addf %118, %121 : vector<8x512xf32>
    %123 = vector.extract_strided_slice %122 {offsets = [0, 0], sizes = [8, 384], strides = [1, 1]} : vector<8x512xf32> to vector<8x384xf32>
    %124 = arith.negf %123 : vector<8x384xf32>
    %125 = math.exp %124 : vector<8x384xf32>
    %cst_45 = arith.constant 1.000000e+00 : f32
    %126 = vector.broadcast %cst_45 : f32 to vector<8x384xf32>
    %127 = arith.addf %126, %125 : vector<8x384xf32>
    %128 = arith.divf %126, %127 : vector<8x384xf32>
    %129 = vector.extract_strided_slice %122 {offsets = [0, 384], sizes = [8, 128], strides = [1, 1]} : vector<8x512xf32> to vector<8x128xf32>
    %130 = math.tanh %129 : vector<8x128xf32>
    %131 = vector.extract_strided_slice %128 {offsets = [0, 0], sizes = [8, 128], strides = [1, 1]} : vector<8x384xf32> to vector<8x128xf32>
    %132 = vector.extract_strided_slice %128 {offsets = [0, 128], sizes = [8, 128], strides = [1, 1]} : vector<8x384xf32> to vector<8x128xf32>
    %133 = vector.extract_strided_slice %128 {offsets = [0, 256], sizes = [8, 128], strides = [1, 1]} : vector<8x384xf32> to vector<8x128xf32>
    %134 = arith.mulf %132, %104 : vector<8x128xf32>
    %135 = arith.mulf %131, %130 : vector<8x128xf32>
    %136 = arith.addf %134, %135 : vector<8x128xf32>
    %137 = math.tanh %136 : vector<8x128xf32>
    %138 = arith.mulf %133, %137 : vector<8x128xf32>
    %c64_i32_46 = arith.constant 64 : i32
    %139 = arith.muli %c0_i32, %c64_i32_46 : i32
    %c8_i32_47 = arith.constant 8 : i32
    %140 = arith.muli %c3_i32, %c8_i32_47 : i32
    %141 = arith.addi %139, %140 : i32
    %142 = tpu.assume_multiple %141, 8 : i32
    %143 = arith.index_cast %142 : i32 to index
    %c0_48 = arith.constant 0 : index
    %144 = vector.load %arg10[%143, %c0_48] : memref<64x128xf32, #tpu.memory_space<vmem>>, vector<8x128xf32>
    tpu.vector_store %arg10[%143, %c0_48], %138 {strides = array<i32>} : memref<64x128xf32, #tpu.memory_space<vmem>>, vector<8x128xf32>,
    %c4_i32 = arith.constant 4 : i32
    %c8_i32_49 = arith.constant 8 : i32
    %145 = arith.muli %c4_i32, %c8_i32_49 : i32
    %146 = tpu.assume_multiple %145, 8 : i32
    %147 = arith.index_cast %12 : i32 to index
    %148 = arith.index_cast %146 : i32 to index
    %c0_50 = arith.constant 0 : index
    %149 = vector.load %arg11[%147, %148, %c0_50] : memref<1x64x512xf32, #tpu.memory_space<vmem>>, vector<1x8x512xf32>
    %150 = vector.shape_cast %149 : vector<1x8x512xf32> to vector<8x512xf32>
    %151 = arith.truncf %138 : vector<8x128xf32> to vector<8x128xbf16>
    %c0_51 = arith.constant 0 : index
    %c0_52 = arith.constant 0 : index
    %152 = vector.load %arg2[%c0_51, %c0_52] : memref<128x512xbf16, #tpu.memory_space<vmem>>, vector<128x512xbf16>
    %cst_53 = arith.constant dense<0.000000e+00> : vector<8x512xf32>
    %153 = tpu.matmul %151, %152, %cst_53 {dimension_numbers = #tpu.dot_dimension_numbers<[1], [0], [0], [1], [0, 0, 1, 1], [], []>} : vector<8x128xbf16>, vector<128x512xbf16>, vector<8x512xf32> -> vector<8x512xf32>
    %154 = arith.addf %150, %153 : vector<8x512xf32>
    %155 = vector.extract_strided_slice %154 {offsets = [0, 0], sizes = [8, 384], strides = [1, 1]} : vector<8x512xf32> to vector<8x384xf32>
    %156 = arith.negf %155 : vector<8x384xf32>
    %157 = math.exp %156 : vector<8x384xf32>
    %cst_54 = arith.constant 1.000000e+00 : f32
    %158 = vector.broadcast %cst_54 : f32 to vector<8x384xf32>
    %159 = arith.addf %158, %157 : vector<8x384xf32>
    %160 = arith.divf %158, %159 : vector<8x384xf32>
    %161 = vector.extract_strided_slice %154 {offsets = [0, 384], sizes = [8, 128], strides = [1, 1]} : vector<8x512xf32> to vector<8x128xf32>
    %162 = math.tanh %161 : vector<8x128xf32>
    %163 = vector.extract_strided_slice %160 {offsets = [0, 0], sizes = [8, 128], strides = [1, 1]} : vector<8x384xf32> to vector<8x128xf32>
    %164 = vector.extract_strided_slice %160 {offsets = [0, 128], sizes = [8, 128], strides = [1, 1]} : vector<8x384xf32> to vector<8x128xf32>
    %165 = vector.extract_strided_slice %160 {offsets = [0, 256], sizes = [8, 128], strides = [1, 1]} : vector<8x384xf32> to vector<8x128xf32>
    %166 = arith.mulf %164, %136 : vector<8x128xf32>
    %167 = arith.mulf %163, %162 : vector<8x128xf32>
    %168 = arith.addf %166, %167 : vector<8x128xf32>
    %169 = math.tanh %168 : vector<8x128xf32>
    %170 = arith.mulf %165, %169 : vector<8x128xf32>
    %c64_i32_55 = arith.constant 64 : i32
    %171 = arith.muli %c0_i32, %c64_i32_55 : i32
    %c8_i32_56 = arith.constant 8 : i32
    %172 = arith.muli %c4_i32, %c8_i32_56 : i32
    %173 = arith.addi %171, %172 : i32
    %174 = tpu.assume_multiple %173, 8 : i32
    %175 = arith.index_cast %174 : i32 to index
    %c0_57 = arith.constant 0 : index
    %176 = vector.load %arg10[%175, %c0_57] : memref<64x128xf32, #tpu.memory_space<vmem>>, vector<8x128xf32>
    tpu.vector_store %arg10[%175, %c0_57], %170 {strides = array<i32>} : memref<64x128xf32, #tpu.memory_space<vmem>>, vector<8x128xf32>,
    %c5_i32 = arith.constant 5 : i32
    %c8_i32_58 = arith.constant 8 : i32
    %177 = arith.muli %c5_i32, %c8_i32_58 : i32
    %178 = tpu.assume_multiple %177, 8 : i32
    %179 = arith.index_cast %12 : i32 to index
    %180 = arith.index_cast %178 : i32 to index
    %c0_59 = arith.constant 0 : index
    %181 = vector.load %arg11[%179, %180, %c0_59] : memref<1x64x512xf32, #tpu.memory_space<vmem>>, vector<1x8x512xf32>
    %182 = vector.shape_cast %181 : vector<1x8x512xf32> to vector<8x512xf32>
    %183 = arith.truncf %170 : vector<8x128xf32> to vector<8x128xbf16>
    %c0_60 = arith.constant 0 : index
    %c0_61 = arith.constant 0 : index
    %184 = vector.load %arg2[%c0_60, %c0_61] : memref<128x512xbf16, #tpu.memory_space<vmem>>, vector<128x512xbf16>
    %cst_62 = arith.constant dense<0.000000e+00> : vector<8x512xf32>
    %185 = tpu.matmul %183, %184, %cst_62 {dimension_numbers = #tpu.dot_dimension_numbers<[1], [0], [0], [1], [0, 0, 1, 1], [], []>} : vector<8x128xbf16>, vector<128x512xbf16>, vector<8x512xf32> -> vector<8x512xf32>
    %186 = arith.addf %182, %185 : vector<8x512xf32>
    %187 = vector.extract_strided_slice %186 {offsets = [0, 0], sizes = [8, 384], strides = [1, 1]} : vector<8x512xf32> to vector<8x384xf32>
    %188 = arith.negf %187 : vector<8x384xf32>
    %189 = math.exp %188 : vector<8x384xf32>
    %cst_63 = arith.constant 1.000000e+00 : f32
    %190 = vector.broadcast %cst_63 : f32 to vector<8x384xf32>
    %191 = arith.addf %190, %189 : vector<8x384xf32>
    %192 = arith.divf %190, %191 : vector<8x384xf32>
    %193 = vector.extract_strided_slice %186 {offsets = [0, 384], sizes = [8, 128], strides = [1, 1]} : vector<8x512xf32> to vector<8x128xf32>
    %194 = math.tanh %193 : vector<8x128xf32>
    %195 = vector.extract_strided_slice %192 {offsets = [0, 0], sizes = [8, 128], strides = [1, 1]} : vector<8x384xf32> to vector<8x128xf32>
    %196 = vector.extract_strided_slice %192 {offsets = [0, 128], sizes = [8, 128], strides = [1, 1]} : vector<8x384xf32> to vector<8x128xf32>
    %197 = vector.extract_strided_slice %192 {offsets = [0, 256], sizes = [8, 128], strides = [1, 1]} : vector<8x384xf32> to vector<8x128xf32>
    %198 = arith.mulf %196, %168 : vector<8x128xf32>
    %199 = arith.mulf %195, %194 : vector<8x128xf32>
    %200 = arith.addf %198, %199 : vector<8x128xf32>
    %201 = math.tanh %200 : vector<8x128xf32>
    %202 = arith.mulf %197, %201 : vector<8x128xf32>
    %c64_i32_64 = arith.constant 64 : i32
    %203 = arith.muli %c0_i32, %c64_i32_64 : i32
    %c8_i32_65 = arith.constant 8 : i32
    %204 = arith.muli %c5_i32, %c8_i32_65 : i32
    %205 = arith.addi %203, %204 : i32
    %206 = tpu.assume_multiple %205, 8 : i32
    %207 = arith.index_cast %206 : i32 to index
    %c0_66 = arith.constant 0 : index
    %208 = vector.load %arg10[%207, %c0_66] : memref<64x128xf32, #tpu.memory_space<vmem>>, vector<8x128xf32>
    tpu.vector_store %arg10[%207, %c0_66], %202 {strides = array<i32>} : memref<64x128xf32, #tpu.memory_space<vmem>>, vector<8x128xf32>,
    %c6_i32 = arith.constant 6 : i32
    %c8_i32_67 = arith.constant 8 : i32
    %209 = arith.muli %c6_i32, %c8_i32_67 : i32
    %210 = tpu.assume_multiple %209, 8 : i32
    %211 = arith.index_cast %12 : i32 to index
    %212 = arith.index_cast %210 : i32 to index
    %c0_68 = arith.constant 0 : index
    %213 = vector.load %arg11[%211, %212, %c0_68] : memref<1x64x512xf32, #tpu.memory_space<vmem>>, vector<1x8x512xf32>
    %214 = vector.shape_cast %213 : vector<1x8x512xf32> to vector<8x512xf32>
    %215 = arith.truncf %202 : vector<8x128xf32> to vector<8x128xbf16>
    %c0_69 = arith.constant 0 : index
    %c0_70 = arith.constant 0 : index
    %216 = vector.load %arg2[%c0_69, %c0_70] : memref<128x512xbf16, #tpu.memory_space<vmem>>, vector<128x512xbf16>
    %cst_71 = arith.constant dense<0.000000e+00> : vector<8x512xf32>
    %217 = tpu.matmul %215, %216, %cst_71 {dimension_numbers = #tpu.dot_dimension_numbers<[1], [0], [0], [1], [0, 0, 1, 1], [], []>} : vector<8x128xbf16>, vector<128x512xbf16>, vector<8x512xf32> -> vector<8x512xf32>
    %218 = arith.addf %214, %217 : vector<8x512xf32>
    %219 = vector.extract_strided_slice %218 {offsets = [0, 0], sizes = [8, 384], strides = [1, 1]} : vector<8x512xf32> to vector<8x384xf32>
    %220 = arith.negf %219 : vector<8x384xf32>
    %221 = math.exp %220 : vector<8x384xf32>
    %cst_72 = arith.constant 1.000000e+00 : f32
    %222 = vector.broadcast %cst_72 : f32 to vector<8x384xf32>
    %223 = arith.addf %222, %221 : vector<8x384xf32>
    %224 = arith.divf %222, %223 : vector<8x384xf32>
    %225 = vector.extract_strided_slice %218 {offsets = [0, 384], sizes = [8, 128], strides = [1, 1]} : vector<8x512xf32> to vector<8x128xf32>
    %226 = math.tanh %225 : vector<8x128xf32>
    %227 = vector.extract_strided_slice %224 {offsets = [0, 0], sizes = [8, 128], strides = [1, 1]} : vector<8x384xf32> to vector<8x128xf32>
    %228 = vector.extract_strided_slice %224 {offsets = [0, 128], sizes = [8, 128], strides = [1, 1]} : vector<8x384xf32> to vector<8x128xf32>
    %229 = vector.extract_strided_slice %224 {offsets = [0, 256], sizes = [8, 128], strides = [1, 1]} : vector<8x384xf32> to vector<8x128xf32>
    %230 = arith.mulf %228, %200 : vector<8x128xf32>
    %231 = arith.mulf %227, %226 : vector<8x128xf32>
    %232 = arith.addf %230, %231 : vector<8x128xf32>
    %233 = math.tanh %232 : vector<8x128xf32>
    %234 = arith.mulf %229, %233 : vector<8x128xf32>
    %c64_i32_73 = arith.constant 64 : i32
    %235 = arith.muli %c0_i32, %c64_i32_73 : i32
    %c8_i32_74 = arith.constant 8 : i32
    %236 = arith.muli %c6_i32, %c8_i32_74 : i32
    %237 = arith.addi %235, %236 : i32
    %238 = tpu.assume_multiple %237, 8 : i32
    %239 = arith.index_cast %238 : i32 to index
    %c0_75 = arith.constant 0 : index
    %240 = vector.load %arg10[%239, %c0_75] : memref<64x128xf32, #tpu.memory_space<vmem>>, vector<8x128xf32>
    tpu.vector_store %arg10[%239, %c0_75], %234 {strides = array<i32>} : memref<64x128xf32, #tpu.memory_space<vmem>>, vector<8x128xf32>,
    %c7_i32 = arith.constant 7 : i32
    %c8_i32_76 = arith.constant 8 : i32
    %241 = arith.muli %c7_i32, %c8_i32_76 : i32
    %242 = tpu.assume_multiple %241, 8 : i32
    %243 = arith.index_cast %12 : i32 to index
    %244 = arith.index_cast %242 : i32 to index
    %c0_77 = arith.constant 0 : index
    %245 = vector.load %arg11[%243, %244, %c0_77] : memref<1x64x512xf32, #tpu.memory_space<vmem>>, vector<1x8x512xf32>
    %246 = vector.shape_cast %245 : vector<1x8x512xf32> to vector<8x512xf32>
    %247 = arith.truncf %234 : vector<8x128xf32> to vector<8x128xbf16>
    %c0_78 = arith.constant 0 : index
    %c0_79 = arith.constant 0 : index
    %248 = vector.load %arg2[%c0_78, %c0_79] : memref<128x512xbf16, #tpu.memory_space<vmem>>, vector<128x512xbf16>
    %cst_80 = arith.constant dense<0.000000e+00> : vector<8x512xf32>
    %249 = tpu.matmul %247, %248, %cst_80 {dimension_numbers = #tpu.dot_dimension_numbers<[1], [0], [0], [1], [0, 0, 1, 1], [], []>} : vector<8x128xbf16>, vector<128x512xbf16>, vector<8x512xf32> -> vector<8x512xf32>
    %250 = arith.addf %246, %249 : vector<8x512xf32>
    %251 = vector.extract_strided_slice %250 {offsets = [0, 0], sizes = [8, 384], strides = [1, 1]} : vector<8x512xf32> to vector<8x384xf32>
    %252 = arith.negf %251 : vector<8x384xf32>
    %253 = math.exp %252 : vector<8x384xf32>
    %cst_81 = arith.constant 1.000000e+00 : f32
    %254 = vector.broadcast %cst_81 : f32 to vector<8x384xf32>
    %255 = arith.addf %254, %253 : vector<8x384xf32>
    %256 = arith.divf %254, %255 : vector<8x384xf32>
    %257 = vector.extract_strided_slice %250 {offsets = [0, 384], sizes = [8, 128], strides = [1, 1]} : vector<8x512xf32> to vector<8x128xf32>
    %258 = math.tanh %257 : vector<8x128xf32>
    %259 = vector.extract_strided_slice %256 {offsets = [0, 0], sizes = [8, 128], strides = [1, 1]} : vector<8x384xf32> to vector<8x128xf32>
    %260 = vector.extract_strided_slice %256 {offsets = [0, 128], sizes = [8, 128], strides = [1, 1]} : vector<8x384xf32> to vector<8x128xf32>
    %261 = vector.extract_strided_slice %256 {offsets = [0, 256], sizes = [8, 128], strides = [1, 1]} : vector<8x384xf32> to vector<8x128xf32>
    %262 = arith.mulf %260, %232 : vector<8x128xf32>
    %263 = arith.mulf %259, %258 : vector<8x128xf32>
    %264 = arith.addf %262, %263 : vector<8x128xf32>
    %265 = math.tanh %264 : vector<8x128xf32>
    %266 = arith.mulf %261, %265 : vector<8x128xf32>
    %c64_i32_82 = arith.constant 64 : i32
    %267 = arith.muli %c0_i32, %c64_i32_82 : i32
    %c8_i32_83 = arith.constant 8 : i32
    %268 = arith.muli %c7_i32, %c8_i32_83 : i32
    %269 = arith.addi %267, %268 : i32
    %270 = tpu.assume_multiple %269, 8 : i32
    %271 = arith.index_cast %270 : i32 to index
    %c0_84 = arith.constant 0 : index
    %272 = vector.load %arg10[%271, %c0_84] : memref<64x128xf32, #tpu.memory_space<vmem>>, vector<8x128xf32>
    tpu.vector_store %arg10[%271, %c0_84], %266 {strides = array<i32>} : memref<64x128xf32, #tpu.memory_space<vmem>>, vector<8x128xf32>,
    %c8_i32_85 = arith.constant 8 : i32
    %c1_i32_86 = arith.constant 1 : i32
    %c0_87 = arith.constant 0 : index
    %c0_88 = arith.constant 0 : index
    %273 = vector.load %arg10[%c0_87, %c0_88] : memref<64x128xf32, #tpu.memory_space<vmem>>, vector<64x128xf32>
    %274 = arith.truncf %273 : vector<64x128xf32> to vector<64x128xbf16>
    %c0_89 = arith.constant 0 : index
    %c0_90 = arith.constant 0 : index
    %275 = vector.load %arg4[%c0_89, %c0_90] : memref<128x512xbf16, #tpu.memory_space<vmem>>, vector<128x512xbf16>
    %cst_91 = arith.constant dense<0.000000e+00> : vector<64x512xf32>
    %276 = tpu.matmul %274, %275, %cst_91 {dimension_numbers = #tpu.dot_dimension_numbers<[1], [0], [0], [1], [0, 0, 1, 1], [], []>} : vector<64x128xbf16>, vector<128x512xbf16>, vector<64x512xf32> -> vector<64x512xf32>
    %c0_92 = arith.constant 0 : index
    %c0_93 = arith.constant 0 : index
    %277 = vector.load %arg6[%c0_92, %c0_93] : memref<1x512xf32, #tpu.memory_space<vmem>>, vector<1x512xf32>
    %278 = vector.broadcast %277 : vector<1x512xf32> to vector<64x512xf32>
    %279 = arith.addf %276, %278 : vector<64x512xf32>
    %c0_94 = arith.constant 0 : index
    %c0_95 = arith.constant 0 : index
    %c0_96 = arith.constant 0 : index
    %280 = vector.load %arg11[%c0_94, %c0_95, %c0_96] : memref<1x64x512xf32, #tpu.memory_space<vmem>>, vector<1x64x512xf32>
    %281 = vector.shape_cast %280 : vector<1x64x512xf32> to vector<64x512xf32>
    %282 = vector.shape_cast %279 : vector<64x512xf32> to vector<1x64x512xf32>
    tpu.vector_store %arg11[%c0_94, %c0_95, %c0_96], %282 {strides = array<i32>} : memref<1x64x512xf32, #tpu.memory_space<vmem>>, vector<1x64x512xf32>,
    %cst_97 = arith.constant 0.000000e+00 : f32
    %283 = vector.broadcast %cst_97 : f32 to vector<8x128xf32>
    %cst_98 = arith.constant 0.000000e+00 : f32
    %284 = vector.broadcast %cst_98 : f32 to vector<8x128xf32>
    %c0_i32_99 = arith.constant 0 : i32
    %c1_i32_100 = arith.constant 1 : i32
    %285 = arith.remsi %c0_i32_99, %c1_i32_100 : i32
    %c1_i32_101 = arith.constant 1 : i32
    %286 = arith.addi %c0_i32_99, %c1_i32_101 : i32
    %c1_i32_102 = arith.constant 1 : i32
    %287 = arith.cmpi slt, %286, %c1_i32_102 : i32
    %288 = arith.extui %287 : i1 to i32
    %c0_i32_103 = arith.constant 0 : i32
    %289 = arith.cmpi ne, %288, %c0_i32_103 : i32
    scf.if %289 {
      %c1_i32_169 = arith.constant 1 : i32
      %505 = arith.addi %c0_i32_99, %c1_i32_169 : i32
      %c1_i32_170 = arith.constant 1 : i32
      %506 = arith.addi %c0_i32_99, %c1_i32_170 : i32
      %c1_i32_171 = arith.constant 1 : i32
      %507 = arith.remsi %506, %c1_i32_171 : i32
      %c64_i32_172 = arith.constant 64 : i32
      %508 = arith.muli %505, %c64_i32_172 : i32
      %509 = tpu.assume_multiple %508, 64 : i32
      %510 = arith.index_cast %509 : i32 to index
      %c0_173 = arith.constant 0 : index
      %511 = vector.load %arg10[%510, %c0_173] : memref<64x128xf32, #tpu.memory_space<vmem>>, vector<64x128xf32>
      %512 = arith.truncf %511 : vector<64x128xf32> to vector<64x128xbf16>
      %c0_174 = arith.constant 0 : index
      %c0_175 = arith.constant 0 : index
      %513 = vector.load %arg4[%c0_174, %c0_175] : memref<128x512xbf16, #tpu.memory_space<vmem>>, vector<128x512xbf16>
      %cst_176 = arith.constant dense<0.000000e+00> : vector<64x512xf32>
      %514 = tpu.matmul %512, %513, %cst_176 {dimension_numbers = #tpu.dot_dimension_numbers<[1], [0], [0], [1], [0, 0, 1, 1], [], []>} : vector<64x128xbf16>, vector<128x512xbf16>, vector<64x512xf32> -> vector<64x512xf32>
      %c0_177 = arith.constant 0 : index
      %c0_178 = arith.constant 0 : index
      %515 = vector.load %arg6[%c0_177, %c0_178] : memref<1x512xf32, #tpu.memory_space<vmem>>, vector<1x512xf32>
      %516 = vector.broadcast %515 : vector<1x512xf32> to vector<64x512xf32>
      %517 = arith.addf %514, %516 : vector<64x512xf32>
      %518 = arith.index_cast %507 : i32 to index
      %c0_179 = arith.constant 0 : index
      %c0_180 = arith.constant 0 : index
      %519 = vector.load %arg11[%518, %c0_179, %c0_180] : memref<1x64x512xf32, #tpu.memory_space<vmem>>, vector<1x64x512xf32>
      %520 = vector.shape_cast %519 : vector<1x64x512xf32> to vector<64x512xf32>
      %521 = vector.shape_cast %517 : vector<64x512xf32> to vector<1x64x512xf32>
      tpu.vector_store %arg11[%518, %c0_179, %c0_180], %521 {strides = array<i32>} : memref<1x64x512xf32, #tpu.memory_space<vmem>>, vector<1x64x512xf32>,
    } else {
    }
    %c0_i32_104 = arith.constant 0 : i32
    %c8_i32_105 = arith.constant 8 : i32
    %290 = arith.muli %c0_i32_104, %c8_i32_105 : i32
    %291 = tpu.assume_multiple %290, 8 : i32
    %292 = arith.index_cast %285 : i32 to index
    %293 = arith.index_cast %291 : i32 to index
    %c0_106 = arith.constant 0 : index
    %294 = vector.load %arg11[%292, %293, %c0_106] : memref<1x64x512xf32, #tpu.memory_space<vmem>>, vector<1x8x512xf32>
    %295 = vector.shape_cast %294 : vector<1x8x512xf32> to vector<8x512xf32>
    %296 = arith.truncf %283 : vector<8x128xf32> to vector<8x128xbf16>
    %c0_107 = arith.constant 0 : index
    %c0_108 = arith.constant 0 : index
    %297 = vector.load %arg5[%c0_107, %c0_108] : memref<128x512xbf16, #tpu.memory_space<vmem>>, vector<128x512xbf16>
    %cst_109 = arith.constant dense<0.000000e+00> : vector<8x512xf32>
    %298 = tpu.matmul %296, %297, %cst_109 {dimension_numbers = #tpu.dot_dimension_numbers<[1], [0], [0], [1], [0, 0, 1, 1], [], []>} : vector<8x128xbf16>, vector<128x512xbf16>, vector<8x512xf32> -> vector<8x512xf32>
    %299 = arith.addf %295, %298 : vector<8x512xf32>
    %300 = vector.extract_strided_slice %299 {offsets = [0, 0], sizes = [8, 384], strides = [1, 1]} : vector<8x512xf32> to vector<8x384xf32>
    %301 = arith.negf %300 : vector<8x384xf32>
    %302 = math.exp %301 : vector<8x384xf32>
    %cst_110 = arith.constant 1.000000e+00 : f32
    %303 = vector.broadcast %cst_110 : f32 to vector<8x384xf32>
    %304 = arith.addf %303, %302 : vector<8x384xf32>
    %305 = arith.divf %303, %304 : vector<8x384xf32>
    %306 = vector.extract_strided_slice %299 {offsets = [0, 384], sizes = [8, 128], strides = [1, 1]} : vector<8x512xf32> to vector<8x128xf32>
    %307 = math.tanh %306 : vector<8x128xf32>
    %308 = vector.extract_strided_slice %305 {offsets = [0, 0], sizes = [8, 128], strides = [1, 1]} : vector<8x384xf32> to vector<8x128xf32>
    %309 = vector.extract_strided_slice %305 {offsets = [0, 128], sizes = [8, 128], strides = [1, 1]} : vector<8x384xf32> to vector<8x128xf32>
    %310 = vector.extract_strided_slice %305 {offsets = [0, 256], sizes = [8, 128], strides = [1, 1]} : vector<8x384xf32> to vector<8x128xf32>
    %311 = arith.mulf %309, %284 : vector<8x128xf32>
    %312 = arith.mulf %308, %307 : vector<8x128xf32>
    %313 = arith.addf %311, %312 : vector<8x128xf32>
    %314 = math.tanh %313 : vector<8x128xf32>
    %315 = arith.mulf %310, %314 : vector<8x128xf32>
    %c1_i32_111 = arith.constant 1 : i32
    %c8_i32_112 = arith.constant 8 : i32
    %316 = arith.muli %c1_i32_111, %c8_i32_112 : i32
    %317 = tpu.assume_multiple %316, 8 : i32
    %318 = arith.index_cast %285 : i32 to index
    %319 = arith.index_cast %317 : i32 to index
    %c0_113 = arith.constant 0 : index
    %320 = vector.load %arg11[%318, %319, %c0_113] : memref<1x64x512xf32, #tpu.memory_space<vmem>>, vector<1x8x512xf32>
    %321 = vector.shape_cast %320 : vector<1x8x512xf32> to vector<8x512xf32>
    %322 = arith.truncf %315 : vector<8x128xf32> to vector<8x128xbf16>
    %c0_114 = arith.constant 0 : index
    %c0_115 = arith.constant 0 : index
    %323 = vector.load %arg5[%c0_114, %c0_115] : memref<128x512xbf16, #tpu.memory_space<vmem>>, vector<128x512xbf16>
    %cst_116 = arith.constant dense<0.000000e+00> : vector<8x512xf32>
    %324 = tpu.matmul %322, %323, %cst_116 {dimension_numbers = #tpu.dot_dimension_numbers<[1], [0], [0], [1], [0, 0, 1, 1], [], []>} : vector<8x128xbf16>, vector<128x512xbf16>, vector<8x512xf32> -> vector<8x512xf32>
    %325 = arith.addf %321, %324 : vector<8x512xf32>
    %326 = vector.extract_strided_slice %325 {offsets = [0, 0], sizes = [8, 384], strides = [1, 1]} : vector<8x512xf32> to vector<8x384xf32>
    %327 = arith.negf %326 : vector<8x384xf32>
    %328 = math.exp %327 : vector<8x384xf32>
    %cst_117 = arith.constant 1.000000e+00 : f32
    %329 = vector.broadcast %cst_117 : f32 to vector<8x384xf32>
    %330 = arith.addf %329, %328 : vector<8x384xf32>
    %331 = arith.divf %329, %330 : vector<8x384xf32>
    %332 = vector.extract_strided_slice %325 {offsets = [0, 384], sizes = [8, 128], strides = [1, 1]} : vector<8x512xf32> to vector<8x128xf32>
    %333 = math.tanh %332 : vector<8x128xf32>
    %334 = vector.extract_strided_slice %331 {offsets = [0, 0], sizes = [8, 128], strides = [1, 1]} : vector<8x384xf32> to vector<8x128xf32>
    %335 = vector.extract_strided_slice %331 {offsets = [0, 128], sizes = [8, 128], strides = [1, 1]} : vector<8x384xf32> to vector<8x128xf32>
    %336 = vector.extract_strided_slice %331 {offsets = [0, 256], sizes = [8, 128], strides = [1, 1]} : vector<8x384xf32> to vector<8x128xf32>
    %337 = arith.mulf %335, %313 : vector<8x128xf32>
    %338 = arith.mulf %334, %333 : vector<8x128xf32>
    %339 = arith.addf %337, %338 : vector<8x128xf32>
    %340 = math.tanh %339 : vector<8x128xf32>
    %341 = arith.mulf %336, %340 : vector<8x128xf32>
    %c2_i32_118 = arith.constant 2 : i32
    %c8_i32_119 = arith.constant 8 : i32
    %342 = arith.muli %c2_i32_118, %c8_i32_119 : i32
    %343 = tpu.assume_multiple %342, 8 : i32
    %344 = arith.index_cast %285 : i32 to index
    %345 = arith.index_cast %343 : i32 to index
    %c0_120 = arith.constant 0 : index
    %346 = vector.load %arg11[%344, %345, %c0_120] : memref<1x64x512xf32, #tpu.memory_space<vmem>>, vector<1x8x512xf32>
    %347 = vector.shape_cast %346 : vector<1x8x512xf32> to vector<8x512xf32>
    %348 = arith.truncf %341 : vector<8x128xf32> to vector<8x128xbf16>
    %c0_121 = arith.constant 0 : index
    %c0_122 = arith.constant 0 : index
    %349 = vector.load %arg5[%c0_121, %c0_122] : memref<128x512xbf16, #tpu.memory_space<vmem>>, vector<128x512xbf16>
    %cst_123 = arith.constant dense<0.000000e+00> : vector<8x512xf32>
    %350 = tpu.matmul %348, %349, %cst_123 {dimension_numbers = #tpu.dot_dimension_numbers<[1], [0], [0], [1], [0, 0, 1, 1], [], []>} : vector<8x128xbf16>, vector<128x512xbf16>, vector<8x512xf32> -> vector<8x512xf32>
    %351 = arith.addf %347, %350 : vector<8x512xf32>
    %352 = vector.extract_strided_slice %351 {offsets = [0, 0], sizes = [8, 384], strides = [1, 1]} : vector<8x512xf32> to vector<8x384xf32>
    %353 = arith.negf %352 : vector<8x384xf32>
    %354 = math.exp %353 : vector<8x384xf32>
    %cst_124 = arith.constant 1.000000e+00 : f32
    %355 = vector.broadcast %cst_124 : f32 to vector<8x384xf32>
    %356 = arith.addf %355, %354 : vector<8x384xf32>
    %357 = arith.divf %355, %356 : vector<8x384xf32>
    %358 = vector.extract_strided_slice %351 {offsets = [0, 384], sizes = [8, 128], strides = [1, 1]} : vector<8x512xf32> to vector<8x128xf32>
    %359 = math.tanh %358 : vector<8x128xf32>
    %360 = vector.extract_strided_slice %357 {offsets = [0, 0], sizes = [8, 128], strides = [1, 1]} : vector<8x384xf32> to vector<8x128xf32>
    %361 = vector.extract_strided_slice %357 {offsets = [0, 128], sizes = [8, 128], strides = [1, 1]} : vector<8x384xf32> to vector<8x128xf32>
    %362 = vector.extract_strided_slice %357 {offsets = [0, 256], sizes = [8, 128], strides = [1, 1]} : vector<8x384xf32> to vector<8x128xf32>
    %363 = arith.mulf %361, %339 : vector<8x128xf32>
    %364 = arith.mulf %360, %359 : vector<8x128xf32>
    %365 = arith.addf %363, %364 : vector<8x128xf32>
    %366 = math.tanh %365 : vector<8x128xf32>
    %367 = arith.mulf %362, %366 : vector<8x128xf32>
    %c3_i32_125 = arith.constant 3 : i32
    %c8_i32_126 = arith.constant 8 : i32
    %368 = arith.muli %c3_i32_125, %c8_i32_126 : i32
    %369 = tpu.assume_multiple %368, 8 : i32
    %370 = arith.index_cast %285 : i32 to index
    %371 = arith.index_cast %369 : i32 to index
    %c0_127 = arith.constant 0 : index
    %372 = vector.load %arg11[%370, %371, %c0_127] : memref<1x64x512xf32, #tpu.memory_space<vmem>>, vector<1x8x512xf32>
    %373 = vector.shape_cast %372 : vector<1x8x512xf32> to vector<8x512xf32>
    %374 = arith.truncf %367 : vector<8x128xf32> to vector<8x128xbf16>
    %c0_128 = arith.constant 0 : index
    %c0_129 = arith.constant 0 : index
    %375 = vector.load %arg5[%c0_128, %c0_129] : memref<128x512xbf16, #tpu.memory_space<vmem>>, vector<128x512xbf16>
    %cst_130 = arith.constant dense<0.000000e+00> : vector<8x512xf32>
    %376 = tpu.matmul %374, %375, %cst_130 {dimension_numbers = #tpu.dot_dimension_numbers<[1], [0], [0], [1], [0, 0, 1, 1], [], []>} : vector<8x128xbf16>, vector<128x512xbf16>, vector<8x512xf32> -> vector<8x512xf32>
    %377 = arith.addf %373, %376 : vector<8x512xf32>
    %378 = vector.extract_strided_slice %377 {offsets = [0, 0], sizes = [8, 384], strides = [1, 1]} : vector<8x512xf32> to vector<8x384xf32>
    %379 = arith.negf %378 : vector<8x384xf32>
    %380 = math.exp %379 : vector<8x384xf32>
    %cst_131 = arith.constant 1.000000e+00 : f32
    %381 = vector.broadcast %cst_131 : f32 to vector<8x384xf32>
    %382 = arith.addf %381, %380 : vector<8x384xf32>
    %383 = arith.divf %381, %382 : vector<8x384xf32>
    %384 = vector.extract_strided_slice %377 {offsets = [0, 384], sizes = [8, 128], strides = [1, 1]} : vector<8x512xf32> to vector<8x128xf32>
    %385 = math.tanh %384 : vector<8x128xf32>
    %386 = vector.extract_strided_slice %383 {offsets = [0, 0], sizes = [8, 128], strides = [1, 1]} : vector<8x384xf32> to vector<8x128xf32>
    %387 = vector.extract_strided_slice %383 {offsets = [0, 128], sizes = [8, 128], strides = [1, 1]} : vector<8x384xf32> to vector<8x128xf32>
    %388 = vector.extract_strided_slice %383 {offsets = [0, 256], sizes = [8, 128], strides = [1, 1]} : vector<8x384xf32> to vector<8x128xf32>
    %389 = arith.mulf %387, %365 : vector<8x128xf32>
    %390 = arith.mulf %386, %385 : vector<8x128xf32>
    %391 = arith.addf %389, %390 : vector<8x128xf32>
    %392 = math.tanh %391 : vector<8x128xf32>
    %393 = arith.mulf %388, %392 : vector<8x128xf32>
    %c4_i32_132 = arith.constant 4 : i32
    %c8_i32_133 = arith.constant 8 : i32
    %394 = arith.muli %c4_i32_132, %c8_i32_133 : i32
    %395 = tpu.assume_multiple %394, 8 : i32
    %396 = arith.index_cast %285 : i32 to index
    %397 = arith.index_cast %395 : i32 to index
    %c0_134 = arith.constant 0 : index
    %398 = vector.load %arg11[%396, %397, %c0_134] : memref<1x64x512xf32, #tpu.memory_space<vmem>>, vector<1x8x512xf32>
    %399 = vector.shape_cast %398 : vector<1x8x512xf32> to vector<8x512xf32>
    %400 = arith.truncf %393 : vector<8x128xf32> to vector<8x128xbf16>
    %c0_135 = arith.constant 0 : index
    %c0_136 = arith.constant 0 : index
    %401 = vector.load %arg5[%c0_135, %c0_136] : memref<128x512xbf16, #tpu.memory_space<vmem>>, vector<128x512xbf16>
    %cst_137 = arith.constant dense<0.000000e+00> : vector<8x512xf32>
    %402 = tpu.matmul %400, %401, %cst_137 {dimension_numbers = #tpu.dot_dimension_numbers<[1], [0], [0], [1], [0, 0, 1, 1], [], []>} : vector<8x128xbf16>, vector<128x512xbf16>, vector<8x512xf32> -> vector<8x512xf32>
    %403 = arith.addf %399, %402 : vector<8x512xf32>
    %404 = vector.extract_strided_slice %403 {offsets = [0, 0], sizes = [8, 384], strides = [1, 1]} : vector<8x512xf32> to vector<8x384xf32>
    %405 = arith.negf %404 : vector<8x384xf32>
    %406 = math.exp %405 : vector<8x384xf32>
    %cst_138 = arith.constant 1.000000e+00 : f32
    %407 = vector.broadcast %cst_138 : f32 to vector<8x384xf32>
    %408 = arith.addf %407, %406 : vector<8x384xf32>
    %409 = arith.divf %407, %408 : vector<8x384xf32>
    %410 = vector.extract_strided_slice %403 {offsets = [0, 384], sizes = [8, 128], strides = [1, 1]} : vector<8x512xf32> to vector<8x128xf32>
    %411 = math.tanh %410 : vector<8x128xf32>
    %412 = vector.extract_strided_slice %409 {offsets = [0, 0], sizes = [8, 128], strides = [1, 1]} : vector<8x384xf32> to vector<8x128xf32>
    %413 = vector.extract_strided_slice %409 {offsets = [0, 128], sizes = [8, 128], strides = [1, 1]} : vector<8x384xf32> to vector<8x128xf32>
    %414 = vector.extract_strided_slice %409 {offsets = [0, 256], sizes = [8, 128], strides = [1, 1]} : vector<8x384xf32> to vector<8x128xf32>
    %415 = arith.mulf %413, %391 : vector<8x128xf32>
    %416 = arith.mulf %412, %411 : vector<8x128xf32>
    %417 = arith.addf %415, %416 : vector<8x128xf32>
    %418 = math.tanh %417 : vector<8x128xf32>
    %419 = arith.mulf %414, %418 : vector<8x128xf32>
    %c5_i32_139 = arith.constant 5 : i32
    %c8_i32_140 = arith.constant 8 : i32
    %420 = arith.muli %c5_i32_139, %c8_i32_140 : i32
    %421 = tpu.assume_multiple %420, 8 : i32
    %422 = arith.index_cast %285 : i32 to index
    %423 = arith.index_cast %421 : i32 to index
    %c0_141 = arith.constant 0 : index
    %424 = vector.load %arg11[%422, %423, %c0_141] : memref<1x64x512xf32, #tpu.memory_space<vmem>>, vector<1x8x512xf32>
    %425 = vector.shape_cast %424 : vector<1x8x512xf32> to vector<8x512xf32>
    %426 = arith.truncf %419 : vector<8x128xf32> to vector<8x128xbf16>
    %c0_142 = arith.constant 0 : index
    %c0_143 = arith.constant 0 : index
    %427 = vector.load %arg5[%c0_142, %c0_143] : memref<128x512xbf16, #tpu.memory_space<vmem>>, vector<128x512xbf16>
    %cst_144 = arith.constant dense<0.000000e+00> : vector<8x512xf32>
    %428 = tpu.matmul %426, %427, %cst_144 {dimension_numbers = #tpu.dot_dimension_numbers<[1], [0], [0], [1], [0, 0, 1, 1], [], []>} : vector<8x128xbf16>, vector<128x512xbf16>, vector<8x512xf32> -> vector<8x512xf32>
    %429 = arith.addf %425, %428 : vector<8x512xf32>
    %430 = vector.extract_strided_slice %429 {offsets = [0, 0], sizes = [8, 384], strides = [1, 1]} : vector<8x512xf32> to vector<8x384xf32>
    %431 = arith.negf %430 : vector<8x384xf32>
    %432 = math.exp %431 : vector<8x384xf32>
    %cst_145 = arith.constant 1.000000e+00 : f32
    %433 = vector.broadcast %cst_145 : f32 to vector<8x384xf32>
    %434 = arith.addf %433, %432 : vector<8x384xf32>
    %435 = arith.divf %433, %434 : vector<8x384xf32>
    %436 = vector.extract_strided_slice %429 {offsets = [0, 384], sizes = [8, 128], strides = [1, 1]} : vector<8x512xf32> to vector<8x128xf32>
    %437 = math.tanh %436 : vector<8x128xf32>
    %438 = vector.extract_strided_slice %435 {offsets = [0, 0], sizes = [8, 128], strides = [1, 1]} : vector<8x384xf32> to vector<8x128xf32>
    %439 = vector.extract_strided_slice %435 {offsets = [0, 128], sizes = [8, 128], strides = [1, 1]} : vector<8x384xf32> to vector<8x128xf32>
    %440 = vector.extract_strided_slice %435 {offsets = [0, 256], sizes = [8, 128], strides = [1, 1]} : vector<8x384xf32> to vector<8x128xf32>
    %441 = arith.mulf %439, %417 : vector<8x128xf32>
    %442 = arith.mulf %438, %437 : vector<8x128xf32>
    %443 = arith.addf %441, %442 : vector<8x128xf32>
    %444 = math.tanh %443 : vector<8x128xf32>
    %445 = arith.mulf %440, %444 : vector<8x128xf32>
    %c6_i32_146 = arith.constant 6 : i32
    %c8_i32_147 = arith.constant 8 : i32
    %446 = arith.muli %c6_i32_146, %c8_i32_147 : i32
    %447 = tpu.assume_multiple %446, 8 : i32
    %448 = arith.index_cast %285 : i32 to index
    %449 = arith.index_cast %447 : i32 to index
    %c0_148 = arith.constant 0 : index
    %450 = vector.load %arg11[%448, %449, %c0_148] : memref<1x64x512xf32, #tpu.memory_space<vmem>>, vector<1x8x512xf32>
    %451 = vector.shape_cast %450 : vector<1x8x512xf32> to vector<8x512xf32>
    %452 = arith.truncf %445 : vector<8x128xf32> to vector<8x128xbf16>
    %c0_149 = arith.constant 0 : index
    %c0_150 = arith.constant 0 : index
    %453 = vector.load %arg5[%c0_149, %c0_150] : memref<128x512xbf16, #tpu.memory_space<vmem>>, vector<128x512xbf16>
    %cst_151 = arith.constant dense<0.000000e+00> : vector<8x512xf32>
    %454 = tpu.matmul %452, %453, %cst_151 {dimension_numbers = #tpu.dot_dimension_numbers<[1], [0], [0], [1], [0, 0, 1, 1], [], []>} : vector<8x128xbf16>, vector<128x512xbf16>, vector<8x512xf32> -> vector<8x512xf32>
    %455 = arith.addf %451, %454 : vector<8x512xf32>
    %456 = vector.extract_strided_slice %455 {offsets = [0, 0], sizes = [8, 384], strides = [1, 1]} : vector<8x512xf32> to vector<8x384xf32>
    %457 = arith.negf %456 : vector<8x384xf32>
    %458 = math.exp %457 : vector<8x384xf32>
    %cst_152 = arith.constant 1.000000e+00 : f32
    %459 = vector.broadcast %cst_152 : f32 to vector<8x384xf32>
    %460 = arith.addf %459, %458 : vector<8x384xf32>
    %461 = arith.divf %459, %460 : vector<8x384xf32>
    %462 = vector.extract_strided_slice %455 {offsets = [0, 384], sizes = [8, 128], strides = [1, 1]} : vector<8x512xf32> to vector<8x128xf32>
    %463 = math.tanh %462 : vector<8x128xf32>
    %464 = vector.extract_strided_slice %461 {offsets = [0, 0], sizes = [8, 128], strides = [1, 1]} : vector<8x384xf32> to vector<8x128xf32>
    %465 = vector.extract_strided_slice %461 {offsets = [0, 128], sizes = [8, 128], strides = [1, 1]} : vector<8x384xf32> to vector<8x128xf32>
    %466 = vector.extract_strided_slice %461 {offsets = [0, 256], sizes = [8, 128], strides = [1, 1]} : vector<8x384xf32> to vector<8x128xf32>
    %467 = arith.mulf %465, %443 : vector<8x128xf32>
    %468 = arith.mulf %464, %463 : vector<8x128xf32>
    %469 = arith.addf %467, %468 : vector<8x128xf32>
    %470 = math.tanh %469 : vector<8x128xf32>
    %471 = arith.mulf %466, %470 : vector<8x128xf32>
    %c7_i32_153 = arith.constant 7 : i32
    %c8_i32_154 = arith.constant 8 : i32
    %472 = arith.muli %c7_i32_153, %c8_i32_154 : i32
    %473 = tpu.assume_multiple %472, 8 : i32
    %474 = arith.index_cast %285 : i32 to index
    %475 = arith.index_cast %473 : i32 to index
    %c0_155 = arith.constant 0 : index
    %476 = vector.load %arg11[%474, %475, %c0_155] : memref<1x64x512xf32, #tpu.memory_space<vmem>>, vector<1x8x512xf32>
    %477 = vector.shape_cast %476 : vector<1x8x512xf32> to vector<8x512xf32>
    %478 = arith.truncf %471 : vector<8x128xf32> to vector<8x128xbf16>
    %c0_156 = arith.constant 0 : index
    %c0_157 = arith.constant 0 : index
    %479 = vector.load %arg5[%c0_156, %c0_157] : memref<128x512xbf16, #tpu.memory_space<vmem>>, vector<128x512xbf16>
    %cst_158 = arith.constant dense<0.000000e+00> : vector<8x512xf32>
    %480 = tpu.matmul %478, %479, %cst_158 {dimension_numbers = #tpu.dot_dimension_numbers<[1], [0], [0], [1], [0, 0, 1, 1], [], []>} : vector<8x128xbf16>, vector<128x512xbf16>, vector<8x512xf32> -> vector<8x512xf32>
    %481 = arith.addf %477, %480 : vector<8x512xf32>
    %482 = vector.extract_strided_slice %481 {offsets = [0, 0], sizes = [8, 384], strides = [1, 1]} : vector<8x512xf32> to vector<8x384xf32>
    %483 = arith.negf %482 : vector<8x384xf32>
    %484 = math.exp %483 : vector<8x384xf32>
    %cst_159 = arith.constant 1.000000e+00 : f32
    %485 = vector.broadcast %cst_159 : f32 to vector<8x384xf32>
    %486 = arith.addf %485, %484 : vector<8x384xf32>
    %487 = arith.divf %485, %486 : vector<8x384xf32>
    %488 = vector.extract_strided_slice %481 {offsets = [0, 384], sizes = [8, 128], strides = [1, 1]} : vector<8x512xf32> to vector<8x128xf32>
    %489 = math.tanh %488 : vector<8x128xf32>
    %490 = vector.extract_strided_slice %487 {offsets = [0, 0], sizes = [8, 128], strides = [1, 1]} : vector<8x384xf32> to vector<8x128xf32>
    %491 = vector.extract_strided_slice %487 {offsets = [0, 128], sizes = [8, 128], strides = [1, 1]} : vector<8x384xf32> to vector<8x128xf32>
    %492 = vector.extract_strided_slice %487 {offsets = [0, 256], sizes = [8, 128], strides = [1, 1]} : vector<8x384xf32> to vector<8x128xf32>
    %493 = arith.mulf %491, %469 : vector<8x128xf32>
    %494 = arith.mulf %490, %489 : vector<8x128xf32>
    %495 = arith.addf %493, %494 : vector<8x128xf32>
    %496 = math.tanh %495 : vector<8x128xf32>
    %497 = arith.mulf %492, %496 : vector<8x128xf32>
    %c8_i32_160 = arith.constant 8 : i32
    %c1_i32_161 = arith.constant 1 : i32
    %498 = arith.truncf %497 : vector<8x128xf32> to vector<8x128xbf16>
    %c0_162 = arith.constant 0 : index
    %c0_163 = arith.constant 0 : index
    %499 = vector.load %arg7[%c0_162, %c0_163] : memref<128x128xbf16, #tpu.memory_space<vmem>>, vector<128x128xbf16>
    %cst_164 = arith.constant dense<0.000000e+00> : vector<8x128xf32>
    %500 = tpu.matmul %498, %499, %cst_164 {dimension_numbers = #tpu.dot_dimension_numbers<[1], [0], [0], [1], [0, 0, 1, 1], [], []>} : vector<8x128xbf16>, vector<128x128xbf16>, vector<8x128xf32> -> vector<8x128xf32>
    %c0_165 = arith.constant 0 : index
    %c0_166 = arith.constant 0 : index
    %501 = vector.load %arg8[%c0_165, %c0_166] : memref<1x128xf32, #tpu.memory_space<vmem>>, vector<1x128xf32>
    %502 = vector.broadcast %501 : vector<1x128xf32> to vector<8x128xf32>
    %503 = arith.addf %500, %502 : vector<8x128xf32>
    %c0_167 = arith.constant 0 : index
    %c0_168 = arith.constant 0 : index
    %504 = vector.load %arg9[%c0_167, %c0_168] : memref<8x128xf32, #tpu.memory_space<vmem>>, vector<8x128xf32>
    tpu.vector_store %arg9[%c0_167, %c0_168], %503 {strides = array<i32>} : memref<8x128xf32, #tpu.memory_space<vmem>>, vector<8x128xf32>,
    return
  }
}

</mosaic_0001>

<llo_original>
// kernel: tpu_custom_call.1
$region0: #{tpu_custom_call.1}
  #allocation0 [shape = 'u32[]', space=smem, size = 0x4, offset = 0x4, fixed_abs, tag = 'smem constant byte address 0x4 - core index']
  #allocation1 [shape = 'u32[144,128]{1,0:T(1,128)}', space=vmem, size = 0x12000, scoped, tag = 'internal scratch']
  #allocation2 [shape = 'f32[64,128]{1,0:T(8,128)}', space=vmem, size = 0x8000, scoped, tag = 'scratch operand']
  #allocation3 [shape = 'f32[1,64,512]{2,1,0:T(8,128)}', space=vmem, size = 0x20000, scoped, tag = 'scratch operand']
  %s0 = inlined_call_operand.hbm [shape: f32[64,128], index: 0, kind: input, shape index: {}]
  %s1 = inlined_call_operand.hbm [shape: bf16[128,512], index: 1, kind: input, shape index: {}]
  %s2 = inlined_call_operand.hbm [shape: bf16[128,512], index: 2, kind: input, shape index: {}]
  %s3 = inlined_call_operand.vmem [shape: f32[1,512], index: 3, kind: input, shape index: {}]
  %s4 = inlined_call_operand.hbm [shape: bf16[128,512], index: 4, kind: input, shape index: {}]
  %s5 = inlined_call_operand.hbm [shape: bf16[128,512], index: 5, kind: input, shape index: {}]
  %s6 = inlined_call_operand.vmem [shape: f32[1,512], index: 6, kind: input, shape index: {}]
  %s7 = inlined_call_operand.hbm [shape: bf16[128,128], index: 7, kind: input, shape index: {}]
  %s8 = inlined_call_operand.vmem [shape: f32[1,128], index: 8, kind: input, shape index: {}]
  %s9 = inlined_call_operand.hbm [shape: f32[8,128], index: 9, kind: output, shape index: {}]
  %s10 = sld [smem:[#allocation0]]
  $region70: #{tpu_custom_call.1} parent=0
    _
  %s12 = ssub.s32 1, %s10
  %s13 = scalar_select 0, %s12, %s10
  $region1: #{tpu_custom_call.1} parent=0
    #allocation4 [shape = 'u8[32768]{0}', space=vmem, size = 0x8000, scoped, tag = 'input window, operand 0, single buffered']
    #allocation5 [shape = 's32[1]{0}', space=sflag, size = 0x4, scoped, tag = 'scoped memory for tpu_custom_call.1']
    #allocation6 [shape = 's32[1]{0}', space=sflag, size = 0x4, scoped, tag = 'scoped memory for tpu_custom_call.1']
    #allocation7 [shape = 'u8[131072]{0}', space=vmem, size = 0x20000, scoped, tag = 'input window, operand 1, single buffered']
    #allocation8 [shape = 's32[1]{0}', space=sflag, size = 0x4, scoped, tag = 'scoped memory for tpu_custom_call.1']
    #allocation9 [shape = 'u8[131072]{0}', space=vmem, size = 0x20000, scoped, tag = 'input window, operand 2, single buffered']
    #allocation10 [shape = 'u8[131072]{0}', space=vmem, size = 0x20000, scoped, tag = 'input window, operand 4, single buffered']
    #allocation11 [shape = 's32[1]{0}', space=sflag, size = 0x4, scoped, tag = 'scoped memory for tpu_custom_call.1']
    #allocation12 [shape = 'u8[131072]{0}', space=vmem, size = 0x20000, scoped, tag = 'input window, operand 5, single buffered']
    #allocation13 [shape = 'u8[32768]{0}', space=vmem, size = 0x8000, scoped, tag = 'input window, operand 7, single buffered']
    #allocation14 [shape = 's32[1]{0}', space=sflag, size = 0x4, scoped, tag = 'scoped memory for tpu_custom_call.1']
    #allocation15 [shape = 'u8[4096]{0}', space=vmem, size = 0x1000, scoped, tag = 'output window, operand 0, single buffered']
    %14 = vsyncpa [#allocation5], 0
    %15 = vsyncpa [#allocation8], 0
    %16 = vsyncpa [#allocation11], 0
    %17 = vsyncpa [#allocation14], 0
    %18 = vsyncpa [#allocation6], 0
    // Predicated region
    $region2: #{tpu_custom_call.1} parent=1 // pred_check
      _
    $region3: #{tpu_custom_call.1} parent=1 // pred_check_branch
      %20 = sbr.rel (0) target = $region5
    $region4: #{tpu_custom_call.1} parent=1 // pred_region
      %s22 = ssub.s32 1024, 1024
      %23 = vsyncadd [#allocation5], %s22
      %s24 = sshll.u32 [#allocation4], 4
      %s25 = int_to_ptr.vmem [resolvable:$true] %s24
      %30 = dma.hbm_to_vmem [thread:$0]  %s0, 1024, %s25, [#allocation5], 128, 128, 8
    $region5: #{tpu_custom_call.1} parent=1 // pred_fallthru
      _
    // Predicated region
    $region6: #{tpu_custom_call.1} parent=1 // pred_check
      _
    $region7: #{tpu_custom_call.1} parent=1 // pred_check_branch
      %32 = sbr.rel (0) target = $region9
    $region8: #{tpu_custom_call.1} parent=1 // pred_region
      %s34 = ssub.s32 4096, 4096
      %35 = vsyncadd [#allocation8], %s34
      %s36 = sshll.u32 [#allocation7], 4
      %s37 = int_to_ptr.vmem [resolvable:$true] %s36
      %42 = dma.hbm_to_vmem [thread:$0]  %s1, 4096, %s37, [#allocation8], 256, 256, 16
    $region9: #{tpu_custom_call.1} parent=1 // pred_fallthru
      _
    // Predicated region
    $region10: #{tpu_custom_call.1} parent=1 // pred_check
      _
    $region11: #{tpu_custom_call.1} parent=1 // pred_check_branch
      %44 = sbr.rel (0) target = $region13
    $region12: #{tpu_custom_call.1} parent=1 // pred_region
      %s46 = ssub.s32 4096, 4096
      %47 = vsyncadd [#allocation8], %s46
      %s48 = sshll.u32 [#allocation9], 4
      %s49 = int_to_ptr.vmem [resolvable:$true] %s48
      %54 = dma.hbm_to_vmem [thread:$0]  %s2, 4096, %s49, [#allocation8], 256, 256, 16
    $region13: #{tpu_custom_call.1} parent=1 // pred_fallthru
      _
    // Predicated region
    $region14: #{tpu_custom_call.1} parent=1 // pred_check
      _
    $region15: #{tpu_custom_call.1} parent=1 // pred_check_branch
      %56 = sbr.rel (0) target = $region17
    $region16: #{tpu_custom_call.1} parent=1 // pred_region
      _
    $region17: #{tpu_custom_call.1} parent=1 // pred_fallthru
      _
    // Predicated region
    $region18: #{tpu_custom_call.1} parent=1 // pred_check
      _
    $region19: #{tpu_custom_call.1} parent=1 // pred_check_branch
      %58 = sbr.rel (0) target = $region21
    $region20: #{tpu_custom_call.1} parent=1 // pred_region
      %s60 = ssub.s32 4096, 4096
      %61 = vsyncadd [#allocation11], %s60
      %s62 = sshll.u32 [#allocation10], 4
      %s63 = int_to_ptr.vmem [resolvable:$true] %s62
      %68 = dma.hbm_to_vmem [thread:$0]  %s4, 4096, %s63, [#allocation11], 256, 256, 16
    $region21: #{tpu_custom_call.1} parent=1 // pred_fallthru
      _
    // Predicated region
    $region22: #{tpu_custom_call.1} parent=1 // pred_check
      _
    $region23: #{tpu_custom_call.1} parent=1 // pred_check_branch
      %70 = sbr.rel (0) target = $region25
    $region24: #{tpu_custom_call.1} parent=1 // pred_region
      %s72 = ssub.s32 4096, 4096
      %73 = vsyncadd [#allocation11], %s72
      %s74 = sshll.u32 [#allocation12], 4
      %s75 = int_to_ptr.vmem [resolvable:$true] %s74
      %80 = dma.hbm_to_vmem [thread:$0]  %s5, 4096, %s75, [#allocation11], 256, 256, 16
    $region25: #{tpu_custom_call.1} parent=1 // pred_fallthru
      _
    // Predicated region
    $region26: #{tpu_custom_call.1} parent=1 // pred_check
      _
    $region27: #{tpu_custom_call.1} parent=1 // pred_check_branch
      %82 = sbr.rel (0) target = $region29
    $region28: #{tpu_custom_call.1} parent=1 // pred_region
      _
    $region29: #{tpu_custom_call.1} parent=1 // pred_fallthru
      _
    // Predicated region
    $region30: #{tpu_custom_call.1} parent=1 // pred_check
      _
    $region31: #{tpu_custom_call.1} parent=1 // pred_check_branch
      %84 = sbr.rel (0) target = $region33
    $region32: #{tpu_custom_call.1} parent=1 // pred_region
      %s86 = ssub.s32 1024, 1024
      %87 = vsyncadd [#allocation14], %s86
      %s88 = sshll.u32 [#allocation13], 4
      %s89 = int_to_ptr.vmem [resolvable:$true] %s88
      %94 = dma.hbm_to_vmem [thread:$0]  %s7, 1024, %s89, [#allocation14], 64, 64, 4
    $region33: #{tpu_custom_call.1} parent=1 // pred_fallthru
      _
    // Predicated region
    $region34: #{tpu_custom_call.1} parent=1 // pred_check
      _
    $region35: #{tpu_custom_call.1} parent=1 // pred_check_branch
      %96 = sbr.rel (0) target = $region37
    $region36: #{tpu_custom_call.1} parent=1 // pred_region
      _
    $region37: #{tpu_custom_call.1} parent=1 // pred_fallthru
      _
    // Predicated region
    $region38: #{tpu_custom_call.1} parent=1 // pred_check
      _
    $region39: #{tpu_custom_call.1} parent=1 // pred_check_branch
      %98 = sbr.rel (0) target = $region41
    $region40: #{tpu_custom_call.1} parent=1 // pred_region
      %99 = dma.done [#allocation5], 1024
    $region41: #{tpu_custom_call.1} parent=1 // pred_fallthru
      _
    // Predicated region
    $region42: #{tpu_custom_call.1} parent=1 // pred_check
      _
    $region43: #{tpu_custom_call.1} parent=1 // pred_check_branch
      %101 = sbr.rel (0) target = $region45
    $region44: #{tpu_custom_call.1} parent=1 // pred_region
      %102 = dma.done [#allocation8], 4096
    $region45: #{tpu_custom_call.1} parent=1 // pred_fallthru
      _
    // Predicated region
    $region46: #{tpu_custom_call.1} parent=1 // pred_check
      _
    $region47: #{tpu_custom_call.1} parent=1 // pred_check_branch
      %104 = sbr.rel (0) target = $region49
    $region48: #{tpu_custom_call.1} parent=1 // pred_region
      %105 = dma.done [#allocation8], 4096
    $region49: #{tpu_custom_call.1} parent=1 // pred_fallthru
      _
    // Predicated region
    $region50: #{tpu_custom_call.1} parent=1 // pred_check
      _
    $region51: #{tpu_custom_call.1} parent=1 // pred_check_branch
      %107 = sbr.rel (0) target = $region53
    $region52: #{tpu_custom_call.1} parent=1 // pred_region
      %108 = dma.done [#allocation11], 4096
    $region53: #{tpu_custom_call.1} parent=1 // pred_fallthru
      _
    // Predicated region
    $region54: #{tpu_custom_call.1} parent=1 // pred_check
      _
    $region55: #{tpu_custom_call.1} parent=1 // pred_check_branch
      %110 = sbr.rel (0) target = $region57
    $region56: #{tpu_custom_call.1} parent=1 // pred_region
      %111 = dma.done [#allocation11], 4096
    $region57: #{tpu_custom_call.1} parent=1 // pred_fallthru
      _
    // Predicated region
    $region58: #{tpu_custom_call.1} parent=1 // pred_check
      _
    $region59: #{tpu_custom_call.1} parent=1 // pred_check_branch
      %113 = sbr.rel (0) target = $region61
    $region60: #{tpu_custom_call.1} parent=1 // pred_region
      %114 = dma.done [#allocation14], 1024
    $region61: #{tpu_custom_call.1} parent=1 // pred_fallthru
      _
    %v116 = vld [vmem:[#allocation4] sm:$0xff]
    %v117 = vld [vmem:[#allocation4 + $0x8] sm:$0xff]
    %v118 = vld [vmem:[#allocation4 + $0x10] sm:$0xff]
    %v119 = vld [vmem:[#allocation4 + $0x18] sm:$0xff]
    %v120 = vld [vmem:[#allocation4 + $0x20] sm:$0xff]
    %v121 = vld [vmem:[#allocation4 + $0x28] sm:$0xff]
    %v122 = vld [vmem:[#allocation4 + $0x30] sm:$0xff]
    %v123 = vld [vmem:[#allocation4 + $0x38] sm:$0xff]
    %v124 = vpack.c.bf16 %v117, %v116
    %v125 = vpack.c.bf16 %v119, %v118
    %v126 = vpack.c.bf16 %v121, %v120
    %v127 = vpack.c.bf16 %v123, %v122
    %v128 = vld [vmem:[#allocation7] sm:$0xff]
    %v129 = vld [vmem:[#allocation7 + $0x8] sm:$0xff]
    %v130 = vld [vmem:[#allocation7 + $0x10] sm:$0xff]
    %v131 = vld [vmem:[#allocation7 + $0x18] sm:$0xff]
    %v132 = vld [vmem:[#allocation7 + $0x20] sm:$0xff]
    %v133 = vld [vmem:[#allocation7 + $0x28] sm:$0xff]
    %v134 = vld [vmem:[#allocation7 + $0x30] sm:$0xff]
    %v135 = vld [vmem:[#allocation7 + $0x38] sm:$0xff]
    %v136 = vld [vmem:[#allocation7 + $0x40] sm:$0xff]
    %v137 = vld [vmem:[#allocation7 + $0x48] sm:$0xff]
    %v138 = vld [vmem:[#allocation7 + $0x50] sm:$0xff]
    %v139 = vld [vmem:[#allocation7 + $0x58] sm:$0xff]
    %v140 = vld [vmem:[#allocation7 + $0x60] sm:$0xff]
    %v141 = vld [vmem:[#allocation7 + $0x68] sm:$0xff]
    %v142 = vld [vmem:[#allocation7 + $0x70] sm:$0xff]
    %v143 = vld [vmem:[#allocation7 + $0x78] sm:$0xff]
    %v144 = vld [vmem:[#allocation7 + $0x80] sm:$0xff]
    %v145 = vld [vmem:[#allocation7 + $0x88] sm:$0xff]
    %v146 = vld [vmem:[#allocation7 + $0x90] sm:$0xff]
    %v147 = vld [vmem:[#allocation7 + $0x98] sm:$0xff]
    %v148 = vld [vmem:[#allocation7 + $0xa0] sm:$0xff]
    %v149 = vld [vmem:[#allocation7 + $0xa8] sm:$0xff]
    %v150 = vld [vmem:[#allocation7 + $0xb0] sm:$0xff]
    %v151 = vld [vmem:[#allocation7 + $0xb8] sm:$0xff]
    %v152 = vld [vmem:[#allocation7 + $0xc0] sm:$0xff]
    %v153 = vld [vmem:[#allocation7 + $0xc8] sm:$0xff]
    %v154 = vld [vmem:[#allocation7 + $0xd0] sm:$0xff]
    %v155 = vld [vmem:[#allocation7 + $0xd8] sm:$0xff]
    %v156 = vld [vmem:[#allocation7 + $0xe0] sm:$0xff]
    %v157 = vld [vmem:[#allocation7 + $0xe8] sm:$0xff]
    %v158 = vld [vmem:[#allocation7 + $0xf0] sm:$0xff]
    %v159 = vld [vmem:[#allocation7 + $0xf8] sm:$0xff]
    %v160 = vld [vmem:[%s3] sm:$0xf]
    %v162 = vlaneseq
    %v163 = vshrl.u32 %v162, 7
    %v164 = vsub.s32 0, %v163
    %v165 = vrot.slane %v160, %v164
    %v166 = vlaneseq
    %v167 = vshrl.u32 %v166, 7
    %v168 = vsub.s32 1, %v167
    %v169 = vrot.slane %v160, %v168
    %v170 = vlaneseq
    %v171 = vshrl.u32 %v170, 7
    %v172 = vsub.s32 2, %v171
    %v173 = vrot.slane %v160, %v172
    %v174 = vlaneseq
    %v175 = vshrl.u32 %v174, 7
    %v176 = vsub.s32 3, %v175
    %v177 = vrot.slane %v160, %v176
    %v214 = vunpack.c.l.b16 %v128
    %v215 = vunpack.c.h.b16 %v128
    %v216 = vunpack.c.l.b16 %v129
    %v217 = vunpack.c.h.b16 %v129
    %v218 = vunpack.c.l.b16 %v130
    %v219 = vunpack.c.h.b16 %v130
    %v220 = vunpack.c.l.b16 %v131
    %v221 = vunpack.c.h.b16 %v131
    %v222 = vunpack.c.l.b16 %v132
    %v223 = vunpack.c.h.b16 %v132
    %v224 = vunpack.c.l.b16 %v133
    %v225 = vunpack.c.h.b16 %v133
    %v226 = vunpack.c.l.b16 %v134
    %v227 = vunpack.c.h.b16 %v134
    %v228 = vunpack.c.l.b16 %v135
    %v229 = vunpack.c.h.b16 %v135
    %v230 = vunpack.c.l.b16 %v136
    %v231 = vunpack.c.h.b16 %v136
    %v232 = vunpack.c.l.b16 %v137
    %v233 = vunpack.c.h.b16 %v137
    %v234 = vunpack.c.l.b16 %v138
    %v235 = vunpack.c.h.b16 %v138
    %v236 = vunpack.c.l.b16 %v139
    %v237 = vunpack.c.h.b16 %v139
    %v238 = vunpack.c.l.b16 %v140
    %v239 = vunpack.c.h.b16 %v140
    %v240 = vunpack.c.l.b16 %v141
    %v241 = vunpack.c.h.b16 %v141
    %v242 = vunpack.c.l.b16 %v142
    %v243 = vunpack.c.h.b16 %v142
    %v244 = vunpack.c.l.b16 %v143
    %v245 = vunpack.c.h.b16 %v143
    %v246 = vunpack.c.l.b16 %v144
    %v247 = vunpack.c.h.b16 %v144
    %v248 = vunpack.c.l.b16 %v145
    %v249 = vunpack.c.h.b16 %v145
    %v250 = vunpack.c.l.b16 %v146
    %v251 = vunpack.c.h.b16 %v146
    %v252 = vunpack.c.l.b16 %v147
    %v253 = vunpack.c.h.b16 %v147
    %v254 = vunpack.c.l.b16 %v148
    %v255 = vunpack.c.h.b16 %v148
    %v256 = vunpack.c.l.b16 %v149
    %v257 = vunpack.c.h.b16 %v149
    %v258 = vunpack.c.l.b16 %v150
    %v259 = vunpack.c.h.b16 %v150
    %v260 = vunpack.c.l.b16 %v151
    %v261 = vunpack.c.h.b16 %v151
    %v262 = vunpack.c.l.b16 %v152
    %v263 = vunpack.c.h.b16 %v152
    %v264 = vunpack.c.l.b16 %v153
    %v265 = vunpack.c.h.b16 %v153
    %v266 = vunpack.c.l.b16 %v154
    %v267 = vunpack.c.h.b16 %v154
    %v268 = vunpack.c.l.b16 %v155
    %v269 = vunpack.c.h.b16 %v155
    %v270 = vunpack.c.l.b16 %v156
    %v271 = vunpack.c.h.b16 %v156
    %v272 = vunpack.c.l.b16 %v157
    %v273 = vunpack.c.h.b16 %v157
    %v274 = vunpack.c.l.b16 %v158
    %v275 = vunpack.c.h.b16 %v158
    %v276 = vunpack.c.l.b16 %v159
    %v277 = vunpack.c.h.b16 %v159
    %v278 = vpack.c.b16 %v218, %v214
    %v279 = vpack.c.b16 %v219, %v215
    %v280 = vpack.c.b16 %v220, %v216
    %v281 = vpack.c.b16 %v221, %v217
    %v282 = vpack.c.b16 %v226, %v222
    %v283 = vpack.c.b16 %v227, %v223
    %v284 = vpack.c.b16 %v228, %v224
    %v285 = vpack.c.b16 %v229, %v225
    %v286 = vpack.c.b16 %v234, %v230
    %v287 = vpack.c.b16 %v235, %v231
    %v288 = vpack.c.b16 %v236, %v232
    %v289 = vpack.c.b16 %v237, %v233
    %v290 = vpack.c.b16 %v242, %v238
    %v291 = vpack.c.b16 %v243, %v239
    %v292 = vpack.c.b16 %v244, %v240
    %v293 = vpack.c.b16 %v245, %v241
    %v294 = vpack.c.b16 %v250, %v246
    %v295 = vpack.c.b16 %v251, %v247
    %v296 = vpack.c.b16 %v252, %v248
    %v297 = vpack.c.b16 %v253, %v249
    %v298 = vpack.c.b16 %v258, %v254
    %v299 = vpack.c.b16 %v259, %v255
    %v300 = vpack.c.b16 %v260, %v256
    %v301 = vpack.c.b16 %v261, %v257
    %v302 = vpack.c.b16 %v266, %v262
    %v303 = vpack.c.b16 %v267, %v263
    %v304 = vpack.c.b16 %v268, %v264
    %v305 = vpack.c.b16 %v269, %v265
    %v306 = vpack.c.b16 %v274, %v270
    %v307 = vpack.c.b16 %v275, %v271
    %v308 = vpack.c.b16 %v276, %v272
    %v309 = vpack.c.b16 %v277, %v273
    %342 = vmatprep.subr.bf16.mxu0 %v279
    %343 = vmatpush1.bf16.msra.mxu0 %v278
    %344 = vmatprep.subr.bf16.mxu0 %v283
    %345 = vmatpush1.bf16.msra.mxu0 %v282
    %346 = vmatprep.subr.bf16.mxu0 %v287
    %347 = vmatpush1.bf16.msra.mxu0 %v286
    %348 = vmatprep.subr.bf16.mxu0 %v291
    %349 = vmatpush1.bf16.msra.mxu0 %v290
    %350 = vmatprep.subr.bf16.mxu0 %v295
    %351 = vmatpush1.bf16.msra.mxu0 %v294
    %352 = vmatprep.subr.bf16.mxu0 %v299
    %353 = vmatpush1.bf16.msra.mxu0 %v298
    %354 = vmatprep.subr.bf16.mxu0 %v303
    %355 = vmatpush1.bf16.msra.mxu0 %v302
    %356 = vmatprep.subr.bf16.mxu0 %v307
    %357 = vmatpush1.bf16.msra.mxu0 %v306
    %358 = vmatprep.subr.bf16.mxu0 0
    %359 = vmatpush1.bf16.msra.mxu0 0
    %360 = vmatprep.subr.bf16.mxu0 0
    %361 = vmatpush1.bf16.msra.mxu0 0
    %362 = vmatprep.subr.bf16.mxu0 0
    %363 = vmatpush1.bf16.msra.mxu0 0
    %364 = vmatprep.subr.bf16.mxu0 0
    %365 = vmatpush1.bf16.msra.mxu0 0
    %366 = vmatprep.subr.bf16.mxu0 0
    %367 = vmatpush1.bf16.msra.mxu0 0
    %368 = vmatprep.subr.bf16.mxu0 0
    %369 = vmatpush1.bf16.msra.mxu0 0
    %370 = vmatprep.subr.bf16.mxu0 0
    %371 = vmatpush1.bf16.msra.mxu0 0
    %372 = vmatprep.subr.bf16.mxu0 0
    %373 = vmatpush1.bf16.msra.mxu0 0
    %374 = vmatprep.mubr.bf16.mxu0 0
    %375 = vmatmul.mubr.bf16.gmra.mrb[0].mxu0 %v124
    %v376 = vpop.f32.mrb[0].mxu0
    %v377 = vadd.f32 %v165, %v376
    %v378 = vpop.f32.mrb[0].mxu0
    %v379 = vadd.f32 %v169, %v378
    %v380 = vpop.f32.mrb[0].mxu0
    %v381 = vadd.f32 %v165, %v380
    %v382 = vpop.f32.mrb[0].mxu0
    %v383 = vadd.f32 %v169, %v382
    %384 = vmatprep.mubr.bf16.mxu0 0
    %385 = vmatmul.mubr.bf16.gmra.mrb[0].mxu0 %v125
    %v386 = vpop.f32.mrb[0].mxu0
    %v387 = vadd.f32 %v165, %v386
    %v388 = vpop.f32.mrb[0].mxu0
    %v389 = vadd.f32 %v169, %v388
    %v390 = vpop.f32.mrb[0].mxu0
    %v391 = vadd.f32 %v165, %v390
    %v392 = vpop.f32.mrb[0].mxu0
    %v393 = vadd.f32 %v169, %v392
    %394 = vmatprep.mubr.bf16.mxu0 0
    %395 = vmatmul.mubr.bf16.gmra.mrb[0].mxu0 %v126
    %v396 = vpop.f32.mrb[0].mxu0
    %v397 = vadd.f32 %v165, %v396
    %v398 = vpop.f32.mrb[0].mxu0
    %v399 = vadd.f32 %v169, %v398
    %v400 = vpop.f32.mrb[0].mxu0
    %v401 = vadd.f32 %v165, %v400
    %v402 = vpop.f32.mrb[0].mxu0
    %v403 = vadd.f32 %v169, %v402
    %404 = vmatprep.mubr.bf16.mxu0 0
    %405 = vmatmul.mubr.bf16.gmra.mrb[0].mxu0 %v127
    %v406 = vpop.f32.mrb[0].mxu0
    %v407 = vadd.f32 %v165, %v406
    %v408 = vpop.f32.mrb[0].mxu0
    %v409 = vadd.f32 %v169, %v408
    %v410 = vpop.f32.mrb[0].mxu0
    %v411 = vadd.f32 %v165, %v410
    %v412 = vpop.f32.mrb[0].mxu0
    %v413 = vadd.f32 %v169, %v412
    %414 = vdwg.mxu0
    %415 = vmatprep.subr.bf16.mxu0 %v281
    %416 = vmatpush1.bf16.msra.mxu0 %v280
    %417 = vmatprep.subr.bf16.mxu0 %v285
    %418 = vmatpush1.bf16.msra.mxu0 %v284
    %419 = vmatprep.subr.bf16.mxu0 %v289
    %420 = vmatpush1.bf16.msra.mxu0 %v288
    %421 = vmatprep.subr.bf16.mxu0 %v293
    %422 = vmatpush1.bf16.msra.mxu0 %v292
    %423 = vmatprep.subr.bf16.mxu0 %v297
    %424 = vmatpush1.bf16.msra.mxu0 %v296
    %425 = vmatprep.subr.bf16.mxu0 %v301
    %426 = vmatpush1.bf16.msra.mxu0 %v300
    %427 = vmatprep.subr.bf16.mxu0 %v305
    %428 = vmatpush1.bf16.msra.mxu0 %v304
    %429 = vmatprep.subr.bf16.mxu0 %v309
    %430 = vmatpush1.bf16.msra.mxu0 %v308
    %431 = vmatprep.subr.bf16.mxu0 0
    %432 = vmatpush1.bf16.msra.mxu0 0
    %433 = vmatprep.subr.bf16.mxu0 0
    %434 = vmatpush1.bf16.msra.mxu0 0
    %435 = vmatprep.subr.bf16.mxu0 0
    %436 = vmatpush1.bf16.msra.mxu0 0
    %437 = vmatprep.subr.bf16.mxu0 0
    %438 = vmatpush1.bf16.msra.mxu0 0
    %439 = vmatprep.subr.bf16.mxu0 0
    %440 = vmatpush1.bf16.msra.mxu0 0
    %441 = vmatprep.subr.bf16.mxu0 0
    %442 = vmatpush1.bf16.msra.mxu0 0
    %443 = vmatprep.subr.bf16.mxu0 0
    %444 = vmatpush1.bf16.msra.mxu0 0
    %445 = vmatprep.subr.bf16.mxu0 0
    %446 = vmatpush1.bf16.msra.mxu0 0
    %447 = vmatprep.mubr.bf16.mxu0 0
    %448 = vmatmul.mubr.bf16.gmra.mrb[0].mxu0 %v124
    %v449 = vpop.f32.mrb[0].mxu0
    %v450 = vadd.f32 %v173, %v449
    %v451 = vpop.f32.mrb[0].mxu0
    %v452 = vadd.f32 %v177, %v451
    %v453 = vpop.f32.mrb[0].mxu0
    %v454 = vadd.f32 %v173, %v453
    %v455 = vpop.f32.mrb[0].mxu0
    %v456 = vadd.f32 %v177, %v455
    %457 = vmatprep.mubr.bf16.mxu0 0
    %458 = vmatmul.mubr.bf16.gmra.mrb[0].mxu0 %v125
    %v459 = vpop.f32.mrb[0].mxu0
    %v460 = vadd.f32 %v173, %v459
    %v461 = vpop.f32.mrb[0].mxu0
    %v462 = vadd.f32 %v177, %v461
    %v463 = vpop.f32.mrb[0].mxu0
    %v464 = vadd.f32 %v173, %v463
    %v465 = vpop.f32.mrb[0].mxu0
    %v466 = vadd.f32 %v177, %v465
    %467 = vmatprep.mubr.bf16.mxu0 0
    %468 = vmatmul.mubr.bf16.gmra.mrb[0].mxu0 %v126
    %v469 = vpop.f32.mrb[0].mxu0
    %v470 = vadd.f32 %v173, %v469
    %v471 = vpop.f32.mrb[0].mxu0
    %v472 = vadd.f32 %v177, %v471
    %v473 = vpop.f32.mrb[0].mxu0
    %v474 = vadd.f32 %v173, %v473
    %v475 = vpop.f32.mrb[0].mxu0
    %v476 = vadd.f32 %v177, %v475
    %477 = vmatprep.mubr.bf16.mxu0 0
    %478 = vmatmul.mubr.bf16.gmra.mrb[0].mxu0 %v127
    %v479 = vpop.f32.mrb[0].mxu0
    %v480 = vadd.f32 %v173, %v479
    %v481 = vpop.f32.mrb[0].mxu0
    %v482 = vadd.f32 %v177, %v481
    %v483 = vpop.f32.mrb[0].mxu0
    %v484 = vadd.f32 %v173, %v483
    %v485 = vpop.f32.mrb[0].mxu0
    %v486 = vadd.f32 %v177, %v485
    %487 = vdwg.mxu0
    %488 = vst [vmem:[#allocation3] sm:$0xff] %v377
    %489 = vst [vmem:[#allocation3 + $0x8] sm:$0xff] %v379
    %490 = vst [vmem:[#allocation3 + $0x10] sm:$0xff] %v450
    %491 = vst [vmem:[#allocation3 + $0x18] sm:$0xff] %v452
    %492 = vst [vmem:[#allocation3 + $0x20] sm:$0xff] %v381
    %493 = vst [vmem:[#allocation3 + $0x28] sm:$0xff] %v383
    %494 = vst [vmem:[#allocation3 + $0x30] sm:$0xff] %v454
    %495 = vst [vmem:[#allocation3 + $0x38] sm:$0xff] %v456
    %496 = vst [vmem:[#allocation3 + $0x40] sm:$0xff] %v387
    %497 = vst [vmem:[#allocation3 + $0x48] sm:$0xff] %v389
    %498 = vst [vmem:[#allocation3 + $0x50] sm:$0xff] %v460
    %499 = vst [vmem:[#allocation3 + $0x58] sm:$0xff] %v462
    %500 = vst [vmem:[#allocation3 + $0x60] sm:$0xff] %v391
    %501 = vst [vmem:[#allocation3 + $0x68] sm:$0xff] %v393
    %502 = vst [vmem:[#allocation3 + $0x70] sm:$0xff] %v464
    %503 = vst [vmem:[#allocation3 + $0x78] sm:$0xff] %v466
    %504 = vst [vmem:[#allocation3 + $0x80] sm:$0xff] %v397
    %505 = vst [vmem:[#allocation3 + $0x88] sm:$0xff] %v399
    %506 = vst [vmem:[#allocation3 + $0x90] sm:$0xff] %v470
    %507 = vst [vmem:[#allocation3 + $0x98] sm:$0xff] %v472
    %508 = vst [vmem:[#allocation3 + $0xa0] sm:$0xff] %v401
    %509 = vst [vmem:[#allocation3 + $0xa8] sm:$0xff] %v403
    %510 = vst [vmem:[#allocation3 + $0xb0] sm:$0xff] %v474
    %511 = vst [vmem:[#allocation3 + $0xb8] sm:$0xff] %v476
    %512 = vst [vmem:[#allocation3 + $0xc0] sm:$0xff] %v407
    %513 = vst [vmem:[#allocation3 + $0xc8] sm:$0xff] %v409
    %514 = vst [vmem:[#allocation3 + $0xd0] sm:$0xff] %v480
    %515 = vst [vmem:[#allocation3 + $0xd8] sm:$0xff] %v482
    %516 = vst [vmem:[#allocation3 + $0xe0] sm:$0xff] %v411
    %517 = vst [vmem:[#allocation3 + $0xe8] sm:$0xff] %v413
    %518 = vst [vmem:[#allocation3 + $0xf0] sm:$0xff] %v484
    %519 = vst [vmem:[#allocation3 + $0xf8] sm:$0xff] %v486
    %s520 = smul.u32 0, 4
    %s521 = smul.addr %s520, 8
    %s522 = scalar_lea.vmem [#allocation3], %s521
    %v523 = vld [vmem:[%s522] sm:$0xff]
    %v524 = vld [vmem:[%s522 + $0x8] sm:$0xff]
    %v525 = vld [vmem:[%s522 + $0x10] sm:$0xff]
    %v526 = vld [vmem:[%s522 + $0x18] sm:$0xff]
    %v527 = vld [vmem:[#allocation9] sm:$0xff]
    %v528 = vld [vmem:[#allocation9 + $0x8] sm:$0xff]
    %v529 = vld [vmem:[#allocation9 + $0x10] sm:$0xff]
    %v530 = vld [vmem:[#allocation9 + $0x18] sm:$0xff]
    %v531 = vld [vmem:[#allocation9 + $0x20] sm:$0xff]
    %v532 = vld [vmem:[#allocation9 + $0x28] sm:$0xff]
    %v533 = vld [vmem:[#allocation9 + $0x30] sm:$0xff]
    %v534 = vld [vmem:[#allocation9 + $0x38] sm:$0xff]
    %v535 = vld [vmem:[#allocation9 + $0x40] sm:$0xff]
    %v536 = vld [vmem:[#allocation9 + $0x48] sm:$0xff]
    %v537 = vld [vmem:[#allocation9 + $0x50] sm:$0xff]
    %v538 = vld [vmem:[#allocation9 + $0x58] sm:$0xff]
    %v539 = vld [vmem:[#allocation9 + $0x60] sm:$0xff]
    %v540 = vld [vmem:[#allocation9 + $0x68] sm:$0xff]
    %v541 = vld [vmem:[#allocation9 + $0x70] sm:$0xff]
    %v542 = vld [vmem:[#allocation9 + $0x78] sm:$0xff]
    %v543 = vld [vmem:[#allocation9 + $0x80] sm:$0xff]
    %v544 = vld [vmem:[#allocation9 + $0x88] sm:$0xff]
    %v545 = vld [vmem:[#allocation9 + $0x90] sm:$0xff]
    %v546 = vld [vmem:[#allocation9 + $0x98] sm:$0xff]
    %v547 = vld [vmem:[#allocation9 + $0xa0] sm:$0xff]
    %v548 = vld [vmem:[#allocation9 + $0xa8] sm:$0xff]
    %v549 = vld [vmem:[#allocation9 + $0xb0] sm:$0xff]
    %v550 = vld [vmem:[#allocation9 + $0xb8] sm:$0xff]
    %v551 = vld [vmem:[#allocation9 + $0xc0] sm:$0xff]
    %v552 = vld [vmem:[#allocation9 + $0xc8] sm:$0xff]
    %v553 = vld [vmem:[#allocation9 + $0xd0] sm:$0xff]
    %v554 = vld [vmem:[#allocation9 + $0xd8] sm:$0xff]
    %v555 = vld [vmem:[#allocation9 + $0xe0] sm:$0xff]
    %v556 = vld [vmem:[#allocation9 + $0xe8] sm:$0xff]
    %v557 = vld [vmem:[#allocation9 + $0xf0] sm:$0xff]
    %v558 = vld [vmem:[#allocation9 + $0xf8] sm:$0xff]
    %v591 = vunpack.c.l.b16 %v527
    %v592 = vunpack.c.h.b16 %v527
    %v593 = vunpack.c.l.b16 %v528
    %v594 = vunpack.c.h.b16 %v528
    %v595 = vunpack.c.l.b16 %v529
    %v596 = vunpack.c.h.b16 %v529
    %v597 = vunpack.c.l.b16 %v530
    %v598 = vunpack.c.h.b16 %v530
    %v599 = vunpack.c.l.b16 %v531
    %v600 = vunpack.c.h.b16 %v531
    %v601 = vunpack.c.l.b16 %v532
    %v602 = vunpack.c.h.b16 %v532
    %v603 = vunpack.c.l.b16 %v533
    %v604 = vunpack.c.h.b16 %v533
    %v605 = vunpack.c.l.b16 %v534
    %v606 = vunpack.c.h.b16 %v534
    %v607 = vunpack.c.l.b16 %v535
    %v608 = vunpack.c.h.b16 %v535
    %v609 = vunpack.c.l.b16 %v536
    %v610 = vunpack.c.h.b16 %v536
    %v611 = vunpack.c.l.b16 %v537
    %v612 = vunpack.c.h.b16 %v537
    %v613 = vunpack.c.l.b16 %v538
    %v614 = vunpack.c.h.b16 %v538
    %v615 = vunpack.c.l.b16 %v539
    %v616 = vunpack.c.h.b16 %v539
    %v617 = vunpack.c.l.b16 %v540
    %v618 = vunpack.c.h.b16 %v540
    %v619 = vunpack.c.l.b16 %v541
    %v620 = vunpack.c.h.b16 %v541
    %v621 = vunpack.c.l.b16 %v542
    %v622 = vunpack.c.h.b16 %v542
    %v623 = vunpack.c.l.b16 %v543
    %v624 = vunpack.c.h.b16 %v543
    %v625 = vunpack.c.l.b16 %v544
    %v626 = vunpack.c.h.b16 %v544
    %v627 = vunpack.c.l.b16 %v545
    %v628 = vunpack.c.h.b16 %v545
    %v629 = vunpack.c.l.b16 %v546
    %v630 = vunpack.c.h.b16 %v546
    %v631 = vunpack.c.l.b16 %v547
    %v632 = vunpack.c.h.b16 %v547
    %v633 = vunpack.c.l.b16 %v548
    %v634 = vunpack.c.h.b16 %v548
    %v635 = vunpack.c.l.b16 %v549
    %v636 = vunpack.c.h.b16 %v549
    %v637 = vunpack.c.l.b16 %v550
    %v638 = vunpack.c.h.b16 %v550
    %v639 = vunpack.c.l.b16 %v551
    %v640 = vunpack.c.h.b16 %v551
    %v641 = vunpack.c.l.b16 %v552
    %v642 = vunpack.c.h.b16 %v552
    %v643 = vunpack.c.l.b16 %v553
    %v644 = vunpack.c.h.b16 %v553
    %v645 = vunpack.c.l.b16 %v554
    %v646 = vunpack.c.h.b16 %v554
    %v647 = vunpack.c.l.b16 %v555
    %v648 = vunpack.c.h.b16 %v555
    %v649 = vunpack.c.l.b16 %v556
    %v650 = vunpack.c.h.b16 %v556
    %v651 = vunpack.c.l.b16 %v557
    %v652 = vunpack.c.h.b16 %v557
    %v653 = vunpack.c.l.b16 %v558
    %v654 = vunpack.c.h.b16 %v558
    %v655 = vpack.c.b16 %v595, %v591
    %v656 = vpack.c.b16 %v596, %v592
    %v657 = vpack.c.b16 %v597, %v593
    %v658 = vpack.c.b16 %v598, %v594
    %v659 = vpack.c.b16 %v603, %v599
    %v660 = vpack.c.b16 %v604, %v600
    %v661 = vpack.c.b16 %v605, %v601
    %v662 = vpack.c.b16 %v606, %v602
    %v663 = vpack.c.b16 %v611, %v607
    %v664 = vpack.c.b16 %v612, %v608
    %v665 = vpack.c.b16 %v613, %v609
    %v666 = vpack.c.b16 %v614, %v610
    %v667 = vpack.c.b16 %v619, %v615
    %v668 = vpack.c.b16 %v620, %v616
    %v669 = vpack.c.b16 %v621, %v617
    %v670 = vpack.c.b16 %v622, %v618
    %v671 = vpack.c.b16 %v627, %v623
    %v672 = vpack.c.b16 %v628, %v624
    %v673 = vpack.c.b16 %v629, %v625
    %v674 = vpack.c.b16 %v630, %v626
    %v675 = vpack.c.b16 %v635, %v631
    %v676 = vpack.c.b16 %v636, %v632
    %v677 = vpack.c.b16 %v637, %v633
    %v678 = vpack.c.b16 %v638, %v634
    %v679 = vpack.c.b16 %v643, %v639
    %v680 = vpack.c.b16 %v644, %v640
    %v681 = vpack.c.b16 %v645, %v641
    %v682 = vpack.c.b16 %v646, %v642
    %v683 = vpack.c.b16 %v651, %v647
    %v684 = vpack.c.b16 %v652, %v648
    %v685 = vpack.c.b16 %v653, %v649
    %v686 = vpack.c.b16 %v654, %v650
    %719 = vmatprep.subr.bf16.mxu0 %v656
    %720 = vmatpush1.bf16.msra.mxu0 %v655
    %721 = vmatprep.subr.bf16.mxu0 %v660
    %722 = vmatpush1.bf16.msra.mxu0 %v659
    %723 = vmatprep.subr.bf16.mxu0 %v664
    %724 = vmatpush1.bf16.msra.mxu0 %v663
    %725 = vmatprep.subr.bf16.mxu0 %v668
    %726 = vmatpush1.bf16.msra.mxu0 %v667
    %727 = vmatprep.subr.bf16.mxu0 %v672
    %728 = vmatpush1.bf16.msra.mxu0 %v671
    %729 = vmatprep.subr.bf16.mxu0 %v676
    %730 = vmatpush1.bf16.msra.mxu0 %v675
    %731 = vmatprep.subr.bf16.mxu0 %v680
    %732 = vmatpush1.bf16.msra.mxu0 %v679
    %733 = vmatprep.subr.bf16.mxu0 %v684
    %734 = vmatpush1.bf16.msra.mxu0 %v683
    %735 = vmatprep.subr.bf16.mxu0 0
    %736 = vmatpush1.bf16.msra.mxu0 0
    %737 = vmatprep.subr.bf16.mxu0 0
    %738 = vmatpush1.bf16.msra.mxu0 0
    %739 = vmatprep.subr.bf16.mxu0 0
    %740 = vmatpush1.bf16.msra.mxu0 0
    %741 = vmatprep.subr.bf16.mxu0 0
    %742 = vmatpush1.bf16.msra.mxu0 0
    %743 = vmatprep.subr.bf16.mxu0 0
    %744 = vmatpush1.bf16.msra.mxu0 0
    %745 = vmatprep.subr.bf16.mxu0 0
    %746 = vmatpush1.bf16.msra.mxu0 0
    %747 = vmatprep.subr.bf16.mxu0 0
    %748 = vmatpush1.bf16.msra.mxu0 0
    %749 = vmatprep.subr.bf16.mxu0 0
    %750 = vmatpush1.bf16.msra.mxu0 0
    %751 = vmatprep.mubr.bf16.mxu0 0
    %752 = vmatmul.mubr.bf16.gmra.mrb[0].mxu0 0
    %v753 = vpop.f32.mrb[0].mxu0
    %v754 = vadd.f32 0.0, %v753
    %v755 = vpop.f32.mrb[0].mxu0
    %v756 = vadd.f32 0.0, %v755
    %v757 = vpop.f32.mrb[0].mxu0
    %v758 = vpop.f32.mrb[0].mxu0
    %759 = vdwg.mxu0
    %760 = vmatprep.subr.bf16.mxu0 %v658
    %761 = vmatpush1.bf16.msra.mxu0 %v657
    %762 = vmatprep.subr.bf16.mxu0 %v662
    %763 = vmatpush1.bf16.msra.mxu0 %v661
    %764 = vmatprep.subr.bf16.mxu0 %v666
    %765 = vmatpush1.bf16.msra.mxu0 %v665
    %766 = vmatprep.subr.bf16.mxu0 %v670
    %767 = vmatpush1.bf16.msra.mxu0 %v669
    %768 = vmatprep.subr.bf16.mxu0 %v674
    %769 = vmatpush1.bf16.msra.mxu0 %v673
    %770 = vmatprep.subr.bf16.mxu0 %v678
    %771 = vmatpush1.bf16.msra.mxu0 %v677
    %772 = vmatprep.subr.bf16.mxu0 %v682
    %773 = vmatpush1.bf16.msra.mxu0 %v681
    %774 = vmatprep.subr.bf16.mxu0 %v686
    %775 = vmatpush1.bf16.msra.mxu0 %v685
    %776 = vmatprep.subr.bf16.mxu0 0
    %777 = vmatpush1.bf16.msra.mxu0 0
    %778 = vmatprep.subr.bf16.mxu0 0
    %779 = vmatpush1.bf16.msra.mxu0 0
    %780 = vmatprep.subr.bf16.mxu0 0
    %781 = vmatpush1.bf16.msra.mxu0 0
    %782 = vmatprep.subr.bf16.mxu0 0
    %783 = vmatpush1.bf16.msra.mxu0 0
    %784 = vmatprep.subr.bf16.mxu0 0
    %785 = vmatpush1.bf16.msra.mxu0 0
    %786 = vmatprep.subr.bf16.mxu0 0
    %787 = vmatpush1.bf16.msra.mxu0 0
    %788 = vmatprep.subr.bf16.mxu0 0
    %789 = vmatpush1.bf16.msra.mxu0 0
    %790 = vmatprep.subr.bf16.mxu0 0
    %791 = vmatpush1.bf16.msra.mxu0 0
    %792 = vmatprep.mubr.bf16.mxu0 0
    %793 = vmatmul.mubr.bf16.gmra.mrb[0].mxu0 0
    %v794 = vpop.f32.mrb[0].mxu0
    %v795 = vadd.f32 0.0, %v794
    %v796 = vpop.f32.mrb[0].mxu0
    %v797 = vadd.f32 0.0, %v796
    %v798 = vpop.f32.mrb[0].mxu0
    %v799 = vpop.f32.mrb[0].mxu0
    %800 = vdwg.mxu0
    %v801 = vadd.f32 %v523, %v754
    %v802 = vadd.f32 %v524, %v756
    %v803 = vadd.f32 %v525, %v795
    %v804 = vadd.f32 %v526, %v797
    %v805 = vxor.u32 %v801, 2147483648
    %v806 = vxor.u32 %v802, 2147483648
    %v807 = vxor.u32 %v803, 2147483648
    %v808 = vmul.f32 %v805, 1.442695
    %v809 = vpow.pop %v808
    %v810 = vmul.f32 %v806, 1.442695
    %v811 = vpow.pop %v810
    %v812 = vmul.f32 %v807, 1.442695
    %v813 = vpow.pop %v812
    %v814 = vadd.f32 %v809, 1.0
    %v815 = vadd.f32 %v811, 1.0
    %v816 = vadd.f32 %v813, 1.0
    %v817 = vrcp.pop %v814
    %v818 = vmul.f32 1.0, %v817
    %v819 = vrcp.pop %v815
    %v820 = vmul.f32 1.0, %v819
    %v821 = vrcp.pop %v816
    %v822 = vmul.f32 1.0, %v821
    %v823 = vtanh.pop %v804
    %v824 = vmul.f32 %v820, 0.0
    %v825 = vmul.f32 %v818, %v823
    %v826 = vadd.f32 %v824, %v825
    %v827 = vtanh.pop %v826
    %v828 = vmul.f32 %v822, %v827
    %829 = vst [vmem:[#allocation2] sm:$0xff] %v828
    %s830 = smul.u32 1, 4
    %s831 = smul.addr %s830, 8
    %s832 = scalar_lea.vmem [#allocation3], %s831
    %v833 = vld [vmem:[%s832] sm:$0xff]
    %v834 = vld [vmem:[%s832 + $0x8] sm:$0xff]
    %v835 = vld [vmem:[%s832 + $0x10] sm:$0xff]
    %v836 = vld [vmem:[%s832 + $0x18] sm:$0xff]
    %v837 = vpack.c.bf16 %v828, %v828
    %v838 = vld [vmem:[#allocation9] sm:$0xff]
    %v839 = vld [vmem:[#allocation9 + $0x8] sm:$0xff]
    %v840 = vld [vmem:[#allocation9 + $0x10] sm:$0xff]
    %v841 = vld [vmem:[#allocation9 + $0x18] sm:$0xff]
    %v842 = vld [vmem:[#allocation9 + $0x20] sm:$0xff]
    %v843 = vld [vmem:[#allocation9 + $0x28] sm:$0xff]
    %v844 = vld [vmem:[#allocation9 + $0x30] sm:$0xff]
    %v845 = vld [vmem:[#allocation9 + $0x38] sm:$0xff]
    %v846 = vld [vmem:[#allocation9 + $0x40] sm:$0xff]
    %v847 = vld [vmem:[#allocation9 + $0x48] sm:$0xff]
    %v848 = vld [vmem:[#allocation9 + $0x50] sm:$0xff]
    %v849 = vld [vmem:[#allocation9 + $0x58] sm:$0xff]
    %v850 = vld [vmem:[#allocation9 + $0x60] sm:$0xff]
    %v851 = vld [vmem:[#allocation9 + $0x68] sm:$0xff]
    %v852 = vld [vmem:[#allocation9 + $0x70] sm:$0xff]
    %v853 = vld [vmem:[#allocation9 + $0x78] sm:$0xff]
    %v854 = vld [vmem:[#allocation9 + $0x80] sm:$0xff]
    %v855 = vld [vmem:[#allocation9 + $0x88] sm:$0xff]
    %v856 = vld [vmem:[#allocation9 + $0x90] sm:$0xff]
    %v857 = vld [vmem:[#allocation9 + $0x98] sm:$0xff]
    %v858 = vld [vmem:[#allocation9 + $0xa0] sm:$0xff]
    %v859 = vld [vmem:[#allocation9 + $0xa8] sm:$0xff]
    %v860 = vld [vmem:[#allocation9 + $0xb0] sm:$0xff]
    %v861 = vld [vmem:[#allocation9 + $0xb8] sm:$0xff]
    %v862 = vld [vmem:[#allocation9 + $0xc0] sm:$0xff]
    %v863 = vld [vmem:[#allocation9 + $0xc8] sm:$0xff]
    %v864 = vld [vmem:[#allocation9 + $0xd0] sm:$0xff]
    %v865 = vld [vmem:[#allocation9 + $0xd8] sm:$0xff]
    %v866 = vld [vmem:[#allocation9 + $0xe0] sm:$0xff]
    %v867 = vld [vmem:[#allocation9 + $0xe8] sm:$0xff]
    %v868 = vld [vmem:[#allocation9 + $0xf0] sm:$0xff]
    %v869 = vld [vmem:[#allocation9 + $0xf8] sm:$0xff]
    %v902 = vunpack.c.l.b16 %v838
    %v903 = vunpack.c.h.b16 %v838
    %v904 = vunpack.c.l.b16 %v839
    %v905 = vunpack.c.h.b16 %v839
    %v906 = vunpack.c.l.b16 %v840
    %v907 = vunpack.c.h.b16 %v840
    %v908 = vunpack.c.l.b16 %v841
    %v909 = vunpack.c.h.b16 %v841
    %v910 = vunpack.c.l.b16 %v842
    %v911 = vunpack.c.h.b16 %v842
    %v912 = vunpack.c.l.b16 %v843
    %v913 = vunpack.c.h.b16 %v843
    %v914 = vunpack.c.l.b16 %v844
    %v915 = vunpack.c.h.b16 %v844
    %v916 = vunpack.c.l.b16 %v845
    %v917 = vunpack.c.h.b16 %v845
    %v918 = vunpack.c.l.b16 %v846
    %v919 = vunpack.c.h.b16 %v846
    %v920 = vunpack.c.l.b16 %v847
    %v921 = vunpack.c.h.b16 %v847
    %v922 = vunpack.c.l.b16 %v848
    %v923 = vunpack.c.h.b16 %v848
    %v924 = vunpack.c.l.b16 %v849
    %v925 = vunpack.c.h.b16 %v849
    %v926 = vunpack.c.l.b16 %v850
    %v927 = vunpack.c.h.b16 %v850
    %v928 = vunpack.c.l.b16 %v851
    %v929 = vunpack.c.h.b16 %v851
    %v930 = vunpack.c.l.b16 %v852
    %v931 = vunpack.c.h.b16 %v852
    %v932 = vunpack.c.l.b16 %v853
    %v933 = vunpack.c.h.b16 %v853
    %v934 = vunpack.c.l.b16 %v854
    %v935 = vunpack.c.h.b16 %v854
    %v936 = vunpack.c.l.b16 %v855
    %v937 = vunpack.c.h.b16 %v855
    %v938 = vunpack.c.l.b16 %v856
    %v939 = vunpack.c.h.b16 %v856
    %v940 = vunpack.c.l.b16 %v857
    %v941 = vunpack.c.h.b16 %v857
    %v942 = vunpack.c.l.b16 %v858
    %v943 = vunpack.c.h.b16 %v858
    %v944 = vunpack.c.l.b16 %v859
    %v945 = vunpack.c.h.b16 %v859
    %v946 = vunpack.c.l.b16 %v860
    %v947 = vunpack.c.h.b16 %v860
    %v948 = vunpack.c.l.b16 %v861
    %v949 = vunpack.c.h.b16 %v861
    %v950 = vunpack.c.l.b16 %v862
    %v951 = vunpack.c.h.b16 %v862
    %v952 = vunpack.c.l.b16 %v863
    %v953 = vunpack.c.h.b16 %v863
    %v954 = vunpack.c.l.b16 %v864
    %v955 = vunpack.c.h.b16 %v864
    %v956 = vunpack.c.l.b16 %v865
    %v957 = vunpack.c.h.b16 %v865
    %v958 = vunpack.c.l.b16 %v866
    %v959 = vunpack.c.h.b16 %v866
    %v960 = vunpack.c.l.b16 %v867
    %v961 = vunpack.c.h.b16 %v867
    %v962 = vunpack.c.l.b16 %v868
    %v963 = vunpack.c.h.b16 %v868
    %v964 = vunpack.c.l.b16 %v869
    %v965 = vunpack.c.h.b16 %v869
    %v966 = vpack.c.b16 %v906, %v902
    %v967 = vpack.c.b16 %v907, %v903
    %v968 = vpack.c.b16 %v908, %v904
    %v969 = vpack.c.b16 %v909, %v905
    %v970 = vpack.c.b16 %v914, %v910
    %v971 = vpack.c.b16 %v915, %v911
    %v972 = vpack.c.b16 %v916, %v912
    %v973 = vpack.c.b16 %v917, %v913
    %v974 = vpack.c.b16 %v922, %v918
    %v975 = vpack.c.b16 %v923, %v919
    %v976 = vpack.c.b16 %v924, %v920
    %v977 = vpack.c.b16 %v925, %v921
    %v978 = vpack.c.b16 %v930, %v926
    %v979 = vpack.c.b16 %v931, %v927
    %v980 = vpack.c.b16 %v932, %v928
    %v981 = vpack.c.b16 %v933, %v929
    %v982 = vpack.c.b16 %v938, %v934
    %v983 = vpack.c.b16 %v939, %v935
    %v984 = vpack.c.b16 %v940, %v936
    %v985 = vpack.c.b16 %v941, %v937
    %v986 = vpack.c.b16 %v946, %v942
    %v987 = vpack.c.b16 %v947, %v943
    %v988 = vpack.c.b16 %v948, %v944
    %v989 = vpack.c.b16 %v949, %v945
    %v990 = vpack.c.b16 %v954, %v950
    %v991 = vpack.c.b16 %v955, %v951
    %v992 = vpack.c.b16 %v956, %v952
    %v993 = vpack.c.b16 %v957, %v953
    %v994 = vpack.c.b16 %v962, %v958
    %v995 = vpack.c.b16 %v963, %v959
    %v996 = vpack.c.b16 %v964, %v960
    %v997 = vpack.c.b16 %v965, %v961
    %1030 = vmatprep.subr.bf16.mxu0 %v967
    %1031 = vmatpush1.bf16.msra.mxu0 %v966
    %1032 = vmatprep.subr.bf16.mxu0 %v971
    %1033 = vmatpush1.bf16.msra.mxu0 %v970
    %1034 = vmatprep.subr.bf16.mxu0 %v975
    %1035 = vmatpush1.bf16.msra.mxu0 %v974
    %1036 = vmatprep.subr.bf16.mxu0 %v979
    %1037 = vmatpush1.bf16.msra.mxu0 %v978
    %1038 = vmatprep.subr.bf16.mxu0 %v983
    %1039 = vmatpush1.bf16.msra.mxu0 %v982
    %1040 = vmatprep.subr.bf16.mxu0 %v987
    %1041 = vmatpush1.bf16.msra.mxu0 %v986
    %1042 = vmatprep.subr.bf16.mxu0 %v991
    %1043 = vmatpush1.bf16.msra.mxu0 %v990
    %1044 = vmatprep.subr.bf16.mxu0 %v995
    %1045 = vmatpush1.bf16.msra.mxu0 %v994
    %1046 = vmatprep.subr.bf16.mxu0 0
    %1047 = vmatpush1.bf16.msra.mxu0 0
    %1048 = vmatprep.subr.bf16.mxu0 0
    %1049 = vmatpush1.bf16.msra.mxu0 0
    %1050 = vmatprep.subr.bf16.mxu0 0
    %1051 = vmatpush1.bf16.msra.mxu0 0
    %1052 = vmatprep.subr.bf16.mxu0 0
    %1053 = vmatpush1.bf16.msra.mxu0 0
    %1054 = vmatprep.subr.bf16.mxu0 0
    %1055 = vmatpush1.bf16.msra.mxu0 0
    %1056 = vmatprep.subr.bf16.mxu0 0
    %1057 = vmatpush1.bf16.msra.mxu0 0
    %1058 = vmatprep.subr.bf16.mxu0 0
    %1059 = vmatpush1.bf16.msra.mxu0 0
    %1060 = vmatprep.subr.bf16.mxu0 0
    %1061 = vmatpush1.bf16.msra.mxu0 0
    %1062 = vmatprep.mubr.bf16.mxu0 0
    %1063 = vmatmul.mubr.bf16.gmra.mrb[0].mxu0 %v837
    %v1064 = vpop.f32.mrb[0].mxu0
    %v1065 = vadd.f32 0.0, %v1064
    %v1066 = vpop.f32.mrb[0].mxu0
    %v1067 = vadd.f32 0.0, %v1066
    %v1068 = vpop.f32.mrb[0].mxu0
    %v1069 = vpop.f32.mrb[0].mxu0
    %1070 = vdwg.mxu0
    %1071 = vmatprep.subr.bf16.mxu0 %v969
    %1072 = vmatpush1.bf16.msra.mxu0 %v968
    %1073 = vmatprep.subr.bf16.mxu0 %v973
    %1074 = vmatpush1.bf16.msra.mxu0 %v972
    %1075 = vmatprep.subr.bf16.mxu0 %v977
    %1076 = vmatpush1.bf16.msra.mxu0 %v976
    %1077 = vmatprep.subr.bf16.mxu0 %v981
    %1078 = vmatpush1.bf16.msra.mxu0 %v980
    %1079 = vmatprep.subr.bf16.mxu0 %v985
    %1080 = vmatpush1.bf16.msra.mxu0 %v984
    %1081 = vmatprep.subr.bf16.mxu0 %v989
    %1082 = vmatpush1.bf16.msra.mxu0 %v988
    %1083 = vmatprep.subr.bf16.mxu0 %v993
    %1084 = vmatpush1.bf16.msra.mxu0 %v992
    %1085 = vmatprep.subr.bf16.mxu0 %v997
    %1086 = vmatpush1.bf16.msra.mxu0 %v996
    %1087 = vmatprep.subr.bf16.mxu0 0
    %1088 = vmatpush1.bf16.msra.mxu0 0
    %1089 = vmatprep.subr.bf16.mxu0 0
    %1090 = vmatpush1.bf16.msra.mxu0 0
    %1091 = vmatprep.subr.bf16.mxu0 0
    %1092 = vmatpush1.bf16.msra.mxu0 0
    %1093 = vmatprep.subr.bf16.mxu0 0
    %1094 = vmatpush1.bf16.msra.mxu0 0
    %1095 = vmatprep.subr.bf16.mxu0 0
    %1096 = vmatpush1.bf16.msra.mxu0 0
    %1097 = vmatprep.subr.bf16.mxu0 0
    %1098 = vmatpush1.bf16.msra.mxu0 0
    %1099 = vmatprep.subr.bf16.mxu0 0
    %1100 = vmatpush1.bf16.msra.mxu0 0
    %1101 = vmatprep.subr.bf16.mxu0 0
    %1102 = vmatpush1.bf16.msra.mxu0 0
    %1103 = vmatprep.mubr.bf16.mxu0 0
    %1104 = vmatmul.mubr.bf16.gmra.mrb[0].mxu0 %v837
    %v1105 = vpop.f32.mrb[0].mxu0
    %v1106 = vadd.f32 0.0, %v1105
    %v1107 = vpop.f32.mrb[0].mxu0
    %v1108 = vadd.f32 0.0, %v1107
    %v1109 = vpop.f32.mrb[0].mxu0
    %v1110 = vpop.f32.mrb[0].mxu0
    %1111 = vdwg.mxu0
    %v1112 = vadd.f32 %v833, %v1065
    %v1113 = vadd.f32 %v834, %v1067
    %v1114 = vadd.f32 %v835, %v1106
    %v1115 = vadd.f32 %v836, %v1108
    %v1116 = vxor.u32 %v1112, 2147483648
    %v1117 = vxor.u32 %v1113, 2147483648
    %v1118 = vxor.u32 %v1114, 2147483648
    %v1119 = vmul.f32 %v1116, 1.442695
    %v1120 = vpow.pop %v1119
    %v1121 = vmul.f32 %v1117, 1.442695
    %v1122 = vpow.pop %v1121
    %v1123 = vmul.f32 %v1118, 1.442695
    %v1124 = vpow.pop %v1123
    %v1125 = vadd.f32 %v1120, 1.0
    %v1126 = vadd.f32 %v1122, 1.0
    %v1127 = vadd.f32 %v1124, 1.0
    %v1128 = vrcp.pop %v1125
    %v1129 = vmul.f32 1.0, %v1128
    %v1130 = vrcp.pop %v1126
    %v1131 = vmul.f32 1.0, %v1130
    %v1132 = vrcp.pop %v1127
    %v1133 = vmul.f32 1.0, %v1132
    %v1134 = vtanh.pop %v1115
    %v1135 = vmul.f32 %v1131, %v826
    %v1136 = vmul.f32 %v1129, %v1134
    %v1137 = vadd.f32 %v1135, %v1136
    %v1138 = vtanh.pop %v1137
    %v1139 = vmul.f32 %v1133, %v1138
    %s1140 = scalar_lea.vmem [#allocation2], 8
    %1141 = vst [vmem:[%s1140] sm:$0xff] %v1139
    %s1142 = smul.u32 2, 4
    %s1143 = smul.addr %s1142, 8
    %s1144 = scalar_lea.vmem [#allocation3], %s1143
    %v1145 = vld [vmem:[%s1144] sm:$0xff]
    %v1146 = vld [vmem:[%s1144 + $0x8] sm:$0xff]
    %v1147 = vld [vmem:[%s1144 + $0x10] sm:$0xff]
    %v1148 = vld [vmem:[%s1144 + $0x18] sm:$0xff]
    %v1149 = vpack.c.bf16 %v1139, %v1139
    %v1150 = vld [vmem:[#allocation9] sm:$0xff]
    %v1151 = vld [vmem:[#allocation9 + $0x8] sm:$0xff]
    %v1152 = vld [vmem:[#allocation9 + $0x10] sm:$0xff]
    %v1153 = vld [vmem:[#allocation9 + $0x18] sm:$0xff]
    %v1154 = vld [vmem:[#allocation9 + $0x20] sm:$0xff]
    %v1155 = vld [vmem:[#allocation9 + $0x28] sm:$0xff]
    %v1156 = vld [vmem:[#allocation9 + $0x30] sm:$0xff]
    %v1157 = vld [vmem:[#allocation9 + $0x38] sm:$0xff]
    %v1158 = vld [vmem:[#allocation9 + $0x40] sm:$0xff]
    %v1159 = vld [vmem:[#allocation9 + $0x48] sm:$0xff]
    %v1160 = vld [vmem:[#allocation9 + $0x50] sm:$0xff]
    %v1161 = vld [vmem:[#allocation9 + $0x58] sm:$0xff]
    %v1162 = vld [vmem:[#allocation9 + $0x60] sm:$0xff]
    %v1163 = vld [vmem:[#allocation9 + $0x68] sm:$0xff]
    %v1164 = vld [vmem:[#allocation9 + $0x70] sm:$0xff]
    %v1165 = vld [vmem:[#allocation9 + $0x78] sm:$0xff]
    %v1166 = vld [vmem:[#allocation9 + $0x80] sm:$0xff]
    %v1167 = vld [vmem:[#allocation9 + $0x88] sm:$0xff]
    %v1168 = vld [vmem:[#allocation9 + $0x90] sm:$0xff]
    %v1169 = vld [vmem:[#allocation9 + $0x98] sm:$0xff]
    %v1170 = vld [vmem:[#allocation9 + $0xa0] sm:$0xff]
    %v1171 = vld [vmem:[#allocation9 + $0xa8] sm:$0xff]
    %v1172 = vld [vmem:[#allocation9 + $0xb0] sm:$0xff]
    %v1173 = vld [vmem:[#allocation9 + $0xb8] sm:$0xff]
    %v1174 = vld [vmem:[#allocation9 + $0xc0] sm:$0xff]
    %v1175 = vld [vmem:[#allocation9 + $0xc8] sm:$0xff]
    %v1176 = vld [vmem:[#allocation9 + $0xd0] sm:$0xff]
    %v1177 = vld [vmem:[#allocation9 + $0xd8] sm:$0xff]
    %v1178 = vld [vmem:[#allocation9 + $0xe0] sm:$0xff]
    %v1179 = vld [vmem:[#allocation9 + $0xe8] sm:$0xff]
    %v1180 = vld [vmem:[#allocation9 + $0xf0] sm:$0xff]
    %v1181 = vld [vmem:[#allocation9 + $0xf8] sm:$0xff]
    %v1214 = vunpack.c.l.b16 %v1150
    %v1215 = vunpack.c.h.b16 %v1150
    %v1216 = vunpack.c.l.b16 %v1151
    %v1217 = vunpack.c.h.b16 %v1151
    %v1218 = vunpack.c.l.b16 %v1152
    %v1219 = vunpack.c.h.b16 %v1152
    %v1220 = vunpack.c.l.b16 %v1153
    %v1221 = vunpack.c.h.b16 %v1153
    %v1222 = vunpack.c.l.b16 %v1154
    %v1223 = vunpack.c.h.b16 %v1154
    %v1224 = vunpack.c.l.b16 %v1155
    %v1225 = vunpack.c.h.b16 %v1155
    %v1226 = vunpack.c.l.b16 %v1156
    %v1227 = vunpack.c.h.b16 %v1156
    %v1228 = vunpack.c.l.b16 %v1157
    %v1229 = vunpack.c.h.b16 %v1157
    %v1230 = vunpack.c.l.b16 %v1158
    %v1231 = vunpack.c.h.b16 %v1158
    %v1232 = vunpack.c.l.b16 %v1159
    %v1233 = vunpack.c.h.b16 %v1159
    %v1234 = vunpack.c.l.b16 %v1160
    %v1235 = vunpack.c.h.b16 %v1160
    %v1236 = vunpack.c.l.b16 %v1161
    %v1237 = vunpack.c.h.b16 %v1161
    %v1238 = vunpack.c.l.b16 %v1162
    %v1239 = vunpack.c.h.b16 %v1162
    %v1240 = vunpack.c.l.b16 %v1163
    %v1241 = vunpack.c.h.b16 %v1163
    %v1242 = vunpack.c.l.b16 %v1164
    %v1243 = vunpack.c.h.b16 %v1164
    %v1244 = vunpack.c.l.b16 %v1165
    %v1245 = vunpack.c.h.b16 %v1165
    %v1246 = vunpack.c.l.b16 %v1166
    %v1247 = vunpack.c.h.b16 %v1166
    %v1248 = vunpack.c.l.b16 %v1167
    %v1249 = vunpack.c.h.b16 %v1167
    %v1250 = vunpack.c.l.b16 %v1168
    %v1251 = vunpack.c.h.b16 %v1168
    %v1252 = vunpack.c.l.b16 %v1169
    %v1253 = vunpack.c.h.b16 %v1169
    %v1254 = vunpack.c.l.b16 %v1170
    %v1255 = vunpack.c.h.b16 %v1170
    %v1256 = vunpack.c.l.b16 %v1171
    %v1257 = vunpack.c.h.b16 %v1171
    %v1258 = vunpack.c.l.b16 %v1172
    %v1259 = vunpack.c.h.b16 %v1172
    %v1260 = vunpack.c.l.b16 %v1173
    %v1261 = vunpack.c.h.b16 %v1173
    %v1262 = vunpack.c.l.b16 %v1174
    %v1263 = vunpack.c.h.b16 %v1174
    %v1264 = vunpack.c.l.b16 %v1175
    %v1265 = vunpack.c.h.b16 %v1175
    %v1266 = vunpack.c.l.b16 %v1176
    %v1267 = vunpack.c.h.b16 %v1176
    %v1268 = vunpack.c.l.b16 %v1177
    %v1269 = vunpack.c.h.b16 %v1177
    %v1270 = vunpack.c.l.b16 %v1178
    %v1271 = vunpack.c.h.b16 %v1178
    %v1272 = vunpack.c.l.b16 %v1179
    %v1273 = vunpack.c.h.b16 %v1179
    %v1274 = vunpack.c.l.b16 %v1180
    %v1275 = vunpack.c.h.b16 %v1180
    %v1276 = vunpack.c.l.b16 %v1181
    %v1277 = vunpack.c.h.b16 %v1181
    %v1278 = vpack.c.b16 %v1218, %v1214
    %v1279 = vpack.c.b16 %v1219, %v1215
    %v1280 = vpack.c.b16 %v1220, %v1216
    %v1281 = vpack.c.b16 %v1221, %v1217
    %v1282 = vpack.c.b16 %v1226, %v1222
    %v1283 = vpack.c.b16 %v1227, %v1223
    %v1284 = vpack.c.b16 %v1228, %v1224
    %v1285 = vpack.c.b16 %v1229, %v1225
    %v1286 = vpack.c.b16 %v1234, %v1230
    %v1287 = vpack.c.b16 %v1235, %v1231
    %v1288 = vpack.c.b16 %v1236, %v1232
    %v1289 = vpack.c.b16 %v1237, %v1233
    %v1290 = vpack.c.b16 %v1242, %v1238
    %v1291 = vpack.c.b16 %v1243, %v1239
    %v1292 = vpack.c.b16 %v1244, %v1240
    %v1293 = vpack.c.b16 %v1245, %v1241
    %v1294 = vpack.c.b16 %v1250, %v1246
    %v1295 = vpack.c.b16 %v1251, %v1247
    %v1296 = vpack.c.b16 %v1252, %v1248
    %v1297 = vpack.c.b16 %v1253, %v1249
    %v1298 = vpack.c.b16 %v1258, %v1254
    %v1299 = vpack.c.b16 %v1259, %v1255
    %v1300 = vpack.c.b16 %v1260, %v1256
    %v1301 = vpack.c.b16 %v1261, %v1257
    %v1302 = vpack.c.b16 %v1266, %v1262
    %v1303 = vpack.c.b16 %v1267, %v1263
    %v1304 = vpack.c.b16 %v1268, %v1264
    %v1305 = vpack.c.b16 %v1269, %v1265
    %v1306 = vpack.c.b16 %v1274, %v1270
    %v1307 = vpack.c.b16 %v1275, %v1271
    %v1308 = vpack.c.b16 %v1276, %v1272
    %v1309 = vpack.c.b16 %v1277, %v1273
    %1342 = vmatprep.subr.bf16.mxu0 %v1279
    %1343 = vmatpush1.bf16.msra.mxu0 %v1278
    %1344 = vmatprep.subr.bf16.mxu0 %v1283
    %1345 = vmatpush1.bf16.msra.mxu0 %v1282
    %1346 = vmatprep.subr.bf16.mxu0 %v1287
    %1347 = vmatpush1.bf16.msra.mxu0 %v1286
    %1348 = vmatprep.subr.bf16.mxu0 %v1291
    %1349 = vmatpush1.bf16.msra.mxu0 %v1290
    %1350 = vmatprep.subr.bf16.mxu0 %v1295
    %1351 = vmatpush1.bf16.msra.mxu0 %v1294
    %1352 = vmatprep.subr.bf16.mxu0 %v1299
    %1353 = vmatpush1.bf16.msra.mxu0 %v1298
    %1354 = vmatprep.subr.bf16.mxu0 %v1303
    %1355 = vmatpush1.bf16.msra.mxu0 %v1302
    %1356 = vmatprep.subr.bf16.mxu0 %v1307
    %1357 = vmatpush1.bf16.msra.mxu0 %v1306
    %1358 = vmatprep.subr.bf16.mxu0 0
    %1359 = vmatpush1.bf16.msra.mxu0 0
    %1360 = vmatprep.subr.bf16.mxu0 0
    %1361 = vmatpush1.bf16.msra.mxu0 0
    %1362 = vmatprep.subr.bf16.mxu0 0
    %1363 = vmatpush1.bf16.msra.mxu0 0
    %1364 = vmatprep.subr.bf16.mxu0 0
    %1365 = vmatpush1.bf16.msra.mxu0 0
    %1366 = vmatprep.subr.bf16.mxu0 0
    %1367 = vmatpush1.bf16.msra.mxu0 0
    %1368 = vmatprep.subr.bf16.mxu0 0
    %1369 = vmatpush1.bf16.msra.mxu0 0
    %1370 = vmatprep.subr.bf16.mxu0 0
    %1371 = vmatpush1.bf16.msra.mxu0 0
    %1372 = vmatprep.subr.bf16.mxu0 0
    %1373 = vmatpush1.bf16.msra.mxu0 0
    %1374 = vmatprep.mubr.bf16.mxu0 0
    %1375 = vmatmul.mubr.bf16.gmra.mrb[0].mxu0 %v1149
    %v1376 = vpop.f32.mrb[0].mxu0
    %v1377 = vadd.f32 0.0, %v1376
    %v1378 = vpop.f32.mrb[0].mxu0
    %v1379 = vadd.f32 0.0, %v1378
    %v1380 = vpop.f32.mrb[0].mxu0
    %v1381 = vpop.f32.mrb[0].mxu0
    %1382 = vdwg.mxu0
    %1383 = vmatprep.subr.bf16.mxu0 %v1281
    %1384 = vmatpush1.bf16.msra.mxu0 %v1280
    %1385 = vmatprep.subr.bf16.mxu0 %v1285
    %1386 = vmatpush1.bf16.msra.mxu0 %v1284
    %1387 = vmatprep.subr.bf16.mxu0 %v1289
    %1388 = vmatpush1.bf16.msra.mxu0 %v1288
    %1389 = vmatprep.subr.bf16.mxu0 %v1293
    %1390 = vmatpush1.bf16.msra.mxu0 %v1292
    %1391 = vmatprep.subr.bf16.mxu0 %v1297
    %1392 = vmatpush1.bf16.msra.mxu0 %v1296
    %1393 = vmatprep.subr.bf16.mxu0 %v1301
    %1394 = vmatpush1.bf16.msra.mxu0 %v1300
    %1395 = vmatprep.subr.bf16.mxu0 %v1305
    %1396 = vmatpush1.bf16.msra.mxu0 %v1304
    %1397 = vmatprep.subr.bf16.mxu0 %v1309
    %1398 = vmatpush1.bf16.msra.mxu0 %v1308
    %1399 = vmatprep.subr.bf16.mxu0 0
    %1400 = vmatpush1.bf16.msra.mxu0 0
    %1401 = vmatprep.subr.bf16.mxu0 0
    %1402 = vmatpush1.bf16.msra.mxu0 0
    %1403 = vmatprep.subr.bf16.mxu0 0
    %1404 = vmatpush1.bf16.msra.mxu0 0
    %1405 = vmatprep.subr.bf16.mxu0 0
    %1406 = vmatpush1.bf16.msra.mxu0 0
    %1407 = vmatprep.subr.bf16.mxu0 0
    %1408 = vmatpush1.bf16.msra.mxu0 0
    %1409 = vmatprep.subr.bf16.mxu0 0
    %1410 = vmatpush1.bf16.msra.mxu0 0
    %1411 = vmatprep.subr.bf16.mxu0 0
    %1412 = vmatpush1.bf16.msra.mxu0 0
    %1413 = vmatprep.subr.bf16.mxu0 0
    %1414 = vmatpush1.bf16.msra.mxu0 0
    %1415 = vmatprep.mubr.bf16.mxu0 0
    %1416 = vmatmul.mubr.bf16.gmra.mrb[0].mxu0 %v1149
    %v1417 = vpop.f32.mrb[0].mxu0
    %v1418 = vadd.f32 0.0, %v1417
    %v1419 = vpop.f32.mrb[0].mxu0
    %v1420 = vadd.f32 0.0, %v1419
    %v1421 = vpop.f32.mrb[0].mxu0
    %v1422 = vpop.f32.mrb[0].mxu0
    %1423 = vdwg.mxu0
    %v1424 = vadd.f32 %v1145, %v1377
    %v1425 = vadd.f32 %v1146, %v1379
    %v1426 = vadd.f32 %v1147, %v1418
    %v1427 = vadd.f32 %v1148, %v1420
    %v1428 = vxor.u32 %v1424, 2147483648
    %v1429 = vxor.u32 %v1425, 2147483648
    %v1430 = vxor.u32 %v1426, 2147483648
    %v1431 = vmul.f32 %v1428, 1.442695
    %v1432 = vpow.pop %v1431
    %v1433 = vmul.f32 %v1429, 1.442695
    %v1434 = vpow.pop %v1433
    %v1435 = vmul.f32 %v1430, 1.442695
    %v1436 = vpow.pop %v1435
    %v1437 = vadd.f32 %v1432, 1.0
    %v1438 = vadd.f32 %v1434, 1.0
    %v1439 = vadd.f32 %v1436, 1.0
    %v1440 = vrcp.pop %v1437
    %v1441 = vmul.f32 1.0, %v1440
    %v1442 = vrcp.pop %v1438
    %v1443 = vmul.f32 1.0, %v1442
    %v1444 = vrcp.pop %v1439
    %v1445 = vmul.f32 1.0, %v1444
    %v1446 = vtanh.pop %v1427
    %v1447 = vmul.f32 %v1443, %v1137
    %v1448 = vmul.f32 %v1441, %v1446
    %v1449 = vadd.f32 %v1447, %v1448
    %v1450 = vtanh.pop %v1449
    %v1451 = vmul.f32 %v1445, %v1450
    %s1452 = scalar_lea.vmem [#allocation2], 16
    %1453 = vst [vmem:[%s1452] sm:$0xff] %v1451
    %s1454 = smul.u32 3, 4
    %s1455 = smul.addr %s1454, 8
    %s1456 = scalar_lea.vmem [#allocation3], %s1455
    %v1457 = vld [vmem:[%s1456] sm:$0xff]
    %v1458 = vld [vmem:[%s1456 + $0x8] sm:$0xff]
    %v1459 = vld [vmem:[%s1456 + $0x10] sm:$0xff]
    %v1460 = vld [vmem:[%s1456 + $0x18] sm:$0xff]
    %v1461 = vpack.c.bf16 %v1451, %v1451
    %v1462 = vld [vmem:[#allocation9] sm:$0xff]
    %v1463 = vld [vmem:[#allocation9 + $0x8] sm:$0xff]
    %v1464 = vld [vmem:[#allocation9 + $0x10] sm:$0xff]
    %v1465 = vld [vmem:[#allocation9 + $0x18] sm:$0xff]
    %v1466 = vld [vmem:[#allocation9 + $0x20] sm:$0xff]
    %v1467 = vld [vmem:[#allocation9 + $0x28] sm:$0xff]
    %v1468 = vld [vmem:[#allocation9 + $0x30] sm:$0xff]
    %v1469 = vld [vmem:[#allocation9 + $0x38] sm:$0xff]
    %v1470 = vld [vmem:[#allocation9 + $0x40] sm:$0xff]
    %v1471 = vld [vmem:[#allocation9 + $0x48] sm:$0xff]
    %v1472 = vld [vmem:[#allocation9 + $0x50] sm:$0xff]
    %v1473 = vld [vmem:[#allocation9 + $0x58] sm:$0xff]
    %v1474 = vld [vmem:[#allocation9 + $0x60] sm:$0xff]
    %v1475 = vld [vmem:[#allocation9 + $0x68] sm:$0xff]
    %v1476 = vld [vmem:[#allocation9 + $0x70] sm:$0xff]
    %v1477 = vld [vmem:[#allocation9 + $0x78] sm:$0xff]
    %v1478 = vld [vmem:[#allocation9 + $0x80] sm:$0xff]
    %v1479 = vld [vmem:[#allocation9 + $0x88] sm:$0xff]
    %v1480 = vld [vmem:[#allocation9 + $0x90] sm:$0xff]
    %v1481 = vld [vmem:[#allocation9 + $0x98] sm:$0xff]
    %v1482 = vld [vmem:[#allocation9 + $0xa0] sm:$0xff]
    %v1483 = vld [vmem:[#allocation9 + $0xa8] sm:$0xff]
    %v1484 = vld [vmem:[#allocation9 + $0xb0] sm:$0xff]
    %v1485 = vld [vmem:[#allocation9 + $0xb8] sm:$0xff]
    %v1486 = vld [vmem:[#allocation9 + $0xc0] sm:$0xff]
    %v1487 = vld [vmem:[#allocation9 + $0xc8] sm:$0xff]
    %v1488 = vld [vmem:[#allocation9 + $0xd0] sm:$0xff]
    %v1489 = vld [vmem:[#allocation9 + $0xd8] sm:$0xff]
    %v1490 = vld [vmem:[#allocation9 + $0xe0] sm:$0xff]
    %v1491 = vld [vmem:[#allocation9 + $0xe8] sm:$0xff]
    %v1492 = vld [vmem:[#allocation9 + $0xf0] sm:$0xff]
    %v1493 = vld [vmem:[#allocation9 + $0xf8] sm:$0xff]
    %v1526 = vunpack.c.l.b16 %v1462
    %v1527 = vunpack.c.h.b16 %v1462
    %v1528 = vunpack.c.l.b16 %v1463
    %v1529 = vunpack.c.h.b16 %v1463
    %v1530 = vunpack.c.l.b16 %v1464
    %v1531 = vunpack.c.h.b16 %v1464
    %v1532 = vunpack.c.l.b16 %v1465
    %v1533 = vunpack.c.h.b16 %v1465
    %v1534 = vunpack.c.l.b16 %v1466
    %v1535 = vunpack.c.h.b16 %v1466
    %v1536 = vunpack.c.l.b16 %v1467
    %v1537 = vunpack.c.h.b16 %v1467
    %v1538 = vunpack.c.l.b16 %v1468
    %v1539 = vunpack.c.h.b16 %v1468
    %v1540 = vunpack.c.l.b16 %v1469
    %v1541 = vunpack.c.h.b16 %v1469
    %v1542 = vunpack.c.l.b16 %v1470
    %v1543 = vunpack.c.h.b16 %v1470
    %v1544 = vunpack.c.l.b16 %v1471
    %v1545 = vunpack.c.h.b16 %v1471
    %v1546 = vunpack.c.l.b16 %v1472
    %v1547 = vunpack.c.h.b16 %v1472
    %v1548 = vunpack.c.l.b16 %v1473
    %v1549 = vunpack.c.h.b16 %v1473
    %v1550 = vunpack.c.l.b16 %v1474
    %v1551 = vunpack.c.h.b16 %v1474
    %v1552 = vunpack.c.l.b16 %v1475
    %v1553 = vunpack.c.h.b16 %v1475
    %v1554 = vunpack.c.l.b16 %v1476
    %v1555 = vunpack.c.h.b16 %v1476
    %v1556 = vunpack.c.l.b16 %v1477
    %v1557 = vunpack.c.h.b16 %v1477
    %v1558 = vunpack.c.l.b16 %v1478
    %v1559 = vunpack.c.h.b16 %v1478
    %v1560 = vunpack.c.l.b16 %v1479
    %v1561 = vunpack.c.h.b16 %v1479
    %v1562 = vunpack.c.l.b16 %v1480
    %v1563 = vunpack.c.h.b16 %v1480
    %v1564 = vunpack.c.l.b16 %v1481
    %v1565 = vunpack.c.h.b16 %v1481
    %v1566 = vunpack.c.l.b16 %v1482
    %v1567 = vunpack.c.h.b16 %v1482
    %v1568 = vunpack.c.l.b16 %v1483
    %v1569 = vunpack.c.h.b16 %v1483
    %v1570 = vunpack.c.l.b16 %v1484
    %v1571 = vunpack.c.h.b16 %v1484
    %v1572 = vunpack.c.l.b16 %v1485
    %v1573 = vunpack.c.h.b16 %v1485
    %v1574 = vunpack.c.l.b16 %v1486
    %v1575 = vunpack.c.h.b16 %v1486
    %v1576 = vunpack.c.l.b16 %v1487
    %v1577 = vunpack.c.h.b16 %v1487
    %v1578 = vunpack.c.l.b16 %v1488
    %v1579 = vunpack.c.h.b16 %v1488
    %v1580 = vunpack.c.l.b16 %v1489
    %v1581 = vunpack.c.h.b16 %v1489
    %v1582 = vunpack.c.l.b16 %v1490
    %v1583 = vunpack.c.h.b16 %v1490
    %v1584 = vunpack.c.l.b16 %v1491
    %v1585 = vunpack.c.h.b16 %v1491
    %v1586 = vunpack.c.l.b16 %v1492
    %v1587 = vunpack.c.h.b16 %v1492
    %v1588 = vunpack.c.l.b16 %v1493
    %v1589 = vunpack.c.h.b16 %v1493
    %v1590 = vpack.c.b16 %v1530, %v1526
    %v1591 = vpack.c.b16 %v1531, %v1527
    %v1592 = vpack.c.b16 %v1532, %v1528
    %v1593 = vpack.c.b16 %v1533, %v1529
    %v1594 = vpack.c.b16 %v1538, %v1534
    %v1595 = vpack.c.b16 %v1539, %v1535
    %v1596 = vpack.c.b16 %v1540, %v1536
    %v1597 = vpack.c.b16 %v1541, %v1537
    %v1598 = vpack.c.b16 %v1546, %v1542
    %v1599 = vpack.c.b16 %v1547, %v1543
    %v1600 = vpack.c.b16 %v1548, %v1544
    %v1601 = vpack.c.b16 %v1549, %v1545
    %v1602 = vpack.c.b16 %v1554, %v1550
    %v1603 = vpack.c.b16 %v1555, %v1551
    %v1604 = vpack.c.b16 %v1556, %v1552
    %v1605 = vpack.c.b16 %v1557, %v1553
    %v1606 = vpack.c.b16 %v1562, %v1558
    %v1607 = vpack.c.b16 %v1563, %v1559
    %v1608 = vpack.c.b16 %v1564, %v1560
    %v1609 = vpack.c.b16 %v1565, %v1561
    %v1610 = vpack.c.b16 %v1570, %v1566
    %v1611 = vpack.c.b16 %v1571, %v1567
    %v1612 = vpack.c.b16 %v1572, %v1568
    %v1613 = vpack.c.b16 %v1573, %v1569
    %v1614 = vpack.c.b16 %v1578, %v1574
    %v1615 = vpack.c.b16 %v1579, %v1575
    %v1616 = vpack.c.b16 %v1580, %v1576
    %v1617 = vpack.c.b16 %v1581, %v1577
    %v1618 = vpack.c.b16 %v1586, %v1582
    %v1619 = vpack.c.b16 %v1587, %v1583
    %v1620 = vpack.c.b16 %v1588, %v1584
    %v1621 = vpack.c.b16 %v1589, %v1585
    %1654 = vmatprep.subr.bf16.mxu0 %v1591
    %1655 = vmatpush1.bf16.msra.mxu0 %v1590
    %1656 = vmatprep.subr.bf16.mxu0 %v1595
    %1657 = vmatpush1.bf16.msra.mxu0 %v1594
    %1658 = vmatprep.subr.bf16.mxu0 %v1599
    %1659 = vmatpush1.bf16.msra.mxu0 %v1598
    %1660 = vmatprep.subr.bf16.mxu0 %v1603
    %1661 = vmatpush1.bf16.msra.mxu0 %v1602
    %1662 = vmatprep.subr.bf16.mxu0 %v1607
    %1663 = vmatpush1.bf16.msra.mxu0 %v1606
    %1664 = vmatprep.subr.bf16.mxu0 %v1611
    %1665 = vmatpush1.bf16.msra.mxu0 %v1610
    %1666 = vmatprep.subr.bf16.mxu0 %v1615
    %1667 = vmatpush1.bf16.msra.mxu0 %v1614
    %1668 = vmatprep.subr.bf16.mxu0 %v1619
    %1669 = vmatpush1.bf16.msra.mxu0 %v1618
    %1670 = vmatprep.subr.bf16.mxu0 0
    %1671 = vmatpush1.bf16.msra.mxu0 0
    %1672 = vmatprep.subr.bf16.mxu0 0
    %1673 = vmatpush1.bf16.msra.mxu0 0
    %1674 = vmatprep.subr.bf16.mxu0 0
    %1675 = vmatpush1.bf16.msra.mxu0 0
    %1676 = vmatprep.subr.bf16.mxu0 0
    %1677 = vmatpush1.bf16.msra.mxu0 0
    %1678 = vmatprep.subr.bf16.mxu0 0
    %1679 = vmatpush1.bf16.msra.mxu0 0
    %1680 = vmatprep.subr.bf16.mxu0 0
    %1681 = vmatpush1.bf16.msra.mxu0 0
    %1682 = vmatprep.subr.bf16.mxu0 0
    %1683 = vmatpush1.bf16.msra.mxu0 0
    %1684 = vmatprep.subr.bf16.mxu0 0
    %1685 = vmatpush1.bf16.msra.mxu0 0
    %1686 = vmatprep.mubr.bf16.mxu0 0
    %1687 = vmatmul.mubr.bf16.gmra.mrb[0].mxu0 %v1461
    %v1688 = vpop.f32.mrb[0].mxu0
    %v1689 = vadd.f32 0.0, %v1688
    %v1690 = vpop.f32.mrb[0].mxu0
    %v1691 = vadd.f32 0.0, %v1690
    %v1692 = vpop.f32.mrb[0].mxu0
    %v1693 = vpop.f32.mrb[0].mxu0
    %1694 = vdwg.mxu0
    %1695 = vmatprep.subr.bf16.mxu0 %v1593
    %1696 = vmatpush1.bf16.msra.mxu0 %v1592
    %1697 = vmatprep.subr.bf16.mxu0 %v1597
    %1698 = vmatpush1.bf16.msra.mxu0 %v1596
    %1699 = vmatprep.subr.bf16.mxu0 %v1601
    %1700 = vmatpush1.bf16.msra.mxu0 %v1600
    %1701 = vmatprep.subr.bf16.mxu0 %v1605
    %1702 = vmatpush1.bf16.msra.mxu0 %v1604
    %1703 = vmatprep.subr.bf16.mxu0 %v1609
    %1704 = vmatpush1.bf16.msra.mxu0 %v1608
    %1705 = vmatprep.subr.bf16.mxu0 %v1613
    %1706 = vmatpush1.bf16.msra.mxu0 %v1612
    %1707 = vmatprep.subr.bf16.mxu0 %v1617
    %1708 = vmatpush1.bf16.msra.mxu0 %v1616
    %1709 = vmatprep.subr.bf16.mxu0 %v1621
    %1710 = vmatpush1.bf16.msra.mxu0 %v1620
    %1711 = vmatprep.subr.bf16.mxu0 0
    %1712 = vmatpush1.bf16.msra.mxu0 0
    %1713 = vmatprep.subr.bf16.mxu0 0
    %1714 = vmatpush1.bf16.msra.mxu0 0
    %1715 = vmatprep.subr.bf16.mxu0 0
    %1716 = vmatpush1.bf16.msra.mxu0 0
    %1717 = vmatprep.subr.bf16.mxu0 0
    %1718 = vmatpush1.bf16.msra.mxu0 0
    %1719 = vmatprep.subr.bf16.mxu0 0
    %1720 = vmatpush1.bf16.msra.mxu0 0
    %1721 = vmatprep.subr.bf16.mxu0 0
    %1722 = vmatpush1.bf16.msra.mxu0 0
    %1723 = vmatprep.subr.bf16.mxu0 0
    %1724 = vmatpush1.bf16.msra.mxu0 0
    %1725 = vmatprep.subr.bf16.mxu0 0
    %1726 = vmatpush1.bf16.msra.mxu0 0
    %1727 = vmatprep.mubr.bf16.mxu0 0
    %1728 = vmatmul.mubr.bf16.gmra.mrb[0].mxu0 %v1461
    %v1729 = vpop.f32.mrb[0].mxu0
    %v1730 = vadd.f32 0.0, %v1729
    %v1731 = vpop.f32.mrb[0].mxu0
    %v1732 = vadd.f32 0.0, %v1731
    %v1733 = vpop.f32.mrb[0].mxu0
    %v1734 = vpop.f32.mrb[0].mxu0
    %1735 = vdwg.mxu0
    %v1736 = vadd.f32 %v1457, %v1689
    %v1737 = vadd.f32 %v1458, %v1691
    %v1738 = vadd.f32 %v1459, %v1730
    %v1739 = vadd.f32 %v1460, %v1732
    %v1740 = vxor.u32 %v1736, 2147483648
    %v1741 = vxor.u32 %v1737, 2147483648
    %v1742 = vxor.u32 %v1738, 2147483648
    %v1743 = vmul.f32 %v1740, 1.442695
    %v1744 = vpow.pop %v1743
    %v1745 = vmul.f32 %v1741, 1.442695
    %v1746 = vpow.pop %v1745
    %v1747 = vmul.f32 %v1742, 1.442695
    %v1748 = vpow.pop %v1747
    %v1749 = vadd.f32 %v1744, 1.0
    %v1750 = vadd.f32 %v1746, 1.0
    %v1751 = vadd.f32 %v1748, 1.0
    %v1752 = vrcp.pop %v1749
    %v1753 = vmul.f32 1.0, %v1752
    %v1754 = vrcp.pop %v1750
    %v1755 = vmul.f32 1.0, %v1754
    %v1756 = vrcp.pop %v1751
    %v1757 = vmul.f32 1.0, %v1756
    %v1758 = vtanh.pop %v1739
    %v1759 = vmul.f32 %v1755, %v1449
    %v1760 = vmul.f32 %v1753, %v1758
    %v1761 = vadd.f32 %v1759, %v1760
    %v1762 = vtanh.pop %v1761
    %v1763 = vmul.f32 %v1757, %v1762
    %s1764 = scalar_lea.vmem [#allocation2], 24
    %1765 = vst [vmem:[%s1764] sm:$0xff] %v1763
    %s1766 = smul.u32 4, 4
    %s1767 = smul.addr %s1766, 8
    %s1768 = scalar_lea.vmem [#allocation3], %s1767
    %v1769 = vld [vmem:[%s1768] sm:$0xff]
    %v1770 = vld [vmem:[%s1768 + $0x8] sm:$0xff]
    %v1771 = vld [vmem:[%s1768 + $0x10] sm:$0xff]
    %v1772 = vld [vmem:[%s1768 + $0x18] sm:$0xff]
    %v1773 = vpack.c.bf16 %v1763, %v1763
    %v1774 = vld [vmem:[#allocation9] sm:$0xff]
    %v1775 = vld [vmem:[#allocation9 + $0x8] sm:$0xff]
    %v1776 = vld [vmem:[#allocation9 + $0x10] sm:$0xff]
    %v1777 = vld [vmem:[#allocation9 + $0x18] sm:$0xff]
    %v1778 = vld [vmem:[#allocation9 + $0x20] sm:$0xff]
    %v1779 = vld [vmem:[#allocation9 + $0x28] sm:$0xff]
    %v1780 = vld [vmem:[#allocation9 + $0x30] sm:$0xff]
    %v1781 = vld [vmem:[#allocation9 + $0x38] sm:$0xff]
    %v1782 = vld [vmem:[#allocation9 + $0x40] sm:$0xff]
    %v1783 = vld [vmem:[#allocation9 + $0x48] sm:$0xff]
    %v1784 = vld [vmem:[#allocation9 + $0x50] sm:$0xff]
    %v1785 = vld [vmem:[#allocation9 + $0x58] sm:$0xff]
    %v1786 = vld [vmem:[#allocation9 + $0x60] sm:$0xff]
    %v1787 = vld [vmem:[#allocation9 + $0x68] sm:$0xff]
    %v1788 = vld [vmem:[#allocation9 + $0x70] sm:$0xff]
    %v1789 = vld [vmem:[#allocation9 + $0x78] sm:$0xff]
    %v1790 = vld [vmem:[#allocation9 + $0x80] sm:$0xff]
    %v1791 = vld [vmem:[#allocation9 + $0x88] sm:$0xff]
    %v1792 = vld [vmem:[#allocation9 + $0x90] sm:$0xff]
    %v1793 = vld [vmem:[#allocation9 + $0x98] sm:$0xff]
    %v1794 = vld [vmem:[#allocation9 + $0xa0] sm:$0xff]
    %v1795 = vld [vmem:[#allocation9 + $0xa8] sm:$0xff]
    %v1796 = vld [vmem:[#allocation9 + $0xb0] sm:$0xff]
    %v1797 = vld [vmem:[#allocation9 + $0xb8] sm:$0xff]
    %v1798 = vld [vmem:[#allocation9 + $0xc0] sm:$0xff]
    %v1799 = vld [vmem:[#allocation9 + $0xc8] sm:$0xff]
    %v1800 = vld [vmem:[#allocation9 + $0xd0] sm:$0xff]
    %v1801 = vld [vmem:[#allocation9 + $0xd8] sm:$0xff]
    %v1802 = vld [vmem:[#allocation9 + $0xe0] sm:$0xff]
    %v1803 = vld [vmem:[#allocation9 + $0xe8] sm:$0xff]
    %v1804 = vld [vmem:[#allocation9 + $0xf0] sm:$0xff]
    %v1805 = vld [vmem:[#allocation9 + $0xf8] sm:$0xff]
    %v1838 = vunpack.c.l.b16 %v1774
    %v1839 = vunpack.c.h.b16 %v1774
    %v1840 = vunpack.c.l.b16 %v1775
    %v1841 = vunpack.c.h.b16 %v1775
    %v1842 = vunpack.c.l.b16 %v1776
    %v1843 = vunpack.c.h.b16 %v1776
    %v1844 = vunpack.c.l.b16 %v1777
    %v1845 = vunpack.c.h.b16 %v1777
    %v1846 = vunpack.c.l.b16 %v1778
    %v1847 = vunpack.c.h.b16 %v1778
    %v1848 = vunpack.c.l.b16 %v1779
    %v1849 = vunpack.c.h.b16 %v1779
    %v1850 = vunpack.c.l.b16 %v1780
    %v1851 = vunpack.c.h.b16 %v1780
    %v1852 = vunpack.c.l.b16 %v1781
    %v1853 = vunpack.c.h.b16 %v1781
    %v1854 = vunpack.c.l.b16 %v1782
    %v1855 = vunpack.c.h.b16 %v1782
    %v1856 = vunpack.c.l.b16 %v1783
    %v1857 = vunpack.c.h.b16 %v1783
    %v1858 = vunpack.c.l.b16 %v1784
    %v1859 = vunpack.c.h.b16 %v1784
    %v1860 = vunpack.c.l.b16 %v1785
    %v1861 = vunpack.c.h.b16 %v1785
    %v1862 = vunpack.c.l.b16 %v1786
    %v1863 = vunpack.c.h.b16 %v1786
    %v1864 = vunpack.c.l.b16 %v1787
    %v1865 = vunpack.c.h.b16 %v1787
    %v1866 = vunpack.c.l.b16 %v1788
    %v1867 = vunpack.c.h.b16 %v1788
    %v1868 = vunpack.c.l.b16 %v1789
    %v1869 = vunpack.c.h.b16 %v1789
    %v1870 = vunpack.c.l.b16 %v1790
    %v1871 = vunpack.c.h.b16 %v1790
    %v1872 = vunpack.c.l.b16 %v1791
    %v1873 = vunpack.c.h.b16 %v1791
    %v1874 = vunpack.c.l.b16 %v1792
    %v1875 = vunpack.c.h.b16 %v1792
    %v1876 = vunpack.c.l.b16 %v1793
    %v1877 = vunpack.c.h.b16 %v1793
    %v1878 = vunpack.c.l.b16 %v1794
    %v1879 = vunpack.c.h.b16 %v1794
    %v1880 = vunpack.c.l.b16 %v1795
    %v1881 = vunpack.c.h.b16 %v1795
    %v1882 = vunpack.c.l.b16 %v1796
    %v1883 = vunpack.c.h.b16 %v1796
    %v1884 = vunpack.c.l.b16 %v1797
    %v1885 = vunpack.c.h.b16 %v1797
    %v1886 = vunpack.c.l.b16 %v1798
    %v1887 = vunpack.c.h.b16 %v1798
    %v1888 = vunpack.c.l.b16 %v1799
    %v1889 = vunpack.c.h.b16 %v1799
    %v1890 = vunpack.c.l.b16 %v1800
    %v1891 = vunpack.c.h.b16 %v1800
    %v1892 = vunpack.c.l.b16 %v1801
    %v1893 = vunpack.c.h.b16 %v1801
    %v1894 = vunpack.c.l.b16 %v1802
    %v1895 = vunpack.c.h.b16 %v1802
    %v1896 = vunpack.c.l.b16 %v1803
    %v1897 = vunpack.c.h.b16 %v1803
    %v1898 = vunpack.c.l.b16 %v1804
    %v1899 = vunpack.c.h.b16 %v1804
    %v1900 = vunpack.c.l.b16 %v1805
    %v1901 = vunpack.c.h.b16 %v1805
    %v1902 = vpack.c.b16 %v1842, %v1838
    %v1903 = vpack.c.b16 %v1843, %v1839
    %v1904 = vpack.c.b16 %v1844, %v1840
    %v1905 = vpack.c.b16 %v1845, %v1841
    %v1906 = vpack.c.b16 %v1850, %v1846
    %v1907 = vpack.c.b16 %v1851, %v1847
    %v1908 = vpack.c.b16 %v1852, %v1848
    %v1909 = vpack.c.b16 %v1853, %v1849
    %v1910 = vpack.c.b16 %v1858, %v1854
    %v1911 = vpack.c.b16 %v1859, %v1855
    %v1912 = vpack.c.b16 %v1860, %v1856
    %v1913 = vpack.c.b16 %v1861, %v1857
    %v1914 = vpack.c.b16 %v1866, %v1862
    %v1915 = vpack.c.b16 %v1867, %v1863
    %v1916 = vpack.c.b16 %v1868, %v1864
    %v1917 = vpack.c.b16 %v1869, %v1865
    %v1918 = vpack.c.b16 %v1874, %v1870
    %v1919 = vpack.c.b16 %v1875, %v1871
    %v1920 = vpack.c.b16 %v1876, %v1872
    %v1921 = vpack.c.b16 %v1877, %v1873
    %v1922 = vpack.c.b16 %v1882, %v1878
    %v1923 = vpack.c.b16 %v1883, %v1879
    %v1924 = vpack.c.b16 %v1884, %v1880
    %v1925 = vpack.c.b16 %v1885, %v1881
    %v1926 = vpack.c.b16 %v1890, %v1886
    %v1927 = vpack.c.b16 %v1891, %v1887
    %v1928 = vpack.c.b16 %v1892, %v1888
    %v1929 = vpack.c.b16 %v1893, %v1889
    %v1930 = vpack.c.b16 %v1898, %v1894
    %v1931 = vpack.c.b16 %v1899, %v1895
    %v1932 = vpack.c.b16 %v1900, %v1896
    %v1933 = vpack.c.b16 %v1901, %v1897
    %1966 = vmatprep.subr.bf16.mxu0 %v1903
    %1967 = vmatpush1.bf16.msra.mxu0 %v1902
    %1968 = vmatprep.subr.bf16.mxu0 %v1907
    %1969 = vmatpush1.bf16.msra.mxu0 %v1906
    %1970 = vmatprep.subr.bf16.mxu0 %v1911
    %1971 = vmatpush1.bf16.msra.mxu0 %v1910
    %1972 = vmatprep.subr.bf16.mxu0 %v1915
    %1973 = vmatpush1.bf16.msra.mxu0 %v1914
    %1974 = vmatprep.subr.bf16.mxu0 %v1919
    %1975 = vmatpush1.bf16.msra.mxu0 %v1918
    %1976 = vmatprep.subr.bf16.mxu0 %v1923
    %1977 = vmatpush1.bf16.msra.mxu0 %v1922
    %1978 = vmatprep.subr.bf16.mxu0 %v1927
    %1979 = vmatpush1.bf16.msra.mxu0 %v1926
    %1980 = vmatprep.subr.bf16.mxu0 %v1931
    %1981 = vmatpush1.bf16.msra.mxu0 %v1930
    %1982 = vmatprep.subr.bf16.mxu0 0
    %1983 = vmatpush1.bf16.msra.mxu0 0
    %1984 = vmatprep.subr.bf16.mxu0 0
    %1985 = vmatpush1.bf16.msra.mxu0 0
    %1986 = vmatprep.subr.bf16.mxu0 0
    %1987 = vmatpush1.bf16.msra.mxu0 0
    %1988 = vmatprep.subr.bf16.mxu0 0
    %1989 = vmatpush1.bf16.msra.mxu0 0
    %1990 = vmatprep.subr.bf16.mxu0 0
    %1991 = vmatpush1.bf16.msra.mxu0 0
    %1992 = vmatprep.subr.bf16.mxu0 0
    %1993 = vmatpush1.bf16.msra.mxu0 0
    %1994 = vmatprep.subr.bf16.mxu0 0
    %1995 = vmatpush1.bf16.msra.mxu0 0
    %1996 = vmatprep.subr.bf16.mxu0 0
    %1997 = vmatpush1.bf16.msra.mxu0 0
    %1998 = vmatprep.mubr.bf16.mxu0 0
    %1999 = vmatmul.mubr.bf16.gmra.mrb[0].mxu0 %v1773
    %v2000 = vpop.f32.mrb[0].mxu0
    %v2001 = vadd.f32 0.0, %v2000
    %v2002 = vpop.f32.mrb[0].mxu0
    %v2003 = vadd.f32 0.0, %v2002
    %v2004 = vpop.f32.mrb[0].mxu0
    %v2005 = vpop.f32.mrb[0].mxu0
    %2006 = vdwg.mxu0
    %2007 = vmatprep.subr.bf16.mxu0 %v1905
    %2008 = vmatpush1.bf16.msra.mxu0 %v1904
    %2009 = vmatprep.subr.bf16.mxu0 %v1909
    %2010 = vmatpush1.bf16.msra.mxu0 %v1908
    %2011 = vmatprep.subr.bf16.mxu0 %v1913
    %2012 = vmatpush1.bf16.msra.mxu0 %v1912
    %2013 = vmatprep.subr.bf16.mxu0 %v1917
    %2014 = vmatpush1.bf16.msra.mxu0 %v1916
    %2015 = vmatprep.subr.bf16.mxu0 %v1921
    %2016 = vmatpush1.bf16.msra.mxu0 %v1920
    %2017 = vmatprep.subr.bf16.mxu0 %v1925
    %2018 = vmatpush1.bf16.msra.mxu0 %v1924
    %2019 = vmatprep.subr.bf16.mxu0 %v1929
    %2020 = vmatpush1.bf16.msra.mxu0 %v1928
    %2021 = vmatprep.subr.bf16.mxu0 %v1933
    %2022 = vmatpush1.bf16.msra.mxu0 %v1932
    %2023 = vmatprep.subr.bf16.mxu0 0
    %2024 = vmatpush1.bf16.msra.mxu0 0
    %2025 = vmatprep.subr.bf16.mxu0 0
    %2026 = vmatpush1.bf16.msra.mxu0 0
    %2027 = vmatprep.subr.bf16.mxu0 0
    %2028 = vmatpush1.bf16.msra.mxu0 0
    %2029 = vmatprep.subr.bf16.mxu0 0
    %2030 = vmatpush1.bf16.msra.mxu0 0
    %2031 = vmatprep.subr.bf16.mxu0 0
    %2032 = vmatpush1.bf16.msra.mxu0 0
    %2033 = vmatprep.subr.bf16.mxu0 0
    %2034 = vmatpush1.bf16.msra.mxu0 0
    %2035 = vmatprep.subr.bf16.mxu0 0
    %2036 = vmatpush1.bf16.msra.mxu0 0
    %2037 = vmatprep.subr.bf16.mxu0 0
    %2038 = vmatpush1.bf16.msra.mxu0 0
    %2039 = vmatprep.mubr.bf16.mxu0 0
    %2040 = vmatmul.mubr.bf16.gmra.mrb[0].mxu0 %v1773
    %v2041 = vpop.f32.mrb[0].mxu0
    %v2042 = vadd.f32 0.0, %v2041
    %v2043 = vpop.f32.mrb[0].mxu0
    %v2044 = vadd.f32 0.0, %v2043
    %v2045 = vpop.f32.mrb[0].mxu0
    %v2046 = vpop.f32.mrb[0].mxu0
    %2047 = vdwg.mxu0
    %v2048 = vadd.f32 %v1769, %v2001
    %v2049 = vadd.f32 %v1770, %v2003
    %v2050 = vadd.f32 %v1771, %v2042
    %v2051 = vadd.f32 %v1772, %v2044
    %v2052 = vxor.u32 %v2048, 2147483648
    %v2053 = vxor.u32 %v2049, 2147483648
    %v2054 = vxor.u32 %v2050, 2147483648
    %v2055 = vmul.f32 %v2052, 1.442695
    %v2056 = vpow.pop %v2055
    %v2057 = vmul.f32 %v2053, 1.442695
    %v2058 = vpow.pop %v2057
    %v2059 = vmul.f32 %v2054, 1.442695
    %v2060 = vpow.pop %v2059
    %v2061 = vadd.f32 %v2056, 1.0
    %v2062 = vadd.f32 %v2058, 1.0
    %v2063 = vadd.f32 %v2060, 1.0
    %v2064 = vrcp.pop %v2061
    %v2065 = vmul.f32 1.0, %v2064
    %v2066 = vrcp.pop %v2062
    %v2067 = vmul.f32 1.0, %v2066
    %v2068 = vrcp.pop %v2063
    %v2069 = vmul.f32 1.0, %v2068
    %v2070 = vtanh.pop %v2051
    %v2071 = vmul.f32 %v2067, %v1761
    %v2072 = vmul.f32 %v2065, %v2070
    %v2073 = vadd.f32 %v2071, %v2072
    %v2074 = vtanh.pop %v2073
    %v2075 = vmul.f32 %v2069, %v2074
    %s2076 = scalar_lea.vmem [#allocation2], 32
    %2077 = vst [vmem:[%s2076] sm:$0xff] %v2075
    %s2078 = smul.u32 5, 4
    %s2079 = smul.addr %s2078, 8
    %s2080 = scalar_lea.vmem [#allocation3], %s2079
    %v2081 = vld [vmem:[%s2080] sm:$0xff]
    %v2082 = vld [vmem:[%s2080 + $0x8] sm:$0xff]
    %v2083 = vld [vmem:[%s2080 + $0x10] sm:$0xff]
    %v2084 = vld [vmem:[%s2080 + $0x18] sm:$0xff]
    %v2085 = vpack.c.bf16 %v2075, %v2075
    %v2086 = vld [vmem:[#allocation9] sm:$0xff]
    %v2087 = vld [vmem:[#allocation9 + $0x8] sm:$0xff]
    %v2088 = vld [vmem:[#allocation9 + $0x10] sm:$0xff]
    %v2089 = vld [vmem:[#allocation9 + $0x18] sm:$0xff]
    %v2090 = vld [vmem:[#allocation9 + $0x20] sm:$0xff]
    %v2091 = vld [vmem:[#allocation9 + $0x28] sm:$0xff]
    %v2092 = vld [vmem:[#allocation9 + $0x30] sm:$0xff]
    %v2093 = vld [vmem:[#allocation9 + $0x38] sm:$0xff]
    %v2094 = vld [vmem:[#allocation9 + $0x40] sm:$0xff]
    %v2095 = vld [vmem:[#allocation9 + $0x48] sm:$0xff]
    %v2096 = vld [vmem:[#allocation9 + $0x50] sm:$0xff]
    %v2097 = vld [vmem:[#allocation9 + $0x58] sm:$0xff]
    %v2098 = vld [vmem:[#allocation9 + $0x60] sm:$0xff]
    %v2099 = vld [vmem:[#allocation9 + $0x68] sm:$0xff]
    %v2100 = vld [vmem:[#allocation9 + $0x70] sm:$0xff]
    %v2101 = vld [vmem:[#allocation9 + $0x78] sm:$0xff]
    %v2102 = vld [vmem:[#allocation9 + $0x80] sm:$0xff]
    %v2103 = vld [vmem:[#allocation9 + $0x88] sm:$0xff]
    %v2104 = vld [vmem:[#allocation9 + $0x90] sm:$0xff]
    %v2105 = vld [vmem:[#allocation9 + $0x98] sm:$0xff]
    %v2106 = vld [vmem:[#allocation9 + $0xa0] sm:$0xff]
    %v2107 = vld [vmem:[#allocation9 + $0xa8] sm:$0xff]
    %v2108 = vld [vmem:[#allocation9 + $0xb0] sm:$0xff]
    %v2109 = vld [vmem:[#allocation9 + $0xb8] sm:$0xff]
    %v2110 = vld [vmem:[#allocation9 + $0xc0] sm:$0xff]
    %v2111 = vld [vmem:[#allocation9 + $0xc8] sm:$0xff]
    %v2112 = vld [vmem:[#allocation9 + $0xd0] sm:$0xff]
    %v2113 = vld [vmem:[#allocation9 + $0xd8] sm:$0xff]
    %v2114 = vld [vmem:[#allocation9 + $0xe0] sm:$0xff]
    %v2115 = vld [vmem:[#allocation9 + $0xe8] sm:$0xff]
    %v2116 = vld [vmem:[#allocation9 + $0xf0] sm:$0xff]
    %v2117 = vld [vmem:[#allocation9 + $0xf8] sm:$0xff]
    %v2150 = vunpack.c.l.b16 %v2086
    %v2151 = vunpack.c.h.b16 %v2086
    %v2152 = vunpack.c.l.b16 %v2087
    %v2153 = vunpack.c.h.b16 %v2087
    %v2154 = vunpack.c.l.b16 %v2088
    %v2155 = vunpack.c.h.b16 %v2088
    %v2156 = vunpack.c.l.b16 %v2089
    %v2157 = vunpack.c.h.b16 %v2089
    %v2158 = vunpack.c.l.b16 %v2090
    %v2159 = vunpack.c.h.b16 %v2090
    %v2160 = vunpack.c.l.b16 %v2091
    %v2161 = vunpack.c.h.b16 %v2091
    %v2162 = vunpack.c.l.b16 %v2092
    %v2163 = vunpack.c.h.b16 %v2092
    %v2164 = vunpack.c.l.b16 %v2093
    %v2165 = vunpack.c.h.b16 %v2093
    %v2166 = vunpack.c.l.b16 %v2094
    %v2167 = vunpack.c.h.b16 %v2094
    %v2168 = vunpack.c.l.b16 %v2095
    %v2169 = vunpack.c.h.b16 %v2095
    %v2170 = vunpack.c.l.b16 %v2096
    %v2171 = vunpack.c.h.b16 %v2096
    %v2172 = vunpack.c.l.b16 %v2097
    %v2173 = vunpack.c.h.b16 %v2097
    %v2174 = vunpack.c.l.b16 %v2098
    %v2175 = vunpack.c.h.b16 %v2098
    %v2176 = vunpack.c.l.b16 %v2099
    %v2177 = vunpack.c.h.b16 %v2099
    %v2178 = vunpack.c.l.b16 %v2100
    %v2179 = vunpack.c.h.b16 %v2100
    %v2180 = vunpack.c.l.b16 %v2101
    %v2181 = vunpack.c.h.b16 %v2101
    %v2182 = vunpack.c.l.b16 %v2102
    %v2183 = vunpack.c.h.b16 %v2102
    %v2184 = vunpack.c.l.b16 %v2103
    %v2185 = vunpack.c.h.b16 %v2103
    %v2186 = vunpack.c.l.b16 %v2104
    %v2187 = vunpack.c.h.b16 %v2104
    %v2188 = vunpack.c.l.b16 %v2105
    %v2189 = vunpack.c.h.b16 %v2105
    %v2190 = vunpack.c.l.b16 %v2106
    %v2191 = vunpack.c.h.b16 %v2106
    %v2192 = vunpack.c.l.b16 %v2107
    %v2193 = vunpack.c.h.b16 %v2107
    %v2194 = vunpack.c.l.b16 %v2108
    %v2195 = vunpack.c.h.b16 %v2108
    %v2196 = vunpack.c.l.b16 %v2109
    %v2197 = vunpack.c.h.b16 %v2109
    %v2198 = vunpack.c.l.b16 %v2110
    %v2199 = vunpack.c.h.b16 %v2110
    %v2200 = vunpack.c.l.b16 %v2111
    %v2201 = vunpack.c.h.b16 %v2111
    %v2202 = vunpack.c.l.b16 %v2112
    %v2203 = vunpack.c.h.b16 %v2112
    %v2204 = vunpack.c.l.b16 %v2113
    %v2205 = vunpack.c.h.b16 %v2113
    %v2206 = vunpack.c.l.b16 %v2114
    %v2207 = vunpack.c.h.b16 %v2114
    %v2208 = vunpack.c.l.b16 %v2115
    %v2209 = vunpack.c.h.b16 %v2115
    %v2210 = vunpack.c.l.b16 %v2116
    %v2211 = vunpack.c.h.b16 %v2116
    %v2212 = vunpack.c.l.b16 %v2117
    %v2213 = vunpack.c.h.b16 %v2117
    %v2214 = vpack.c.b16 %v2154, %v2150
    %v2215 = vpack.c.b16 %v2155, %v2151
    %v2216 = vpack.c.b16 %v2156, %v2152
    %v2217 = vpack.c.b16 %v2157, %v2153
    %v2218 = vpack.c.b16 %v2162, %v2158
    %v2219 = vpack.c.b16 %v2163, %v2159
    %v2220 = vpack.c.b16 %v2164, %v2160
    %v2221 = vpack.c.b16 %v2165, %v2161
    %v2222 = vpack.c.b16 %v2170, %v2166
    %v2223 = vpack.c.b16 %v2171, %v2167
    %v2224 = vpack.c.b16 %v2172, %v2168
    %v2225 = vpack.c.b16 %v2173, %v2169
    %v2226 = vpack.c.b16 %v2178, %v2174
    %v2227 = vpack.c.b16 %v2179, %v2175
    %v2228 = vpack.c.b16 %v2180, %v2176
    %v2229 = vpack.c.b16 %v2181, %v2177
    %v2230 = vpack.c.b16 %v2186, %v2182
    %v2231 = vpack.c.b16 %v2187, %v2183
    %v2232 = vpack.c.b16 %v2188, %v2184
    %v2233 = vpack.c.b16 %v2189, %v2185
    %v2234 = vpack.c.b16 %v2194, %v2190
    %v2235 = vpack.c.b16 %v2195, %v2191
    %v2236 = vpack.c.b16 %v2196, %v2192
    %v2237 = vpack.c.b16 %v2197, %v2193
    %v2238 = vpack.c.b16 %v2202, %v2198
    %v2239 = vpack.c.b16 %v2203, %v2199
    %v2240 = vpack.c.b16 %v2204, %v2200
    %v2241 = vpack.c.b16 %v2205, %v2201
    %v2242 = vpack.c.b16 %v2210, %v2206
    %v2243 = vpack.c.b16 %v2211, %v2207
    %v2244 = vpack.c.b16 %v2212, %v2208
    %v2245 = vpack.c.b16 %v2213, %v2209
    %2278 = vmatprep.subr.bf16.mxu0 %v2215
    %2279 = vmatpush1.bf16.msra.mxu0 %v2214
    %2280 = vmatprep.subr.bf16.mxu0 %v2219
    %2281 = vmatpush1.bf16.msra.mxu0 %v2218
    %2282 = vmatprep.subr.bf16.mxu0 %v2223
    %2283 = vmatpush1.bf16.msra.mxu0 %v2222
    %2284 = vmatprep.subr.bf16.mxu0 %v2227
    %2285 = vmatpush1.bf16.msra.mxu0 %v2226
    %2286 = vmatprep.subr.bf16.mxu0 %v2231
    %2287 = vmatpush1.bf16.msra.mxu0 %v2230
    %2288 = vmatprep.subr.bf16.mxu0 %v2235
    %2289 = vmatpush1.bf16.msra.mxu0 %v2234
    %2290 = vmatprep.subr.bf16.mxu0 %v2239
    %2291 = vmatpush1.bf16.msra.mxu0 %v2238
    %2292 = vmatprep.subr.bf16.mxu0 %v2243
    %2293 = vmatpush1.bf16.msra.mxu0 %v2242
    %2294 = vmatprep.subr.bf16.mxu0 0
    %2295 = vmatpush1.bf16.msra.mxu0 0
    %2296 = vmatprep.subr.bf16.mxu0 0
    %2297 = vmatpush1.bf16.msra.mxu0 0
    %2298 = vmatprep.subr.bf16.mxu0 0
    %2299 = vmatpush1.bf16.msra.mxu0 0
    %2300 = vmatprep.subr.bf16.mxu0 0
    %2301 = vmatpush1.bf16.msra.mxu0 0
    %2302 = vmatprep.subr.bf16.mxu0 0
    %2303 = vmatpush1.bf16.msra.mxu0 0
    %2304 = vmatprep.subr.bf16.mxu0 0
    %2305 = vmatpush1.bf16.msra.mxu0 0
    %2306 = vmatprep.subr.bf16.mxu0 0
    %2307 = vmatpush1.bf16.msra.mxu0 0
    %2308 = vmatprep.subr.bf16.mxu0 0
    %2309 = vmatpush1.bf16.msra.mxu0 0
    %2310 = vmatprep.mubr.bf16.mxu0 0
    %2311 = vmatmul.mubr.bf16.gmra.mrb[0].mxu0 %v2085
    %v2312 = vpop.f32.mrb[0].mxu0
    %v2313 = vadd.f32 0.0, %v2312
    %v2314 = vpop.f32.mrb[0].mxu0
    %v2315 = vadd.f32 0.0, %v2314
    %v2316 = vpop.f32.mrb[0].mxu0
    %v2317 = vpop.f32.mrb[0].mxu0
    %2318 = vdwg.mxu0
    %2319 = vmatprep.subr.bf16.mxu0 %v2217
    %2320 = vmatpush1.bf16.msra.mxu0 %v2216
    %2321 = vmatprep.subr.bf16.mxu0 %v2221
    %2322 = vmatpush1.bf16.msra.mxu0 %v2220
    %2323 = vmatprep.subr.bf16.mxu0 %v2225
    %2324 = vmatpush1.bf16.msra.mxu0 %v2224
    %2325 = vmatprep.subr.bf16.mxu0 %v2229
    %2326 = vmatpush1.bf16.msra.mxu0 %v2228
    %2327 = vmatprep.subr.bf16.mxu0 %v2233
    %2328 = vmatpush1.bf16.msra.mxu0 %v2232
    %2329 = vmatprep.subr.bf16.mxu0 %v2237
    %2330 = vmatpush1.bf16.msra.mxu0 %v2236
    %2331 = vmatprep.subr.bf16.mxu0 %v2241
    %2332 = vmatpush1.bf16.msra.mxu0 %v2240
    %2333 = vmatprep.subr.bf16.mxu0 %v2245
    %2334 = vmatpush1.bf16.msra.mxu0 %v2244
    %2335 = vmatprep.subr.bf16.mxu0 0
    %2336 = vmatpush1.bf16.msra.mxu0 0
    %2337 = vmatprep.subr.bf16.mxu0 0
    %2338 = vmatpush1.bf16.msra.mxu0 0
    %2339 = vmatprep.subr.bf16.mxu0 0
    %2340 = vmatpush1.bf16.msra.mxu0 0
    %2341 = vmatprep.subr.bf16.mxu0 0
    %2342 = vmatpush1.bf16.msra.mxu0 0
    %2343 = vmatprep.subr.bf16.mxu0 0
    %2344 = vmatpush1.bf16.msra.mxu0 0
    %2345 = vmatprep.subr.bf16.mxu0 0
    %2346 = vmatpush1.bf16.msra.mxu0 0
    %2347 = vmatprep.subr.bf16.mxu0 0
    %2348 = vmatpush1.bf16.msra.mxu0 0
    %2349 = vmatprep.subr.bf16.mxu0 0
    %2350 = vmatpush1.bf16.msra.mxu0 0
    %2351 = vmatprep.mubr.bf16.mxu0 0
    %2352 = vmatmul.mubr.bf16.gmra.mrb[0].mxu0 %v2085
    %v2353 = vpop.f32.mrb[0].mxu0
    %v2354 = vadd.f32 0.0, %v2353
    %v2355 = vpop.f32.mrb[0].mxu0
    %v2356 = vadd.f32 0.0, %v2355
    %v2357 = vpop.f32.mrb[0].mxu0
    %v2358 = vpop.f32.mrb[0].mxu0
    %2359 = vdwg.mxu0
    %v2360 = vadd.f32 %v2081, %v2313
    %v2361 = vadd.f32 %v2082, %v2315
    %v2362 = vadd.f32 %v2083, %v2354
    %v2363 = vadd.f32 %v2084, %v2356
    %v2364 = vxor.u32 %v2360, 2147483648
    %v2365 = vxor.u32 %v2361, 2147483648
    %v2366 = vxor.u32 %v2362, 2147483648
    %v2367 = vmul.f32 %v2364, 1.442695
    %v2368 = vpow.pop %v2367
    %v2369 = vmul.f32 %v2365, 1.442695
    %v2370 = vpow.pop %v2369
    %v2371 = vmul.f32 %v2366, 1.442695
    %v2372 = vpow.pop %v2371
    %v2373 = vadd.f32 %v2368, 1.0
    %v2374 = vadd.f32 %v2370, 1.0
    %v2375 = vadd.f32 %v2372, 1.0
    %v2376 = vrcp.pop %v2373
    %v2377 = vmul.f32 1.0, %v2376
    %v2378 = vrcp.pop %v2374
    %v2379 = vmul.f32 1.0, %v2378
    %v2380 = vrcp.pop %v2375
    %v2381 = vmul.f32 1.0, %v2380
    %v2382 = vtanh.pop %v2363
    %v2383 = vmul.f32 %v2379, %v2073
    %v2384 = vmul.f32 %v2377, %v2382
    %v2385 = vadd.f32 %v2383, %v2384
    %v2386 = vtanh.pop %v2385
    %v2387 = vmul.f32 %v2381, %v2386
    %s2388 = scalar_lea.vmem [#allocation2], 40
    %2389 = vst [vmem:[%s2388] sm:$0xff] %v2387
    %s2390 = smul.u32 6, 4
    %s2391 = smul.addr %s2390, 8
    %s2392 = scalar_lea.vmem [#allocation3], %s2391
    %v2393 = vld [vmem:[%s2392] sm:$0xff]
    %v2394 = vld [vmem:[%s2392 + $0x8] sm:$0xff]
    %v2395 = vld [vmem:[%s2392 + $0x10] sm:$0xff]
    %v2396 = vld [vmem:[%s2392 + $0x18] sm:$0xff]
    %v2397 = vpack.c.bf16 %v2387, %v2387
    %v2398 = vld [vmem:[#allocation9] sm:$0xff]
    %v2399 = vld [vmem:[#allocation9 + $0x8] sm:$0xff]
    %v2400 = vld [vmem:[#allocation9 + $0x10] sm:$0xff]
    %v2401 = vld [vmem:[#allocation9 + $0x18] sm:$0xff]
    %v2402 = vld [vmem:[#allocation9 + $0x20] sm:$0xff]
    %v2403 = vld [vmem:[#allocation9 + $0x28] sm:$0xff]
    %v2404 = vld [vmem:[#allocation9 + $0x30] sm:$0xff]
    %v2405 = vld [vmem:[#allocation9 + $0x38] sm:$0xff]
    %v2406 = vld [vmem:[#allocation9 + $0x40] sm:$0xff]
    %v2407 = vld [vmem:[#allocation9 + $0x48] sm:$0xff]
    %v2408 = vld [vmem:[#allocation9 + $0x50] sm:$0xff]
    %v2409 = vld [vmem:[#allocation9 + $0x58] sm:$0xff]
    %v2410 = vld [vmem:[#allocation9 + $0x60] sm:$0xff]
    %v2411 = vld [vmem:[#allocation9 + $0x68] sm:$0xff]
    %v2412 = vld [vmem:[#allocation9 + $0x70] sm:$0xff]
    %v2413 = vld [vmem:[#allocation9 + $0x78] sm:$0xff]
    %v2414 = vld [vmem:[#allocation9 + $0x80] sm:$0xff]
    %v2415 = vld [vmem:[#allocation9 + $0x88] sm:$0xff]
    %v2416 = vld [vmem:[#allocation9 + $0x90] sm:$0xff]
    %v2417 = vld [vmem:[#allocation9 + $0x98] sm:$0xff]
    %v2418 = vld [vmem:[#allocation9 + $0xa0] sm:$0xff]
    %v2419 = vld [vmem:[#allocation9 + $0xa8] sm:$0xff]
    %v2420 = vld [vmem:[#allocation9 + $0xb0] sm:$0xff]
    %v2421 = vld [vmem:[#allocation9 + $0xb8] sm:$0xff]
    %v2422 = vld [vmem:[#allocation9 + $0xc0] sm:$0xff]
    %v2423 = vld [vmem:[#allocation9 + $0xc8] sm:$0xff]
    %v2424 = vld [vmem:[#allocation9 + $0xd0] sm:$0xff]
    %v2425 = vld [vmem:[#allocation9 + $0xd8] sm:$0xff]
    %v2426 = vld [vmem:[#allocation9 + $0xe0] sm:$0xff]
    %v2427 = vld [vmem:[#allocation9 + $0xe8] sm:$0xff]
    %v2428 = vld [vmem:[#allocation9 + $0xf0] sm:$0xff]
    %v2429 = vld [vmem:[#allocation9 + $0xf8] sm:$0xff]
    %v2462 = vunpack.c.l.b16 %v2398
    %v2463 = vunpack.c.h.b16 %v2398
    %v2464 = vunpack.c.l.b16 %v2399
    %v2465 = vunpack.c.h.b16 %v2399
    %v2466 = vunpack.c.l.b16 %v2400
    %v2467 = vunpack.c.h.b16 %v2400
    %v2468 = vunpack.c.l.b16 %v2401
    %v2469 = vunpack.c.h.b16 %v2401
    %v2470 = vunpack.c.l.b16 %v2402
    %v2471 = vunpack.c.h.b16 %v2402
    %v2472 = vunpack.c.l.b16 %v2403
    %v2473 = vunpack.c.h.b16 %v2403
    %v2474 = vunpack.c.l.b16 %v2404
    %v2475 = vunpack.c.h.b16 %v2404
    %v2476 = vunpack.c.l.b16 %v2405
    %v2477 = vunpack.c.h.b16 %v2405
    %v2478 = vunpack.c.l.b16 %v2406
    %v2479 = vunpack.c.h.b16 %v2406
    %v2480 = vunpack.c.l.b16 %v2407
    %v2481 = vunpack.c.h.b16 %v2407
    %v2482 = vunpack.c.l.b16 %v2408
    %v2483 = vunpack.c.h.b16 %v2408
    %v2484 = vunpack.c.l.b16 %v2409
    %v2485 = vunpack.c.h.b16 %v2409
    %v2486 = vunpack.c.l.b16 %v2410
    %v2487 = vunpack.c.h.b16 %v2410
    %v2488 = vunpack.c.l.b16 %v2411
    %v2489 = vunpack.c.h.b16 %v2411
    %v2490 = vunpack.c.l.b16 %v2412
    %v2491 = vunpack.c.h.b16 %v2412
    %v2492 = vunpack.c.l.b16 %v2413
    %v2493 = vunpack.c.h.b16 %v2413
    %v2494 = vunpack.c.l.b16 %v2414
    %v2495 = vunpack.c.h.b16 %v2414
    %v2496 = vunpack.c.l.b16 %v2415
    %v2497 = vunpack.c.h.b16 %v2415
    %v2498 = vunpack.c.l.b16 %v2416
    %v2499 = vunpack.c.h.b16 %v2416
    %v2500 = vunpack.c.l.b16 %v2417
    %v2501 = vunpack.c.h.b16 %v2417
    %v2502 = vunpack.c.l.b16 %v2418
    %v2503 = vunpack.c.h.b16 %v2418
    %v2504 = vunpack.c.l.b16 %v2419
    %v2505 = vunpack.c.h.b16 %v2419
    %v2506 = vunpack.c.l.b16 %v2420
    %v2507 = vunpack.c.h.b16 %v2420
    %v2508 = vunpack.c.l.b16 %v2421
    %v2509 = vunpack.c.h.b16 %v2421
    %v2510 = vunpack.c.l.b16 %v2422
    %v2511 = vunpack.c.h.b16 %v2422
    %v2512 = vunpack.c.l.b16 %v2423
    %v2513 = vunpack.c.h.b16 %v2423
    %v2514 = vunpack.c.l.b16 %v2424
    %v2515 = vunpack.c.h.b16 %v2424
    %v2516 = vunpack.c.l.b16 %v2425
    %v2517 = vunpack.c.h.b16 %v2425
    %v2518 = vunpack.c.l.b16 %v2426
    %v2519 = vunpack.c.h.b16 %v2426
    %v2520 = vunpack.c.l.b16 %v2427
    %v2521 = vunpack.c.h.b16 %v2427
    %v2522 = vunpack.c.l.b16 %v2428
    %v2523 = vunpack.c.h.b16 %v2428
    %v2524 = vunpack.c.l.b16 %v2429
    %v2525 = vunpack.c.h.b16 %v2429
    %v2526 = vpack.c.b16 %v2466, %v2462
    %v2527 = vpack.c.b16 %v2467, %v2463
    %v2528 = vpack.c.b16 %v2468, %v2464
    %v2529 = vpack.c.b16 %v2469, %v2465
    %v2530 = vpack.c.b16 %v2474, %v2470
    %v2531 = vpack.c.b16 %v2475, %v2471
    %v2532 = vpack.c.b16 %v2476, %v2472
    %v2533 = vpack.c.b16 %v2477, %v2473
    %v2534 = vpack.c.b16 %v2482, %v2478
    %v2535 = vpack.c.b16 %v2483, %v2479
    %v2536 = vpack.c.b16 %v2484, %v2480
    %v2537 = vpack.c.b16 %v2485, %v2481
    %v2538 = vpack.c.b16 %v2490, %v2486
    %v2539 = vpack.c.b16 %v2491, %v2487
    %v2540 = vpack.c.b16 %v2492, %v2488
    %v2541 = vpack.c.b16 %v2493, %v2489
    %v2542 = vpack.c.b16 %v2498, %v2494
    %v2543 = vpack.c.b16 %v2499, %v2495
    %v2544 = vpack.c.b16 %v2500, %v2496
    %v2545 = vpack.c.b16 %v2501, %v2497
    %v2546 = vpack.c.b16 %v2506, %v2502
    %v2547 = vpack.c.b16 %v2507, %v2503
    %v2548 = vpack.c.b16 %v2508, %v2504
    %v2549 = vpack.c.b16 %v2509, %v2505
    %v2550 = vpack.c.b16 %v2514, %v2510
    %v2551 = vpack.c.b16 %v2515, %v2511
    %v2552 = vpack.c.b16 %v2516, %v2512
    %v2553 = vpack.c.b16 %v2517, %v2513
    %v2554 = vpack.c.b16 %v2522, %v2518
    %v2555 = vpack.c.b16 %v2523, %v2519
    %v2556 = vpack.c.b16 %v2524, %v2520
    %v2557 = vpack.c.b16 %v2525, %v2521
    %2590 = vmatprep.subr.bf16.mxu0 %v2527
    %2591 = vmatpush1.bf16.msra.mxu0 %v2526
    %2592 = vmatprep.subr.bf16.mxu0 %v2531
    %2593 = vmatpush1.bf16.msra.mxu0 %v2530
    %2594 = vmatprep.subr.bf16.mxu0 %v2535
    %2595 = vmatpush1.bf16.msra.mxu0 %v2534
    %2596 = vmatprep.subr.bf16.mxu0 %v2539
    %2597 = vmatpush1.bf16.msra.mxu0 %v2538
    %2598 = vmatprep.subr.bf16.mxu0 %v2543
    %2599 = vmatpush1.bf16.msra.mxu0 %v2542
    %2600 = vmatprep.subr.bf16.mxu0 %v2547
    %2601 = vmatpush1.bf16.msra.mxu0 %v2546
    %2602 = vmatprep.subr.bf16.mxu0 %v2551
    %2603 = vmatpush1.bf16.msra.mxu0 %v2550
    %2604 = vmatprep.subr.bf16.mxu0 %v2555
    %2605 = vmatpush1.bf16.msra.mxu0 %v2554
    %2606 = vmatprep.subr.bf16.mxu0 0
    %2607 = vmatpush1.bf16.msra.mxu0 0
    %2608 = vmatprep.subr.bf16.mxu0 0
    %2609 = vmatpush1.bf16.msra.mxu0 0
    %2610 = vmatprep.subr.bf16.mxu0 0
    %2611 = vmatpush1.bf16.msra.mxu0 0
    %2612 = vmatprep.subr.bf16.mxu0 0
    %2613 = vmatpush1.bf16.msra.mxu0 0
    %2614 = vmatprep.subr.bf16.mxu0 0
    %2615 = vmatpush1.bf16.msra.mxu0 0
    %2616 = vmatprep.subr.bf16.mxu0 0
    %2617 = vmatpush1.bf16.msra.mxu0 0
    %2618 = vmatprep.subr.bf16.mxu0 0
    %2619 = vmatpush1.bf16.msra.mxu0 0
    %2620 = vmatprep.subr.bf16.mxu0 0
    %2621 = vmatpush1.bf16.msra.mxu0 0
    %2622 = vmatprep.mubr.bf16.mxu0 0
    %2623 = vmatmul.mubr.bf16.gmra.mrb[0].mxu0 %v2397
    %v2624 = vpop.f32.mrb[0].mxu0
    %v2625 = vadd.f32 0.0, %v2624
    %v2626 = vpop.f32.mrb[0].mxu0
    %v2627 = vadd.f32 0.0, %v2626
    %v2628 = vpop.f32.mrb[0].mxu0
    %v2629 = vpop.f32.mrb[0].mxu0
    %2630 = vdwg.mxu0
    %2631 = vmatprep.subr.bf16.mxu0 %v2529
    %2632 = vmatpush1.bf16.msra.mxu0 %v2528
    %2633 = vmatprep.subr.bf16.mxu0 %v2533
    %2634 = vmatpush1.bf16.msra.mxu0 %v2532
    %2635 = vmatprep.subr.bf16.mxu0 %v2537
    %2636 = vmatpush1.bf16.msra.mxu0 %v2536
    %2637 = vmatprep.subr.bf16.mxu0 %v2541
    %2638 = vmatpush1.bf16.msra.mxu0 %v2540
    %2639 = vmatprep.subr.bf16.mxu0 %v2545
    %2640 = vmatpush1.bf16.msra.mxu0 %v2544
    %2641 = vmatprep.subr.bf16.mxu0 %v2549
    %2642 = vmatpush1.bf16.msra.mxu0 %v2548
    %2643 = vmatprep.subr.bf16.mxu0 %v2553
    %2644 = vmatpush1.bf16.msra.mxu0 %v2552
    %2645 = vmatprep.subr.bf16.mxu0 %v2557
    %2646 = vmatpush1.bf16.msra.mxu0 %v2556
    %2647 = vmatprep.subr.bf16.mxu0 0
    %2648 = vmatpush1.bf16.msra.mxu0 0
    %2649 = vmatprep.subr.bf16.mxu0 0
    %2650 = vmatpush1.bf16.msra.mxu0 0
    %2651 = vmatprep.subr.bf16.mxu0 0
    %2652 = vmatpush1.bf16.msra.mxu0 0
    %2653 = vmatprep.subr.bf16.mxu0 0
    %2654 = vmatpush1.bf16.msra.mxu0 0
    %2655 = vmatprep.subr.bf16.mxu0 0
    %2656 = vmatpush1.bf16.msra.mxu0 0
    %2657 = vmatprep.subr.bf16.mxu0 0
    %2658 = vmatpush1.bf16.msra.mxu0 0
    %2659 = vmatprep.subr.bf16.mxu0 0
    %2660 = vmatpush1.bf16.msra.mxu0 0
    %2661 = vmatprep.subr.bf16.mxu0 0
    %2662 = vmatpush1.bf16.msra.mxu0 0
    %2663 = vmatprep.mubr.bf16.mxu0 0
    %2664 = vmatmul.mubr.bf16.gmra.mrb[0].mxu0 %v2397
    %v2665 = vpop.f32.mrb[0].mxu0
    %v2666 = vadd.f32 0.0, %v2665
    %v2667 = vpop.f32.mrb[0].mxu0
    %v2668 = vadd.f32 0.0, %v2667
    %v2669 = vpop.f32.mrb[0].mxu0
    %v2670 = vpop.f32.mrb[0].mxu0
    %2671 = vdwg.mxu0
    %v2672 = vadd.f32 %v2393, %v2625
    %v2673 = vadd.f32 %v2394, %v2627
    %v2674 = vadd.f32 %v2395, %v2666
    %v2675 = vadd.f32 %v2396, %v2668
    %v2676 = vxor.u32 %v2672, 2147483648
    %v2677 = vxor.u32 %v2673, 2147483648
    %v2678 = vxor.u32 %v2674, 2147483648
    %v2679 = vmul.f32 %v2676, 1.442695
    %v2680 = vpow.pop %v2679
    %v2681 = vmul.f32 %v2677, 1.442695
    %v2682 = vpow.pop %v2681
    %v2683 = vmul.f32 %v2678, 1.442695
    %v2684 = vpow.pop %v2683
    %v2685 = vadd.f32 %v2680, 1.0
    %v2686 = vadd.f32 %v2682, 1.0
    %v2687 = vadd.f32 %v2684, 1.0
    %v2688 = vrcp.pop %v2685
    %v2689 = vmul.f32 1.0, %v2688
    %v2690 = vrcp.pop %v2686
    %v2691 = vmul.f32 1.0, %v2690
    %v2692 = vrcp.pop %v2687
    %v2693 = vmul.f32 1.0, %v2692
    %v2694 = vtanh.pop %v2675
    %v2695 = vmul.f32 %v2691, %v2385
    %v2696 = vmul.f32 %v2689, %v2694
    %v2697 = vadd.f32 %v2695, %v2696
    %v2698 = vtanh.pop %v2697
    %v2699 = vmul.f32 %v2693, %v2698
    %s2700 = scalar_lea.vmem [#allocation2], 48
    %2701 = vst [vmem:[%s2700] sm:$0xff] %v2699
    %s2702 = smul.u32 7, 4
    %s2703 = smul.addr %s2702, 8
    %s2704 = scalar_lea.vmem [#allocation3], %s2703
    %v2705 = vld [vmem:[%s2704] sm:$0xff]
    %v2706 = vld [vmem:[%s2704 + $0x8] sm:$0xff]
    %v2707 = vld [vmem:[%s2704 + $0x10] sm:$0xff]
    %v2708 = vld [vmem:[%s2704 + $0x18] sm:$0xff]
    %v2709 = vpack.c.bf16 %v2699, %v2699
    %v2710 = vld [vmem:[#allocation9] sm:$0xff]
    %v2711 = vld [vmem:[#allocation9 + $0x8] sm:$0xff]
    %v2712 = vld [vmem:[#allocation9 + $0x10] sm:$0xff]
    %v2713 = vld [vmem:[#allocation9 + $0x18] sm:$0xff]
    %v2714 = vld [vmem:[#allocation9 + $0x20] sm:$0xff]
    %v2715 = vld [vmem:[#allocation9 + $0x28] sm:$0xff]
    %v2716 = vld [vmem:[#allocation9 + $0x30] sm:$0xff]
    %v2717 = vld [vmem:[#allocation9 + $0x38] sm:$0xff]
    %v2718 = vld [vmem:[#allocation9 + $0x40] sm:$0xff]
    %v2719 = vld [vmem:[#allocation9 + $0x48] sm:$0xff]
    %v2720 = vld [vmem:[#allocation9 + $0x50] sm:$0xff]
    %v2721 = vld [vmem:[#allocation9 + $0x58] sm:$0xff]
    %v2722 = vld [vmem:[#allocation9 + $0x60] sm:$0xff]
    %v2723 = vld [vmem:[#allocation9 + $0x68] sm:$0xff]
    %v2724 = vld [vmem:[#allocation9 + $0x70] sm:$0xff]
    %v2725 = vld [vmem:[#allocation9 + $0x78] sm:$0xff]
    %v2726 = vld [vmem:[#allocation9 + $0x80] sm:$0xff]
    %v2727 = vld [vmem:[#allocation9 + $0x88] sm:$0xff]
    %v2728 = vld [vmem:[#allocation9 + $0x90] sm:$0xff]
    %v2729 = vld [vmem:[#allocation9 + $0x98] sm:$0xff]
    %v2730 = vld [vmem:[#allocation9 + $0xa0] sm:$0xff]
    %v2731 = vld [vmem:[#allocation9 + $0xa8] sm:$0xff]
    %v2732 = vld [vmem:[#allocation9 + $0xb0] sm:$0xff]
    %v2733 = vld [vmem:[#allocation9 + $0xb8] sm:$0xff]
    %v2734 = vld [vmem:[#allocation9 + $0xc0] sm:$0xff]
    %v2735 = vld [vmem:[#allocation9 + $0xc8] sm:$0xff]
    %v2736 = vld [vmem:[#allocation9 + $0xd0] sm:$0xff]
    %v2737 = vld [vmem:[#allocation9 + $0xd8] sm:$0xff]
    %v2738 = vld [vmem:[#allocation9 + $0xe0] sm:$0xff]
    %v2739 = vld [vmem:[#allocation9 + $0xe8] sm:$0xff]
    %v2740 = vld [vmem:[#allocation9 + $0xf0] sm:$0xff]
    %v2741 = vld [vmem:[#allocation9 + $0xf8] sm:$0xff]
    %v2774 = vunpack.c.l.b16 %v2710
    %v2775 = vunpack.c.h.b16 %v2710
    %v2776 = vunpack.c.l.b16 %v2711
    %v2777 = vunpack.c.h.b16 %v2711
    %v2778 = vunpack.c.l.b16 %v2712
    %v2779 = vunpack.c.h.b16 %v2712
    %v2780 = vunpack.c.l.b16 %v2713
    %v2781 = vunpack.c.h.b16 %v2713
    %v2782 = vunpack.c.l.b16 %v2714
    %v2783 = vunpack.c.h.b16 %v2714
    %v2784 = vunpack.c.l.b16 %v2715
    %v2785 = vunpack.c.h.b16 %v2715
    %v2786 = vunpack.c.l.b16 %v2716
    %v2787 = vunpack.c.h.b16 %v2716
    %v2788 = vunpack.c.l.b16 %v2717
    %v2789 = vunpack.c.h.b16 %v2717
    %v2790 = vunpack.c.l.b16 %v2718
    %v2791 = vunpack.c.h.b16 %v2718
    %v2792 = vunpack.c.l.b16 %v2719
    %v2793 = vunpack.c.h.b16 %v2719
    %v2794 = vunpack.c.l.b16 %v2720
    %v2795 = vunpack.c.h.b16 %v2720
    %v2796 = vunpack.c.l.b16 %v2721
    %v2797 = vunpack.c.h.b16 %v2721
    %v2798 = vunpack.c.l.b16 %v2722
    %v2799 = vunpack.c.h.b16 %v2722
    %v2800 = vunpack.c.l.b16 %v2723
    %v2801 = vunpack.c.h.b16 %v2723
    %v2802 = vunpack.c.l.b16 %v2724
    %v2803 = vunpack.c.h.b16 %v2724
    %v2804 = vunpack.c.l.b16 %v2725
    %v2805 = vunpack.c.h.b16 %v2725
    %v2806 = vunpack.c.l.b16 %v2726
    %v2807 = vunpack.c.h.b16 %v2726
    %v2808 = vunpack.c.l.b16 %v2727
    %v2809 = vunpack.c.h.b16 %v2727
    %v2810 = vunpack.c.l.b16 %v2728
    %v2811 = vunpack.c.h.b16 %v2728
    %v2812 = vunpack.c.l.b16 %v2729
    %v2813 = vunpack.c.h.b16 %v2729
    %v2814 = vunpack.c.l.b16 %v2730
    %v2815 = vunpack.c.h.b16 %v2730
    %v2816 = vunpack.c.l.b16 %v2731
    %v2817 = vunpack.c.h.b16 %v2731
    %v2818 = vunpack.c.l.b16 %v2732
    %v2819 = vunpack.c.h.b16 %v2732
    %v2820 = vunpack.c.l.b16 %v2733
    %v2821 = vunpack.c.h.b16 %v2733
    %v2822 = vunpack.c.l.b16 %v2734
    %v2823 = vunpack.c.h.b16 %v2734
    %v2824 = vunpack.c.l.b16 %v2735
    %v2825 = vunpack.c.h.b16 %v2735
    %v2826 = vunpack.c.l.b16 %v2736
    %v2827 = vunpack.c.h.b16 %v2736
    %v2828 = vunpack.c.l.b16 %v2737
    %v2829 = vunpack.c.h.b16 %v2737
    %v2830 = vunpack.c.l.b16 %v2738
    %v2831 = vunpack.c.h.b16 %v2738
    %v2832 = vunpack.c.l.b16 %v2739
    %v2833 = vunpack.c.h.b16 %v2739
    %v2834 = vunpack.c.l.b16 %v2740
    %v2835 = vunpack.c.h.b16 %v2740
    %v2836 = vunpack.c.l.b16 %v2741
    %v2837 = vunpack.c.h.b16 %v2741
    %v2838 = vpack.c.b16 %v2778, %v2774
    %v2839 = vpack.c.b16 %v2779, %v2775
    %v2840 = vpack.c.b16 %v2780, %v2776
    %v2841 = vpack.c.b16 %v2781, %v2777
    %v2842 = vpack.c.b16 %v2786, %v2782
    %v2843 = vpack.c.b16 %v2787, %v2783
    %v2844 = vpack.c.b16 %v2788, %v2784
    %v2845 = vpack.c.b16 %v2789, %v2785
    %v2846 = vpack.c.b16 %v2794, %v2790
    %v2847 = vpack.c.b16 %v2795, %v2791
    %v2848 = vpack.c.b16 %v2796, %v2792
    %v2849 = vpack.c.b16 %v2797, %v2793
    %v2850 = vpack.c.b16 %v2802, %v2798
    %v2851 = vpack.c.b16 %v2803, %v2799
    %v2852 = vpack.c.b16 %v2804, %v2800
    %v2853 = vpack.c.b16 %v2805, %v2801
    %v2854 = vpack.c.b16 %v2810, %v2806
    %v2855 = vpack.c.b16 %v2811, %v2807
    %v2856 = vpack.c.b16 %v2812, %v2808
    %v2857 = vpack.c.b16 %v2813, %v2809
    %v2858 = vpack.c.b16 %v2818, %v2814
    %v2859 = vpack.c.b16 %v2819, %v2815
    %v2860 = vpack.c.b16 %v2820, %v2816
    %v2861 = vpack.c.b16 %v2821, %v2817
    %v2862 = vpack.c.b16 %v2826, %v2822
    %v2863 = vpack.c.b16 %v2827, %v2823
    %v2864 = vpack.c.b16 %v2828, %v2824
    %v2865 = vpack.c.b16 %v2829, %v2825
    %v2866 = vpack.c.b16 %v2834, %v2830
    %v2867 = vpack.c.b16 %v2835, %v2831
    %v2868 = vpack.c.b16 %v2836, %v2832
    %v2869 = vpack.c.b16 %v2837, %v2833
    %2902 = vmatprep.subr.bf16.mxu0 %v2839
    %2903 = vmatpush1.bf16.msra.mxu0 %v2838
    %2904 = vmatprep.subr.bf16.mxu0 %v2843
    %2905 = vmatpush1.bf16.msra.mxu0 %v2842
    %2906 = vmatprep.subr.bf16.mxu0 %v2847
    %2907 = vmatpush1.bf16.msra.mxu0 %v2846
    %2908 = vmatprep.subr.bf16.mxu0 %v2851
    %2909 = vmatpush1.bf16.msra.mxu0 %v2850
    %2910 = vmatprep.subr.bf16.mxu0 %v2855
    %2911 = vmatpush1.bf16.msra.mxu0 %v2854
    %2912 = vmatprep.subr.bf16.mxu0 %v2859
    %2913 = vmatpush1.bf16.msra.mxu0 %v2858
    %2914 = vmatprep.subr.bf16.mxu0 %v2863
    %2915 = vmatpush1.bf16.msra.mxu0 %v2862
    %2916 = vmatprep.subr.bf16.mxu0 %v2867
    %2917 = vmatpush1.bf16.msra.mxu0 %v2866
    %2918 = vmatprep.subr.bf16.mxu0 0
    %2919 = vmatpush1.bf16.msra.mxu0 0
    %2920 = vmatprep.subr.bf16.mxu0 0
    %2921 = vmatpush1.bf16.msra.mxu0 0
    %2922 = vmatprep.subr.bf16.mxu0 0
    %2923 = vmatpush1.bf16.msra.mxu0 0
    %2924 = vmatprep.subr.bf16.mxu0 0
    %2925 = vmatpush1.bf16.msra.mxu0 0
    %2926 = vmatprep.subr.bf16.mxu0 0
    %2927 = vmatpush1.bf16.msra.mxu0 0
    %2928 = vmatprep.subr.bf16.mxu0 0
    %2929 = vmatpush1.bf16.msra.mxu0 0
    %2930 = vmatprep.subr.bf16.mxu0 0
    %2931 = vmatpush1.bf16.msra.mxu0 0
    %2932 = vmatprep.subr.bf16.mxu0 0
    %2933 = vmatpush1.bf16.msra.mxu0 0
    %2934 = vmatprep.mubr.bf16.mxu0 0
    %2935 = vmatmul.mubr.bf16.gmra.mrb[0].mxu0 %v2709
    %v2936 = vpop.f32.mrb[0].mxu0
    %v2937 = vadd.f32 0.0, %v2936
    %v2938 = vpop.f32.mrb[0].mxu0
    %v2939 = vadd.f32 0.0, %v2938
    %v2940 = vpop.f32.mrb[0].mxu0
    %v2941 = vpop.f32.mrb[0].mxu0
    %2942 = vdwg.mxu0
    %2943 = vmatprep.subr.bf16.mxu0 %v2841
    %2944 = vmatpush1.bf16.msra.mxu0 %v2840
    %2945 = vmatprep.subr.bf16.mxu0 %v2845
    %2946 = vmatpush1.bf16.msra.mxu0 %v2844
    %2947 = vmatprep.subr.bf16.mxu0 %v2849
    %2948 = vmatpush1.bf16.msra.mxu0 %v2848
    %2949 = vmatprep.subr.bf16.mxu0 %v2853
    %2950 = vmatpush1.bf16.msra.mxu0 %v2852
    %2951 = vmatprep.subr.bf16.mxu0 %v2857
    %2952 = vmatpush1.bf16.msra.mxu0 %v2856
    %2953 = vmatprep.subr.bf16.mxu0 %v2861
    %2954 = vmatpush1.bf16.msra.mxu0 %v2860
    %2955 = vmatprep.subr.bf16.mxu0 %v2865
    %2956 = vmatpush1.bf16.msra.mxu0 %v2864
    %2957 = vmatprep.subr.bf16.mxu0 %v2869
    %2958 = vmatpush1.bf16.msra.mxu0 %v2868
    %2959 = vmatprep.subr.bf16.mxu0 0
    %2960 = vmatpush1.bf16.msra.mxu0 0
    %2961 = vmatprep.subr.bf16.mxu0 0
    %2962 = vmatpush1.bf16.msra.mxu0 0
    %2963 = vmatprep.subr.bf16.mxu0 0
    %2964 = vmatpush1.bf16.msra.mxu0 0
    %2965 = vmatprep.subr.bf16.mxu0 0
    %2966 = vmatpush1.bf16.msra.mxu0 0
    %2967 = vmatprep.subr.bf16.mxu0 0
    %2968 = vmatpush1.bf16.msra.mxu0 0
    %2969 = vmatprep.subr.bf16.mxu0 0
    %2970 = vmatpush1.bf16.msra.mxu0 0
    %2971 = vmatprep.subr.bf16.mxu0 0
    %2972 = vmatpush1.bf16.msra.mxu0 0
    %2973 = vmatprep.subr.bf16.mxu0 0
    %2974 = vmatpush1.bf16.msra.mxu0 0
    %2975 = vmatprep.mubr.bf16.mxu0 0
    %2976 = vmatmul.mubr.bf16.gmra.mrb[0].mxu0 %v2709
    %v2977 = vpop.f32.mrb[0].mxu0
    %v2978 = vadd.f32 0.0, %v2977
    %v2979 = vpop.f32.mrb[0].mxu0
    %v2980 = vadd.f32 0.0, %v2979
    %v2981 = vpop.f32.mrb[0].mxu0
    %v2982 = vpop.f32.mrb[0].mxu0
    %2983 = vdwg.mxu0
    %v2984 = vadd.f32 %v2705, %v2937
    %v2985 = vadd.f32 %v2706, %v2939
    %v2986 = vadd.f32 %v2707, %v2978
    %v2987 = vadd.f32 %v2708, %v2980
    %v2988 = vxor.u32 %v2984, 2147483648
    %v2989 = vxor.u32 %v2985, 2147483648
    %v2990 = vxor.u32 %v2986, 2147483648
    %v2991 = vmul.f32 %v2988, 1.442695
    %v2992 = vpow.pop %v2991
    %v2993 = vmul.f32 %v2989, 1.442695
    %v2994 = vpow.pop %v2993
    %v2995 = vmul.f32 %v2990, 1.442695
    %v2996 = vpow.pop %v2995
    %v2997 = vadd.f32 %v2992, 1.0
    %v2998 = vadd.f32 %v2994, 1.0
    %v2999 = vadd.f32 %v2996, 1.0
    %v3000 = vrcp.pop %v2997
    %v3001 = vmul.f32 1.0, %v3000
    %v3002 = vrcp.pop %v2998
    %v3003 = vmul.f32 1.0, %v3002
    %v3004 = vrcp.pop %v2999
    %v3005 = vmul.f32 1.0, %v3004
    %v3006 = vtanh.pop %v2987
    %v3007 = vmul.f32 %v3003, %v2697
    %v3008 = vmul.f32 %v3001, %v3006
    %v3009 = vadd.f32 %v3007, %v3008
    %v3010 = vtanh.pop %v3009
    %v3011 = vmul.f32 %v3005, %v3010
    %s3012 = scalar_lea.vmem [#allocation2], 56
    %3013 = vst [vmem:[%s3012] sm:$0xff] %v3011
    %v3014 = vld [vmem:[#allocation2] sm:$0xff]
    %v3015 = vld [vmem:[#allocation2 + $0x8] sm:$0xff]
    %v3016 = vld [vmem:[#allocation2 + $0x10] sm:$0xff]
    %v3017 = vld [vmem:[#allocation2 + $0x18] sm:$0xff]
    %v3018 = vld [vmem:[#allocation2 + $0x20] sm:$0xff]
    %v3019 = vld [vmem:[#allocation2 + $0x28] sm:$0xff]
    %v3020 = vld [vmem:[#allocation2 + $0x30] sm:$0xff]
    %v3021 = vld [vmem:[#allocation2 + $0x38] sm:$0xff]
    %v3022 = vpack.c.bf16 %v3015, %v3014
    %v3023 = vpack.c.bf16 %v3017, %v3016
    %v3024 = vpack.c.bf16 %v3019, %v3018
    %v3025 = vpack.c.bf16 %v3021, %v3020
    %v3026 = vld [vmem:[#allocation10] sm:$0xff]
    %v3027 = vld [vmem:[#allocation10 + $0x8] sm:$0xff]
    %v3028 = vld [vmem:[#allocation10 + $0x10] sm:$0xff]
    %v3029 = vld [vmem:[#allocation10 + $0x18] sm:$0xff]
    %v3030 = vld [vmem:[#allocation10 + $0x20] sm:$0xff]
    %v3031 = vld [vmem:[#allocation10 + $0x28] sm:$0xff]
    %v3032 = vld [vmem:[#allocation10 + $0x30] sm:$0xff]
    %v3033 = vld [vmem:[#allocation10 + $0x38] sm:$0xff]
    %v3034 = vld [vmem:[#allocation10 + $0x40] sm:$0xff]
    %v3035 = vld [vmem:[#allocation10 + $0x48] sm:$0xff]
    %v3036 = vld [vmem:[#allocation10 + $0x50] sm:$0xff]
    %v3037 = vld [vmem:[#allocation10 + $0x58] sm:$0xff]
    %v3038 = vld [vmem:[#allocation10 + $0x60] sm:$0xff]
    %v3039 = vld [vmem:[#allocation10 + $0x68] sm:$0xff]
    %v3040 = vld [vmem:[#allocation10 + $0x70] sm:$0xff]
    %v3041 = vld [vmem:[#allocation10 + $0x78] sm:$0xff]
    %v3042 = vld [vmem:[#allocation10 + $0x80] sm:$0xff]
    %v3043 = vld [vmem:[#allocation10 + $0x88] sm:$0xff]
    %v3044 = vld [vmem:[#allocation10 + $0x90] sm:$0xff]
    %v3045 = vld [vmem:[#allocation10 + $0x98] sm:$0xff]
    %v3046 = vld [vmem:[#allocation10 + $0xa0] sm:$0xff]
    %v3047 = vld [vmem:[#allocation10 + $0xa8] sm:$0xff]
    %v3048 = vld [vmem:[#allocation10 + $0xb0] sm:$0xff]
    %v3049 = vld [vmem:[#allocation10 + $0xb8] sm:$0xff]
    %v3050 = vld [vmem:[#allocation10 + $0xc0] sm:$0xff]
    %v3051 = vld [vmem:[#allocation10 + $0xc8] sm:$0xff]
    %v3052 = vld [vmem:[#allocation10 + $0xd0] sm:$0xff]
    %v3053 = vld [vmem:[#allocation10 + $0xd8] sm:$0xff]
    %v3054 = vld [vmem:[#allocation10 + $0xe0] sm:$0xff]
    %v3055 = vld [vmem:[#allocation10 + $0xe8] sm:$0xff]
    %v3056 = vld [vmem:[#allocation10 + $0xf0] sm:$0xff]
    %v3057 = vld [vmem:[#allocation10 + $0xf8] sm:$0xff]
    %v3058 = vld [vmem:[%s6] sm:$0xf]
    %v3060 = vlaneseq
    %v3061 = vshrl.u32 %v3060, 7
    %v3062 = vsub.s32 0, %v3061
    %v3063 = vrot.slane %v3058, %v3062
    %v3064 = vlaneseq
    %v3065 = vshrl.u32 %v3064, 7
    %v3066 = vsub.s32 1, %v3065
    %v3067 = vrot.slane %v3058, %v3066
    %v3068 = vlaneseq
    %v3069 = vshrl.u32 %v3068, 7
    %v3070 = vsub.s32 2, %v3069
    %v3071 = vrot.slane %v3058, %v3070
    %v3072 = vlaneseq
    %v3073 = vshrl.u32 %v3072, 7
    %v3074 = vsub.s32 3, %v3073
    %v3075 = vrot.slane %v3058, %v3074
    %v3112 = vunpack.c.l.b16 %v3026
    %v3113 = vunpack.c.h.b16 %v3026
    %v3114 = vunpack.c.l.b16 %v3027
    %v3115 = vunpack.c.h.b16 %v3027
    %v3116 = vunpack.c.l.b16 %v3028
    %v3117 = vunpack.c.h.b16 %v3028
    %v3118 = vunpack.c.l.b16 %v3029
    %v3119 = vunpack.c.h.b16 %v3029
    %v3120 = vunpack.c.l.b16 %v3030
    %v3121 = vunpack.c.h.b16 %v3030
    %v3122 = vunpack.c.l.b16 %v3031
    %v3123 = vunpack.c.h.b16 %v3031
    %v3124 = vunpack.c.l.b16 %v3032
    %v3125 = vunpack.c.h.b16 %v3032
    %v3126 = vunpack.c.l.b16 %v3033
    %v3127 = vunpack.c.h.b16 %v3033
    %v3128 = vunpack.c.l.b16 %v3034
    %v3129 = vunpack.c.h.b16 %v3034
    %v3130 = vunpack.c.l.b16 %v3035
    %v3131 = vunpack.c.h.b16 %v3035
    %v3132 = vunpack.c.l.b16 %v3036
    %v3133 = vunpack.c.h.b16 %v3036
    %v3134 = vunpack.c.l.b16 %v3037
    %v3135 = vunpack.c.h.b16 %v3037
    %v3136 = vunpack.c.l.b16 %v3038
    %v3137 = vunpack.c.h.b16 %v3038
    %v3138 = vunpack.c.l.b16 %v3039
    %v3139 = vunpack.c.h.b16 %v3039
    %v3140 = vunpack.c.l.b16 %v3040
    %v3141 = vunpack.c.h.b16 %v3040
    %v3142 = vunpack.c.l.b16 %v3041
    %v3143 = vunpack.c.h.b16 %v3041
    %v3144 = vunpack.c.l.b16 %v3042
    %v3145 = vunpack.c.h.b16 %v3042
    %v3146 = vunpack.c.l.b16 %v3043
    %v3147 = vunpack.c.h.b16 %v3043
    %v3148 = vunpack.c.l.b16 %v3044
    %v3149 = vunpack.c.h.b16 %v3044
    %v3150 = vunpack.c.l.b16 %v3045
    %v3151 = vunpack.c.h.b16 %v3045
    %v3152 = vunpack.c.l.b16 %v3046
    %v3153 = vunpack.c.h.b16 %v3046
    %v3154 = vunpack.c.l.b16 %v3047
    %v3155 = vunpack.c.h.b16 %v3047
    %v3156 = vunpack.c.l.b16 %v3048
    %v3157 = vunpack.c.h.b16 %v3048
    %v3158 = vunpack.c.l.b16 %v3049
    %v3159 = vunpack.c.h.b16 %v3049
    %v3160 = vunpack.c.l.b16 %v3050
    %v3161 = vunpack.c.h.b16 %v3050
    %v3162 = vunpack.c.l.b16 %v3051
    %v3163 = vunpack.c.h.b16 %v3051
    %v3164 = vunpack.c.l.b16 %v3052
    %v3165 = vunpack.c.h.b16 %v3052
    %v3166 = vunpack.c.l.b16 %v3053
    %v3167 = vunpack.c.h.b16 %v3053
    %v3168 = vunpack.c.l.b16 %v3054
    %v3169 = vunpack.c.h.b16 %v3054
    %v3170 = vunpack.c.l.b16 %v3055
    %v3171 = vunpack.c.h.b16 %v3055
    %v3172 = vunpack.c.l.b16 %v3056
    %v3173 = vunpack.c.h.b16 %v3056
    %v3174 = vunpack.c.l.b16 %v3057
    %v3175 = vunpack.c.h.b16 %v3057
    %v3176 = vpack.c.b16 %v3116, %v3112
    %v3177 = vpack.c.b16 %v3117, %v3113
    %v3178 = vpack.c.b16 %v3118, %v3114
    %v3179 = vpack.c.b16 %v3119, %v3115
    %v3180 = vpack.c.b16 %v3124, %v3120
    %v3181 = vpack.c.b16 %v3125, %v3121
    %v3182 = vpack.c.b16 %v3126, %v3122
    %v3183 = vpack.c.b16 %v3127, %v3123
    %v3184 = vpack.c.b16 %v3132, %v3128
    %v3185 = vpack.c.b16 %v3133, %v3129
    %v3186 = vpack.c.b16 %v3134, %v3130
    %v3187 = vpack.c.b16 %v3135, %v3131
    %v3188 = vpack.c.b16 %v3140, %v3136
    %v3189 = vpack.c.b16 %v3141, %v3137
    %v3190 = vpack.c.b16 %v3142, %v3138
    %v3191 = vpack.c.b16 %v3143, %v3139
    %v3192 = vpack.c.b16 %v3148, %v3144
    %v3193 = vpack.c.b16 %v3149, %v3145
    %v3194 = vpack.c.b16 %v3150, %v3146
    %v3195 = vpack.c.b16 %v3151, %v3147
    %v3196 = vpack.c.b16 %v3156, %v3152
    %v3197 = vpack.c.b16 %v3157, %v3153
    %v3198 = vpack.c.b16 %v3158, %v3154
    %v3199 = vpack.c.b16 %v3159, %v3155
    %v3200 = vpack.c.b16 %v3164, %v3160
    %v3201 = vpack.c.b16 %v3165, %v3161
    %v3202 = vpack.c.b16 %v3166, %v3162
    %v3203 = vpack.c.b16 %v3167, %v3163
    %v3204 = vpack.c.b16 %v3172, %v3168
    %v3205 = vpack.c.b16 %v3173, %v3169
    %v3206 = vpack.c.b16 %v3174, %v3170
    %v3207 = vpack.c.b16 %v3175, %v3171
    %3240 = vmatprep.subr.bf16.mxu0 %v3177
    %3241 = vmatpush1.bf16.msra.mxu0 %v3176
    %3242 = vmatprep.subr.bf16.mxu0 %v3181
    %3243 = vmatpush1.bf16.msra.mxu0 %v3180
    %3244 = vmatprep.subr.bf16.mxu0 %v3185
    %3245 = vmatpush1.bf16.msra.mxu0 %v3184
    %3246 = vmatprep.subr.bf16.mxu0 %v3189
    %3247 = vmatpush1.bf16.msra.mxu0 %v3188
    %3248 = vmatprep.subr.bf16.mxu0 %v3193
    %3249 = vmatpush1.bf16.msra.mxu0 %v3192
    %3250 = vmatprep.subr.bf16.mxu0 %v3197
    %3251 = vmatpush1.bf16.msra.mxu0 %v3196
    %3252 = vmatprep.subr.bf16.mxu0 %v3201
    %3253 = vmatpush1.bf16.msra.mxu0 %v3200
    %3254 = vmatprep.subr.bf16.mxu0 %v3205
    %3255 = vmatpush1.bf16.msra.mxu0 %v3204
    %3256 = vmatprep.subr.bf16.mxu0 0
    %3257 = vmatpush1.bf16.msra.mxu0 0
    %3258 = vmatprep.subr.bf16.mxu0 0
    %3259 = vmatpush1.bf16.msra.mxu0 0
    %3260 = vmatprep.subr.bf16.mxu0 0
    %3261 = vmatpush1.bf16.msra.mxu0 0
    %3262 = vmatprep.subr.bf16.mxu0 0
    %3263 = vmatpush1.bf16.msra.mxu0 0
    %3264 = vmatprep.subr.bf16.mxu0 0
    %3265 = vmatpush1.bf16.msra.mxu0 0
    %3266 = vmatprep.subr.bf16.mxu0 0
    %3267 = vmatpush1.bf16.msra.mxu0 0
    %3268 = vmatprep.subr.bf16.mxu0 0
    %3269 = vmatpush1.bf16.msra.mxu0 0
    %3270 = vmatprep.subr.bf16.mxu0 0
    %3271 = vmatpush1.bf16.msra.mxu0 0
    %3272 = vmatprep.mubr.bf16.mxu0 0
    %3273 = vmatmul.mubr.bf16.gmra.mrb[0].mxu0 %v3022
    %v3274 = vpop.f32.mrb[0].mxu0
    %v3275 = vadd.f32 %v3063, %v3274
    %v3276 = vpop.f32.mrb[0].mxu0
    %v3277 = vadd.f32 %v3067, %v3276
    %v3278 = vpop.f32.mrb[0].mxu0
    %v3279 = vadd.f32 %v3063, %v3278
    %v3280 = vpop.f32.mrb[0].mxu0
    %v3281 = vadd.f32 %v3067, %v3280
    %3282 = vmatprep.mubr.bf16.mxu0 0
    %3283 = vmatmul.mubr.bf16.gmra.mrb[0].mxu0 %v3023
    %v3284 = vpop.f32.mrb[0].mxu0
    %v3285 = vadd.f32 %v3063, %v3284
    %v3286 = vpop.f32.mrb[0].mxu0
    %v3287 = vadd.f32 %v3067, %v3286
    %v3288 = vpop.f32.mrb[0].mxu0
    %v3289 = vadd.f32 %v3063, %v3288
    %v3290 = vpop.f32.mrb[0].mxu0
    %v3291 = vadd.f32 %v3067, %v3290
    %3292 = vmatprep.mubr.bf16.mxu0 0
    %3293 = vmatmul.mubr.bf16.gmra.mrb[0].mxu0 %v3024
    %v3294 = vpop.f32.mrb[0].mxu0
    %v3295 = vadd.f32 %v3063, %v3294
    %v3296 = vpop.f32.mrb[0].mxu0
    %v3297 = vadd.f32 %v3067, %v3296
    %v3298 = vpop.f32.mrb[0].mxu0
    %v3299 = vadd.f32 %v3063, %v3298
    %v3300 = vpop.f32.mrb[0].mxu0
    %v3301 = vadd.f32 %v3067, %v3300
    %3302 = vmatprep.mubr.bf16.mxu0 0
    %3303 = vmatmul.mubr.bf16.gmra.mrb[0].mxu0 %v3025
    %v3304 = vpop.f32.mrb[0].mxu0
    %v3305 = vadd.f32 %v3063, %v3304
    %v3306 = vpop.f32.mrb[0].mxu0
    %v3307 = vadd.f32 %v3067, %v3306
    %v3308 = vpop.f32.mrb[0].mxu0
    %v3309 = vadd.f32 %v3063, %v3308
    %v3310 = vpop.f32.mrb[0].mxu0
    %v3311 = vadd.f32 %v3067, %v3310
    %3312 = vdwg.mxu0
    %3313 = vmatprep.subr.bf16.mxu0 %v3179
    %3314 = vmatpush1.bf16.msra.mxu0 %v3178
    %3315 = vmatprep.subr.bf16.mxu0 %v3183
    %3316 = vmatpush1.bf16.msra.mxu0 %v3182
    %3317 = vmatprep.subr.bf16.mxu0 %v3187
    %3318 = vmatpush1.bf16.msra.mxu0 %v3186
    %3319 = vmatprep.subr.bf16.mxu0 %v3191
    %3320 = vmatpush1.bf16.msra.mxu0 %v3190
    %3321 = vmatprep.subr.bf16.mxu0 %v3195
    %3322 = vmatpush1.bf16.msra.mxu0 %v3194
    %3323 = vmatprep.subr.bf16.mxu0 %v3199
    %3324 = vmatpush1.bf16.msra.mxu0 %v3198
    %3325 = vmatprep.subr.bf16.mxu0 %v3203
    %3326 = vmatpush1.bf16.msra.mxu0 %v3202
    %3327 = vmatprep.subr.bf16.mxu0 %v3207
    %3328 = vmatpush1.bf16.msra.mxu0 %v3206
    %3329 = vmatprep.subr.bf16.mxu0 0
    %3330 = vmatpush1.bf16.msra.mxu0 0
    %3331 = vmatprep.subr.bf16.mxu0 0
    %3332 = vmatpush1.bf16.msra.mxu0 0
    %3333 = vmatprep.subr.bf16.mxu0 0
    %3334 = vmatpush1.bf16.msra.mxu0 0
    %3335 = vmatprep.subr.bf16.mxu0 0
    %3336 = vmatpush1.bf16.msra.mxu0 0
    %3337 = vmatprep.subr.bf16.mxu0 0
    %3338 = vmatpush1.bf16.msra.mxu0 0
    %3339 = vmatprep.subr.bf16.mxu0 0
    %3340 = vmatpush1.bf16.msra.mxu0 0
    %3341 = vmatprep.subr.bf16.mxu0 0
    %3342 = vmatpush1.bf16.msra.mxu0 0
    %3343 = vmatprep.subr.bf16.mxu0 0
    %3344 = vmatpush1.bf16.msra.mxu0 0
    %3345 = vmatprep.mubr.bf16.mxu0 0
    %3346 = vmatmul.mubr.bf16.gmra.mrb[0].mxu0 %v3022
    %v3347 = vpop.f32.mrb[0].mxu0
    %v3348 = vadd.f32 %v3071, %v3347
    %v3349 = vpop.f32.mrb[0].mxu0
    %v3350 = vadd.f32 %v3075, %v3349
    %v3351 = vpop.f32.mrb[0].mxu0
    %v3352 = vadd.f32 %v3071, %v3351
    %v3353 = vpop.f32.mrb[0].mxu0
    %v3354 = vadd.f32 %v3075, %v3353
    %3355 = vmatprep.mubr.bf16.mxu0 0
    %3356 = vmatmul.mubr.bf16.gmra.mrb[0].mxu0 %v3023
    %v3357 = vpop.f32.mrb[0].mxu0
    %v3358 = vadd.f32 %v3071, %v3357
    %v3359 = vpop.f32.mrb[0].mxu0
    %v3360 = vadd.f32 %v3075, %v3359
    %v3361 = vpop.f32.mrb[0].mxu0
    %v3362 = vadd.f32 %v3071, %v3361
    %v3363 = vpop.f32.mrb[0].mxu0
    %v3364 = vadd.f32 %v3075, %v3363
    %3365 = vmatprep.mubr.bf16.mxu0 0
    %3366 = vmatmul.mubr.bf16.gmra.mrb[0].mxu0 %v3024
    %v3367 = vpop.f32.mrb[0].mxu0
    %v3368 = vadd.f32 %v3071, %v3367
    %v3369 = vpop.f32.mrb[0].mxu0
    %v3370 = vadd.f32 %v3075, %v3369
    %v3371 = vpop.f32.mrb[0].mxu0
    %v3372 = vadd.f32 %v3071, %v3371
    %v3373 = vpop.f32.mrb[0].mxu0
    %v3374 = vadd.f32 %v3075, %v3373
    %3375 = vmatprep.mubr.bf16.mxu0 0
    %3376 = vmatmul.mubr.bf16.gmra.mrb[0].mxu0 %v3025
    %v3377 = vpop.f32.mrb[0].mxu0
    %v3378 = vadd.f32 %v3071, %v3377
    %v3379 = vpop.f32.mrb[0].mxu0
    %v3380 = vadd.f32 %v3075, %v3379
    %v3381 = vpop.f32.mrb[0].mxu0
    %v3382 = vadd.f32 %v3071, %v3381
    %v3383 = vpop.f32.mrb[0].mxu0
    %v3384 = vadd.f32 %v3075, %v3383
    %3385 = vdwg.mxu0
    %3386 = vst [vmem:[#allocation3] sm:$0xff] %v3275
    %3387 = vst [vmem:[#allocation3 + $0x8] sm:$0xff] %v3277
    %3388 = vst [vmem:[#allocation3 + $0x10] sm:$0xff] %v3348
    %3389 = vst [vmem:[#allocation3 + $0x18] sm:$0xff] %v3350
    %3390 = vst [vmem:[#allocation3 + $0x20] sm:$0xff] %v3279
    %3391 = vst [vmem:[#allocation3 + $0x28] sm:$0xff] %v3281
    %3392 = vst [vmem:[#allocation3 + $0x30] sm:$0xff] %v3352
    %3393 = vst [vmem:[#allocation3 + $0x38] sm:$0xff] %v3354
    %3394 = vst [vmem:[#allocation3 + $0x40] sm:$0xff] %v3285
    %3395 = vst [vmem:[#allocation3 + $0x48] sm:$0xff] %v3287
    %3396 = vst [vmem:[#allocation3 + $0x50] sm:$0xff] %v3358
    %3397 = vst [vmem:[#allocation3 + $0x58] sm:$0xff] %v3360
    %3398 = vst [vmem:[#allocation3 + $0x60] sm:$0xff] %v3289
    %3399 = vst [vmem:[#allocation3 + $0x68] sm:$0xff] %v3291
    %3400 = vst [vmem:[#allocation3 + $0x70] sm:$0xff] %v3362
    %3401 = vst [vmem:[#allocation3 + $0x78] sm:$0xff] %v3364
    %3402 = vst [vmem:[#allocation3 + $0x80] sm:$0xff] %v3295
    %3403 = vst [vmem:[#allocation3 + $0x88] sm:$0xff] %v3297
    %3404 = vst [vmem:[#allocation3 + $0x90] sm:$0xff] %v3368
    %3405 = vst [vmem:[#allocation3 + $0x98] sm:$0xff] %v3370
    %3406 = vst [vmem:[#allocation3 + $0xa0] sm:$0xff] %v3299
    %3407 = vst [vmem:[#allocation3 + $0xa8] sm:$0xff] %v3301
    %3408 = vst [vmem:[#allocation3 + $0xb0] sm:$0xff] %v3372
    %3409 = vst [vmem:[#allocation3 + $0xb8] sm:$0xff] %v3374
    %3410 = vst [vmem:[#allocation3 + $0xc0] sm:$0xff] %v3305
    %3411 = vst [vmem:[#allocation3 + $0xc8] sm:$0xff] %v3307
    %3412 = vst [vmem:[#allocation3 + $0xd0] sm:$0xff] %v3378
    %3413 = vst [vmem:[#allocation3 + $0xd8] sm:$0xff] %v3380
    %3414 = vst [vmem:[#allocation3 + $0xe0] sm:$0xff] %v3309
    %3415 = vst [vmem:[#allocation3 + $0xe8] sm:$0xff] %v3311
    %3416 = vst [vmem:[#allocation3 + $0xf0] sm:$0xff] %v3382
    %3417 = vst [vmem:[#allocation3 + $0xf8] sm:$0xff] %v3384
    %v3418 = vld [vmem:[%s522] sm:$0xff]
    %v3419 = vld [vmem:[%s522 + $0x8] sm:$0xff]
    %v3420 = vld [vmem:[%s522 + $0x10] sm:$0xff]
    %v3421 = vld [vmem:[%s522 + $0x18] sm:$0xff]
    %v3422 = vld [vmem:[#allocation12] sm:$0xff]
    %v3423 = vld [vmem:[#allocation12 + $0x8] sm:$0xff]
    %v3424 = vld [vmem:[#allocation12 + $0x10] sm:$0xff]
    %v3425 = vld [vmem:[#allocation12 + $0x18] sm:$0xff]
    %v3426 = vld [vmem:[#allocation12 + $0x20] sm:$0xff]
    %v3427 = vld [vmem:[#allocation12 + $0x28] sm:$0xff]
    %v3428 = vld [vmem:[#allocation12 + $0x30] sm:$0xff]
    %v3429 = vld [vmem:[#allocation12 + $0x38] sm:$0xff]
    %v3430 = vld [vmem:[#allocation12 + $0x40] sm:$0xff]
    %v3431 = vld [vmem:[#allocation12 + $0x48] sm:$0xff]
    %v3432 = vld [vmem:[#allocation12 + $0x50] sm:$0xff]
    %v3433 = vld [vmem:[#allocation12 + $0x58] sm:$0xff]
    %v3434 = vld [vmem:[#allocation12 + $0x60] sm:$0xff]
    %v3435 = vld [vmem:[#allocation12 + $0x68] sm:$0xff]
    %v3436 = vld [vmem:[#allocation12 + $0x70] sm:$0xff]
    %v3437 = vld [vmem:[#allocation12 + $0x78] sm:$0xff]
    %v3438 = vld [vmem:[#allocation12 + $0x80] sm:$0xff]
    %v3439 = vld [vmem:[#allocation12 + $0x88] sm:$0xff]
    %v3440 = vld [vmem:[#allocation12 + $0x90] sm:$0xff]
    %v3441 = vld [vmem:[#allocation12 + $0x98] sm:$0xff]
    %v3442 = vld [vmem:[#allocation12 + $0xa0] sm:$0xff]
    %v3443 = vld [vmem:[#allocation12 + $0xa8] sm:$0xff]
    %v3444 = vld [vmem:[#allocation12 + $0xb0] sm:$0xff]
    %v3445 = vld [vmem:[#allocation12 + $0xb8] sm:$0xff]
    %v3446 = vld [vmem:[#allocation12 + $0xc0] sm:$0xff]
    %v3447 = vld [vmem:[#allocation12 + $0xc8] sm:$0xff]
    %v3448 = vld [vmem:[#allocation12 + $0xd0] sm:$0xff]
    %v3449 = vld [vmem:[#allocation12 + $0xd8] sm:$0xff]
    %v3450 = vld [vmem:[#allocation12 + $0xe0] sm:$0xff]
    %v3451 = vld [vmem:[#allocation12 + $0xe8] sm:$0xff]
    %v3452 = vld [vmem:[#allocation12 + $0xf0] sm:$0xff]
    %v3453 = vld [vmem:[#allocation12 + $0xf8] sm:$0xff]
    %v3486 = vunpack.c.l.b16 %v3422
    %v3487 = vunpack.c.h.b16 %v3422
    %v3488 = vunpack.c.l.b16 %v3423
    %v3489 = vunpack.c.h.b16 %v3423
    %v3490 = vunpack.c.l.b16 %v3424
    %v3491 = vunpack.c.h.b16 %v3424
    %v3492 = vunpack.c.l.b16 %v3425
    %v3493 = vunpack.c.h.b16 %v3425
    %v3494 = vunpack.c.l.b16 %v3426
    %v3495 = vunpack.c.h.b16 %v3426
    %v3496 = vunpack.c.l.b16 %v3427
    %v3497 = vunpack.c.h.b16 %v3427
    %v3498 = vunpack.c.l.b16 %v3428
    %v3499 = vunpack.c.h.b16 %v3428
    %v3500 = vunpack.c.l.b16 %v3429
    %v3501 = vunpack.c.h.b16 %v3429
    %v3502 = vunpack.c.l.b16 %v3430
    %v3503 = vunpack.c.h.b16 %v3430
    %v3504 = vunpack.c.l.b16 %v3431
    %v3505 = vunpack.c.h.b16 %v3431
    %v3506 = vunpack.c.l.b16 %v3432
    %v3507 = vunpack.c.h.b16 %v3432
    %v3508 = vunpack.c.l.b16 %v3433
    %v3509 = vunpack.c.h.b16 %v3433
    %v3510 = vunpack.c.l.b16 %v3434
    %v3511 = vunpack.c.h.b16 %v3434
    %v3512 = vunpack.c.l.b16 %v3435
    %v3513 = vunpack.c.h.b16 %v3435
    %v3514 = vunpack.c.l.b16 %v3436
    %v3515 = vunpack.c.h.b16 %v3436
    %v3516 = vunpack.c.l.b16 %v3437
    %v3517 = vunpack.c.h.b16 %v3437
    %v3518 = vunpack.c.l.b16 %v3438
    %v3519 = vunpack.c.h.b16 %v3438
    %v3520 = vunpack.c.l.b16 %v3439
    %v3521 = vunpack.c.h.b16 %v3439
    %v3522 = vunpack.c.l.b16 %v3440
    %v3523 = vunpack.c.h.b16 %v3440
    %v3524 = vunpack.c.l.b16 %v3441
    %v3525 = vunpack.c.h.b16 %v3441
    %v3526 = vunpack.c.l.b16 %v3442
    %v3527 = vunpack.c.h.b16 %v3442
    %v3528 = vunpack.c.l.b16 %v3443
    %v3529 = vunpack.c.h.b16 %v3443
    %v3530 = vunpack.c.l.b16 %v3444
    %v3531 = vunpack.c.h.b16 %v3444
    %v3532 = vunpack.c.l.b16 %v3445
    %v3533 = vunpack.c.h.b16 %v3445
    %v3534 = vunpack.c.l.b16 %v3446
    %v3535 = vunpack.c.h.b16 %v3446
    %v3536 = vunpack.c.l.b16 %v3447
    %v3537 = vunpack.c.h.b16 %v3447
    %v3538 = vunpack.c.l.b16 %v3448
    %v3539 = vunpack.c.h.b16 %v3448
    %v3540 = vunpack.c.l.b16 %v3449
    %v3541 = vunpack.c.h.b16 %v3449
    %v3542 = vunpack.c.l.b16 %v3450
    %v3543 = vunpack.c.h.b16 %v3450
    %v3544 = vunpack.c.l.b16 %v3451
    %v3545 = vunpack.c.h.b16 %v3451
    %v3546 = vunpack.c.l.b16 %v3452
    %v3547 = vunpack.c.h.b16 %v3452
    %v3548 = vunpack.c.l.b16 %v3453
    %v3549 = vunpack.c.h.b16 %v3453
    %v3550 = vpack.c.b16 %v3490, %v3486
    %v3551 = vpack.c.b16 %v3491, %v3487
    %v3552 = vpack.c.b16 %v3492, %v3488
    %v3553 = vpack.c.b16 %v3493, %v3489
    %v3554 = vpack.c.b16 %v3498, %v3494
    %v3555 = vpack.c.b16 %v3499, %v3495
    %v3556 = vpack.c.b16 %v3500, %v3496
    %v3557 = vpack.c.b16 %v3501, %v3497
    %v3558 = vpack.c.b16 %v3506, %v3502
    %v3559 = vpack.c.b16 %v3507, %v3503
    %v3560 = vpack.c.b16 %v3508, %v3504
    %v3561 = vpack.c.b16 %v3509, %v3505
    %v3562 = vpack.c.b16 %v3514, %v3510
    %v3563 = vpack.c.b16 %v3515, %v3511
    %v3564 = vpack.c.b16 %v3516, %v3512
    %v3565 = vpack.c.b16 %v3517, %v3513
    %v3566 = vpack.c.b16 %v3522, %v3518
    %v3567 = vpack.c.b16 %v3523, %v3519
    %v3568 = vpack.c.b16 %v3524, %v3520
    %v3569 = vpack.c.b16 %v3525, %v3521
    %v3570 = vpack.c.b16 %v3530, %v3526
    %v3571 = vpack.c.b16 %v3531, %v3527
    %v3572 = vpack.c.b16 %v3532, %v3528
    %v3573 = vpack.c.b16 %v3533, %v3529
    %v3574 = vpack.c.b16 %v3538, %v3534
    %v3575 = vpack.c.b16 %v3539, %v3535
    %v3576 = vpack.c.b16 %v3540, %v3536
    %v3577 = vpack.c.b16 %v3541, %v3537
    %v3578 = vpack.c.b16 %v3546, %v3542
    %v3579 = vpack.c.b16 %v3547, %v3543
    %v3580 = vpack.c.b16 %v3548, %v3544
    %v3581 = vpack.c.b16 %v3549, %v3545
    %3614 = vmatprep.subr.bf16.mxu0 %v3551
    %3615 = vmatpush1.bf16.msra.mxu0 %v3550
    %3616 = vmatprep.subr.bf16.mxu0 %v3555
    %3617 = vmatpush1.bf16.msra.mxu0 %v3554
    %3618 = vmatprep.subr.bf16.mxu0 %v3559
    %3619 = vmatpush1.bf16.msra.mxu0 %v3558
    %3620 = vmatprep.subr.bf16.mxu0 %v3563
    %3621 = vmatpush1.bf16.msra.mxu0 %v3562
    %3622 = vmatprep.subr.bf16.mxu0 %v3567
    %3623 = vmatpush1.bf16.msra.mxu0 %v3566
    %3624 = vmatprep.subr.bf16.mxu0 %v3571
    %3625 = vmatpush1.bf16.msra.mxu0 %v3570
    %3626 = vmatprep.subr.bf16.mxu0 %v3575
    %3627 = vmatpush1.bf16.msra.mxu0 %v3574
    %3628 = vmatprep.subr.bf16.mxu0 %v3579
    %3629 = vmatpush1.bf16.msra.mxu0 %v3578
    %3630 = vmatprep.subr.bf16.mxu0 0
    %3631 = vmatpush1.bf16.msra.mxu0 0
    %3632 = vmatprep.subr.bf16.mxu0 0
    %3633 = vmatpush1.bf16.msra.mxu0 0
    %3634 = vmatprep.subr.bf16.mxu0 0
    %3635 = vmatpush1.bf16.msra.mxu0 0
    %3636 = vmatprep.subr.bf16.mxu0 0
    %3637 = vmatpush1.bf16.msra.mxu0 0
    %3638 = vmatprep.subr.bf16.mxu0 0
    %3639 = vmatpush1.bf16.msra.mxu0 0
    %3640 = vmatprep.subr.bf16.mxu0 0
    %3641 = vmatpush1.bf16.msra.mxu0 0
    %3642 = vmatprep.subr.bf16.mxu0 0
    %3643 = vmatpush1.bf16.msra.mxu0 0
    %3644 = vmatprep.subr.bf16.mxu0 0
    %3645 = vmatpush1.bf16.msra.mxu0 0
    %3646 = vmatprep.mubr.bf16.mxu0 0
    %3647 = vmatmul.mubr.bf16.gmra.mrb[0].mxu0 0
    %v3648 = vpop.f32.mrb[0].mxu0
    %v3649 = vadd.f32 0.0, %v3648
    %v3650 = vpop.f32.mrb[0].mxu0
    %v3651 = vadd.f32 0.0, %v3650
    %v3652 = vpop.f32.mrb[0].mxu0
    %v3653 = vpop.f32.mrb[0].mxu0
    %3654 = vdwg.mxu0
    %3655 = vmatprep.subr.bf16.mxu0 %v3553
    %3656 = vmatpush1.bf16.msra.mxu0 %v3552
    %3657 = vmatprep.subr.bf16.mxu0 %v3557
    %3658 = vmatpush1.bf16.msra.mxu0 %v3556
    %3659 = vmatprep.subr.bf16.mxu0 %v3561
    %3660 = vmatpush1.bf16.msra.mxu0 %v3560
    %3661 = vmatprep.subr.bf16.mxu0 %v3565
    %3662 = vmatpush1.bf16.msra.mxu0 %v3564
    %3663 = vmatprep.subr.bf16.mxu0 %v3569
    %3664 = vmatpush1.bf16.msra.mxu0 %v3568
    %3665 = vmatprep.subr.bf16.mxu0 %v3573
    %3666 = vmatpush1.bf16.msra.mxu0 %v3572
    %3667 = vmatprep.subr.bf16.mxu0 %v3577
    %3668 = vmatpush1.bf16.msra.mxu0 %v3576
    %3669 = vmatprep.subr.bf16.mxu0 %v3581
    %3670 = vmatpush1.bf16.msra.mxu0 %v3580
    %3671 = vmatprep.subr.bf16.mxu0 0
    %3672 = vmatpush1.bf16.msra.mxu0 0
    %3673 = vmatprep.subr.bf16.mxu0 0
    %3674 = vmatpush1.bf16.msra.mxu0 0
    %3675 = vmatprep.subr.bf16.mxu0 0
    %3676 = vmatpush1.bf16.msra.mxu0 0
    %3677 = vmatprep.subr.bf16.mxu0 0
    %3678 = vmatpush1.bf16.msra.mxu0 0
    %3679 = vmatprep.subr.bf16.mxu0 0
    %3680 = vmatpush1.bf16.msra.mxu0 0
    %3681 = vmatprep.subr.bf16.mxu0 0
    %3682 = vmatpush1.bf16.msra.mxu0 0
    %3683 = vmatprep.subr.bf16.mxu0 0
    %3684 = vmatpush1.bf16.msra.mxu0 0
    %3685 = vmatprep.subr.bf16.mxu0 0
    %3686 = vmatpush1.bf16.msra.mxu0 0
    %3687 = vmatprep.mubr.bf16.mxu0 0
    %3688 = vmatmul.mubr.bf16.gmra.mrb[0].mxu0 0
    %v3689 = vpop.f32.mrb[0].mxu0
    %v3690 = vadd.f32 0.0, %v3689
    %v3691 = vpop.f32.mrb[0].mxu0
    %v3692 = vadd.f32 0.0, %v3691
    %v3693 = vpop.f32.mrb[0].mxu0
    %v3694 = vpop.f32.mrb[0].mxu0
    %3695 = vdwg.mxu0
    %v3696 = vadd.f32 %v3418, %v3649
    %v3697 = vadd.f32 %v3419, %v3651
    %v3698 = vadd.f32 %v3420, %v3690
    %v3699 = vadd.f32 %v3421, %v3692
    %v3700 = vxor.u32 %v3696, 2147483648
    %v3701 = vxor.u32 %v3697, 2147483648
    %v3702 = vxor.u32 %v3698, 2147483648
    %v3703 = vmul.f32 %v3700, 1.442695
    %v3704 = vpow.pop %v3703
    %v3705 = vmul.f32 %v3701, 1.442695
    %v3706 = vpow.pop %v3705
    %v3707 = vmul.f32 %v3702, 1.442695
    %v3708 = vpow.pop %v3707
    %v3709 = vadd.f32 %v3704, 1.0
    %v3710 = vadd.f32 %v3706, 1.0
    %v3711 = vadd.f32 %v3708, 1.0
    %v3712 = vrcp.pop %v3709
    %v3713 = vmul.f32 1.0, %v3712
    %v3714 = vrcp.pop %v3710
    %v3715 = vmul.f32 1.0, %v3714
    %v3716 = vrcp.pop %v3711
    %v3717 = vmul.f32 1.0, %v3716
    %v3718 = vtanh.pop %v3699
    %v3719 = vmul.f32 %v3715, 0.0
    %v3720 = vmul.f32 %v3713, %v3718
    %v3721 = vadd.f32 %v3719, %v3720
    %v3722 = vtanh.pop %v3721
    %v3723 = vmul.f32 %v3717, %v3722
    %v3724 = vld [vmem:[%s832] sm:$0xff]
    %v3725 = vld [vmem:[%s832 + $0x8] sm:$0xff]
    %v3726 = vld [vmem:[%s832 + $0x10] sm:$0xff]
    %v3727 = vld [vmem:[%s832 + $0x18] sm:$0xff]
    %v3728 = vpack.c.bf16 %v3723, %v3723
    %3729 = vmatprep.subr.bf16.mxu0 %v3551
    %3730 = vmatpush1.bf16.msra.mxu0 %v3550
    %3731 = vmatprep.subr.bf16.mxu0 %v3555
    %3732 = vmatpush1.bf16.msra.mxu0 %v3554
    %3733 = vmatprep.subr.bf16.mxu0 %v3559
    %3734 = vmatpush1.bf16.msra.mxu0 %v3558
    %3735 = vmatprep.subr.bf16.mxu0 %v3563
    %3736 = vmatpush1.bf16.msra.mxu0 %v3562
    %3737 = vmatprep.subr.bf16.mxu0 %v3567
    %3738 = vmatpush1.bf16.msra.mxu0 %v3566
    %3739 = vmatprep.subr.bf16.mxu0 %v3571
    %3740 = vmatpush1.bf16.msra.mxu0 %v3570
    %3741 = vmatprep.subr.bf16.mxu0 %v3575
    %3742 = vmatpush1.bf16.msra.mxu0 %v3574
    %3743 = vmatprep.subr.bf16.mxu0 %v3579
    %3744 = vmatpush1.bf16.msra.mxu0 %v3578
    %3745 = vmatprep.subr.bf16.mxu0 0
    %3746 = vmatpush1.bf16.msra.mxu0 0
    %3747 = vmatprep.subr.bf16.mxu0 0
    %3748 = vmatpush1.bf16.msra.mxu0 0
    %3749 = vmatprep.subr.bf16.mxu0 0
    %3750 = vmatpush1.bf16.msra.mxu0 0
    %3751 = vmatprep.subr.bf16.mxu0 0
    %3752 = vmatpush1.bf16.msra.mxu0 0
    %3753 = vmatprep.subr.bf16.mxu0 0
    %3754 = vmatpush1.bf16.msra.mxu0 0
    %3755 = vmatprep.subr.bf16.mxu0 0
    %3756 = vmatpush1.bf16.msra.mxu0 0
    %3757 = vmatprep.subr.bf16.mxu0 0
    %3758 = vmatpush1.bf16.msra.mxu0 0
    %3759 = vmatprep.subr.bf16.mxu0 0
    %3760 = vmatpush1.bf16.msra.mxu0 0
    %3761 = vmatprep.mubr.bf16.mxu0 0
    %3762 = vmatmul.mubr.bf16.gmra.mrb[0].mxu0 %v3728
    %v3763 = vpop.f32.mrb[0].mxu0
    %v3764 = vadd.f32 0.0, %v3763
    %v3765 = vpop.f32.mrb[0].mxu0
    %v3766 = vadd.f32 0.0, %v3765
    %v3767 = vpop.f32.mrb[0].mxu0
    %v3768 = vpop.f32.mrb[0].mxu0
    %3769 = vdwg.mxu0
    %3770 = vmatprep.subr.bf16.mxu0 %v3553
    %3771 = vmatpush1.bf16.msra.mxu0 %v3552
    %3772 = vmatprep.subr.bf16.mxu0 %v3557
    %3773 = vmatpush1.bf16.msra.mxu0 %v3556
    %3774 = vmatprep.subr.bf16.mxu0 %v3561
    %3775 = vmatpush1.bf16.msra.mxu0 %v3560
    %3776 = vmatprep.subr.bf16.mxu0 %v3565
    %3777 = vmatpush1.bf16.msra.mxu0 %v3564
    %3778 = vmatprep.subr.bf16.mxu0 %v3569
    %3779 = vmatpush1.bf16.msra.mxu0 %v3568
    %3780 = vmatprep.subr.bf16.mxu0 %v3573
    %3781 = vmatpush1.bf16.msra.mxu0 %v3572
    %3782 = vmatprep.subr.bf16.mxu0 %v3577
    %3783 = vmatpush1.bf16.msra.mxu0 %v3576
    %3784 = vmatprep.subr.bf16.mxu0 %v3581
    %3785 = vmatpush1.bf16.msra.mxu0 %v3580
    %3786 = vmatprep.subr.bf16.mxu0 0
    %3787 = vmatpush1.bf16.msra.mxu0 0
    %3788 = vmatprep.subr.bf16.mxu0 0
    %3789 = vmatpush1.bf16.msra.mxu0 0
    %3790 = vmatprep.subr.bf16.mxu0 0
    %3791 = vmatpush1.bf16.msra.mxu0 0
    %3792 = vmatprep.subr.bf16.mxu0 0
    %3793 = vmatpush1.bf16.msra.mxu0 0
    %3794 = vmatprep.subr.bf16.mxu0 0
    %3795 = vmatpush1.bf16.msra.mxu0 0
    %3796 = vmatprep.subr.bf16.mxu0 0
    %3797 = vmatpush1.bf16.msra.mxu0 0
    %3798 = vmatprep.subr.bf16.mxu0 0
    %3799 = vmatpush1.bf16.msra.mxu0 0
    %3800 = vmatprep.subr.bf16.mxu0 0
    %3801 = vmatpush1.bf16.msra.mxu0 0
    %3802 = vmatprep.mubr.bf16.mxu0 0
    %3803 = vmatmul.mubr.bf16.gmra.mrb[0].mxu0 %v3728
    %v3804 = vpop.f32.mrb[0].mxu0
    %v3805 = vadd.f32 0.0, %v3804
    %v3806 = vpop.f32.mrb[0].mxu0
    %v3807 = vadd.f32 0.0, %v3806
    %v3808 = vpop.f32.mrb[0].mxu0
    %v3809 = vpop.f32.mrb[0].mxu0
    %3810 = vdwg.mxu0
    %v3811 = vadd.f32 %v3724, %v3764
    %v3812 = vadd.f32 %v3725, %v3766
    %v3813 = vadd.f32 %v3726, %v3805
    %v3814 = vadd.f32 %v3727, %v3807
    %v3815 = vxor.u32 %v3811, 2147483648
    %v3816 = vxor.u32 %v3812, 2147483648
    %v3817 = vxor.u32 %v3813, 2147483648
    %v3818 = vmul.f32 %v3815, 1.442695
    %v3819 = vpow.pop %v3818
    %v3820 = vmul.f32 %v3816, 1.442695
    %v3821 = vpow.pop %v3820
    %v3822 = vmul.f32 %v3817, 1.442695
    %v3823 = vpow.pop %v3822
    %v3824 = vadd.f32 %v3819, 1.0
    %v3825 = vadd.f32 %v3821, 1.0
    %v3826 = vadd.f32 %v3823, 1.0
    %v3827 = vrcp.pop %v3824
    %v3828 = vmul.f32 1.0, %v3827
    %v3829 = vrcp.pop %v3825
    %v3830 = vmul.f32 1.0, %v3829
    %v3831 = vrcp.pop %v3826
    %v3832 = vmul.f32 1.0, %v3831
    %v3833 = vtanh.pop %v3814
    %v3834 = vmul.f32 %v3830, %v3721
    %v3835 = vmul.f32 %v3828, %v3833
    %v3836 = vadd.f32 %v3834, %v3835
    %v3837 = vtanh.pop %v3836
    %v3838 = vmul.f32 %v3832, %v3837
    %v3839 = vld [vmem:[%s1144] sm:$0xff]
    %v3840 = vld [vmem:[%s1144 + $0x8] sm:$0xff]
    %v3841 = vld [vmem:[%s1144 + $0x10] sm:$0xff]
    %v3842 = vld [vmem:[%s1144 + $0x18] sm:$0xff]
    %v3843 = vpack.c.bf16 %v3838, %v3838
    %3844 = vmatprep.subr.bf16.mxu0 %v3551
    %3845 = vmatpush1.bf16.msra.mxu0 %v3550
    %3846 = vmatprep.subr.bf16.mxu0 %v3555
    %3847 = vmatpush1.bf16.msra.mxu0 %v3554
    %3848 = vmatprep.subr.bf16.mxu0 %v3559
    %3849 = vmatpush1.bf16.msra.mxu0 %v3558
    %3850 = vmatprep.subr.bf16.mxu0 %v3563
    %3851 = vmatpush1.bf16.msra.mxu0 %v3562
    %3852 = vmatprep.subr.bf16.mxu0 %v3567
    %3853 = vmatpush1.bf16.msra.mxu0 %v3566
    %3854 = vmatprep.subr.bf16.mxu0 %v3571
    %3855 = vmatpush1.bf16.msra.mxu0 %v3570
    %3856 = vmatprep.subr.bf16.mxu0 %v3575
    %3857 = vmatpush1.bf16.msra.mxu0 %v3574
    %3858 = vmatprep.subr.bf16.mxu0 %v3579
    %3859 = vmatpush1.bf16.msra.mxu0 %v3578
    %3860 = vmatprep.subr.bf16.mxu0 0
    %3861 = vmatpush1.bf16.msra.mxu0 0
    %3862 = vmatprep.subr.bf16.mxu0 0
    %3863 = vmatpush1.bf16.msra.mxu0 0
    %3864 = vmatprep.subr.bf16.mxu0 0
    %3865 = vmatpush1.bf16.msra.mxu0 0
    %3866 = vmatprep.subr.bf16.mxu0 0
    %3867 = vmatpush1.bf16.msra.mxu0 0
    %3868 = vmatprep.subr.bf16.mxu0 0
    %3869 = vmatpush1.bf16.msra.mxu0 0
    %3870 = vmatprep.subr.bf16.mxu0 0
    %3871 = vmatpush1.bf16.msra.mxu0 0
    %3872 = vmatprep.subr.bf16.mxu0 0
    %3873 = vmatpush1.bf16.msra.mxu0 0
    %3874 = vmatprep.subr.bf16.mxu0 0
    %3875 = vmatpush1.bf16.msra.mxu0 0
    %3876 = vmatprep.mubr.bf16.mxu0 0
    %3877 = vmatmul.mubr.bf16.gmra.mrb[0].mxu0 %v3843
    %v3878 = vpop.f32.mrb[0].mxu0
    %v3879 = vadd.f32 0.0, %v3878
    %v3880 = vpop.f32.mrb[0].mxu0
    %v3881 = vadd.f32 0.0, %v3880
    %v3882 = vpop.f32.mrb[0].mxu0
    %v3883 = vpop.f32.mrb[0].mxu0
    %3884 = vdwg.mxu0
    %3885 = vmatprep.subr.bf16.mxu0 %v3553
    %3886 = vmatpush1.bf16.msra.mxu0 %v3552
    %3887 = vmatprep.subr.bf16.mxu0 %v3557
    %3888 = vmatpush1.bf16.msra.mxu0 %v3556
    %3889 = vmatprep.subr.bf16.mxu0 %v3561
    %3890 = vmatpush1.bf16.msra.mxu0 %v3560
    %3891 = vmatprep.subr.bf16.mxu0 %v3565
    %3892 = vmatpush1.bf16.msra.mxu0 %v3564
    %3893 = vmatprep.subr.bf16.mxu0 %v3569
    %3894 = vmatpush1.bf16.msra.mxu0 %v3568
    %3895 = vmatprep.subr.bf16.mxu0 %v3573
    %3896 = vmatpush1.bf16.msra.mxu0 %v3572
    %3897 = vmatprep.subr.bf16.mxu0 %v3577
    %3898 = vmatpush1.bf16.msra.mxu0 %v3576
    %3899 = vmatprep.subr.bf16.mxu0 %v3581
    %3900 = vmatpush1.bf16.msra.mxu0 %v3580
    %3901 = vmatprep.subr.bf16.mxu0 0
    %3902 = vmatpush1.bf16.msra.mxu0 0
    %3903 = vmatprep.subr.bf16.mxu0 0
    %3904 = vmatpush1.bf16.msra.mxu0 0
    %3905 = vmatprep.subr.bf16.mxu0 0
    %3906 = vmatpush1.bf16.msra.mxu0 0
    %3907 = vmatprep.subr.bf16.mxu0 0
    %3908 = vmatpush1.bf16.msra.mxu0 0
    %3909 = vmatprep.subr.bf16.mxu0 0
    %3910 = vmatpush1.bf16.msra.mxu0 0
    %3911 = vmatprep.subr.bf16.mxu0 0
    %3912 = vmatpush1.bf16.msra.mxu0 0
    %3913 = vmatprep.subr.bf16.mxu0 0
    %3914 = vmatpush1.bf16.msra.mxu0 0
    %3915 = vmatprep.subr.bf16.mxu0 0
    %3916 = vmatpush1.bf16.msra.mxu0 0
    %3917 = vmatprep.mubr.bf16.mxu0 0
    %3918 = vmatmul.mubr.bf16.gmra.mrb[0].mxu0 %v3843
    %v3919 = vpop.f32.mrb[0].mxu0
    %v3920 = vadd.f32 0.0, %v3919
    %v3921 = vpop.f32.mrb[0].mxu0
    %v3922 = vadd.f32 0.0, %v3921
    %v3923 = vpop.f32.mrb[0].mxu0
    %v3924 = vpop.f32.mrb[0].mxu0
    %3925 = vdwg.mxu0
    %v3926 = vadd.f32 %v3839, %v3879
    %v3927 = vadd.f32 %v3840, %v3881
    %v3928 = vadd.f32 %v3841, %v3920
    %v3929 = vadd.f32 %v3842, %v3922
    %v3930 = vxor.u32 %v3926, 2147483648
    %v3931 = vxor.u32 %v3927, 2147483648
    %v3932 = vxor.u32 %v3928, 2147483648
    %v3933 = vmul.f32 %v3930, 1.442695
    %v3934 = vpow.pop %v3933
    %v3935 = vmul.f32 %v3931, 1.442695
    %v3936 = vpow.pop %v3935
    %v3937 = vmul.f32 %v3932, 1.442695
    %v3938 = vpow.pop %v3937
    %v3939 = vadd.f32 %v3934, 1.0
    %v3940 = vadd.f32 %v3936, 1.0
    %v3941 = vadd.f32 %v3938, 1.0
    %v3942 = vrcp.pop %v3939
    %v3943 = vmul.f32 1.0, %v3942
    %v3944 = vrcp.pop %v3940
    %v3945 = vmul.f32 1.0, %v3944
    %v3946 = vrcp.pop %v3941
    %v3947 = vmul.f32 1.0, %v3946
    %v3948 = vtanh.pop %v3929
    %v3949 = vmul.f32 %v3945, %v3836
    %v3950 = vmul.f32 %v3943, %v3948
    %v3951 = vadd.f32 %v3949, %v3950
    %v3952 = vtanh.pop %v3951
    %v3953 = vmul.f32 %v3947, %v3952
    %v3954 = vld [vmem:[%s1456] sm:$0xff]
    %v3955 = vld [vmem:[%s1456 + $0x8] sm:$0xff]
    %v3956 = vld [vmem:[%s1456 + $0x10] sm:$0xff]
    %v3957 = vld [vmem:[%s1456 + $0x18] sm:$0xff]
    %v3958 = vpack.c.bf16 %v3953, %v3953
    %3959 = vmatprep.subr.bf16.mxu0 %v3551
    %3960 = vmatpush1.bf16.msra.mxu0 %v3550
    %3961 = vmatprep.subr.bf16.mxu0 %v3555
    %3962 = vmatpush1.bf16.msra.mxu0 %v3554
    %3963 = vmatprep.subr.bf16.mxu0 %v3559
    %3964 = vmatpush1.bf16.msra.mxu0 %v3558
    %3965 = vmatprep.subr.bf16.mxu0 %v3563
    %3966 = vmatpush1.bf16.msra.mxu0 %v3562
    %3967 = vmatprep.subr.bf16.mxu0 %v3567
    %3968 = vmatpush1.bf16.msra.mxu0 %v3566
    %3969 = vmatprep.subr.bf16.mxu0 %v3571
    %3970 = vmatpush1.bf16.msra.mxu0 %v3570
    %3971 = vmatprep.subr.bf16.mxu0 %v3575
    %3972 = vmatpush1.bf16.msra.mxu0 %v3574
    %3973 = vmatprep.subr.bf16.mxu0 %v3579
    %3974 = vmatpush1.bf16.msra.mxu0 %v3578
    %3975 = vmatprep.subr.bf16.mxu0 0
    %3976 = vmatpush1.bf16.msra.mxu0 0
    %3977 = vmatprep.subr.bf16.mxu0 0
    %3978 = vmatpush1.bf16.msra.mxu0 0
    %3979 = vmatprep.subr.bf16.mxu0 0
    %3980 = vmatpush1.bf16.msra.mxu0 0
    %3981 = vmatprep.subr.bf16.mxu0 0
    %3982 = vmatpush1.bf16.msra.mxu0 0
    %3983 = vmatprep.subr.bf16.mxu0 0
    %3984 = vmatpush1.bf16.msra.mxu0 0
    %3985 = vmatprep.subr.bf16.mxu0 0
    %3986 = vmatpush1.bf16.msra.mxu0 0
    %3987 = vmatprep.subr.bf16.mxu0 0
    %3988 = vmatpush1.bf16.msra.mxu0 0
    %3989 = vmatprep.subr.bf16.mxu0 0
    %3990 = vmatpush1.bf16.msra.mxu0 0
    %3991 = vmatprep.mubr.bf16.mxu0 0
    %3992 = vmatmul.mubr.bf16.gmra.mrb[0].mxu0 %v3958
    %v3993 = vpop.f32.mrb[0].mxu0
    %v3994 = vadd.f32 0.0, %v3993
    %v3995 = vpop.f32.mrb[0].mxu0
    %v3996 = vadd.f32 0.0, %v3995
    %v3997 = vpop.f32.mrb[0].mxu0
    %v3998 = vpop.f32.mrb[0].mxu0
    %3999 = vdwg.mxu0
    %4000 = vmatprep.subr.bf16.mxu0 %v3553
    %4001 = vmatpush1.bf16.msra.mxu0 %v3552
    %4002 = vmatprep.subr.bf16.mxu0 %v3557
    %4003 = vmatpush1.bf16.msra.mxu0 %v3556
    %4004 = vmatprep.subr.bf16.mxu0 %v3561
    %4005 = vmatpush1.bf16.msra.mxu0 %v3560
    %4006 = vmatprep.subr.bf16.mxu0 %v3565
    %4007 = vmatpush1.bf16.msra.mxu0 %v3564
    %4008 = vmatprep.subr.bf16.mxu0 %v3569
    %4009 = vmatpush1.bf16.msra.mxu0 %v3568
    %4010 = vmatprep.subr.bf16.mxu0 %v3573
    %4011 = vmatpush1.bf16.msra.mxu0 %v3572
    %4012 = vmatprep.subr.bf16.mxu0 %v3577
    %4013 = vmatpush1.bf16.msra.mxu0 %v3576
    %4014 = vmatprep.subr.bf16.mxu0 %v3581
    %4015 = vmatpush1.bf16.msra.mxu0 %v3580
    %4016 = vmatprep.subr.bf16.mxu0 0
    %4017 = vmatpush1.bf16.msra.mxu0 0
    %4018 = vmatprep.subr.bf16.mxu0 0
    %4019 = vmatpush1.bf16.msra.mxu0 0
    %4020 = vmatprep.subr.bf16.mxu0 0
    %4021 = vmatpush1.bf16.msra.mxu0 0
    %4022 = vmatprep.subr.bf16.mxu0 0
    %4023 = vmatpush1.bf16.msra.mxu0 0
    %4024 = vmatprep.subr.bf16.mxu0 0
    %4025 = vmatpush1.bf16.msra.mxu0 0
    %4026 = vmatprep.subr.bf16.mxu0 0
    %4027 = vmatpush1.bf16.msra.mxu0 0
    %4028 = vmatprep.subr.bf16.mxu0 0
    %4029 = vmatpush1.bf16.msra.mxu0 0
    %4030 = vmatprep.subr.bf16.mxu0 0
    %4031 = vmatpush1.bf16.msra.mxu0 0
    %4032 = vmatprep.mubr.bf16.mxu0 0
    %4033 = vmatmul.mubr.bf16.gmra.mrb[0].mxu0 %v3958
    %v4034 = vpop.f32.mrb[0].mxu0
    %v4035 = vadd.f32 0.0, %v4034
    %v4036 = vpop.f32.mrb[0].mxu0
    %v4037 = vadd.f32 0.0, %v4036
    %v4038 = vpop.f32.mrb[0].mxu0
    %v4039 = vpop.f32.mrb[0].mxu0
    %4040 = vdwg.mxu0
    %v4041 = vadd.f32 %v3954, %v3994
    %v4042 = vadd.f32 %v3955, %v3996
    %v4043 = vadd.f32 %v3956, %v4035
    %v4044 = vadd.f32 %v3957, %v4037
    %v4045 = vxor.u32 %v4041, 2147483648
    %v4046 = vxor.u32 %v4042, 2147483648
    %v4047 = vxor.u32 %v4043, 2147483648
    %v4048 = vmul.f32 %v4045, 1.442695
    %v4049 = vpow.pop %v4048
    %v4050 = vmul.f32 %v4046, 1.442695
    %v4051 = vpow.pop %v4050
    %v4052 = vmul.f32 %v4047, 1.442695
    %v4053 = vpow.pop %v4052
    %v4054 = vadd.f32 %v4049, 1.0
    %v4055 = vadd.f32 %v4051, 1.0
    %v4056 = vadd.f32 %v4053, 1.0
    %v4057 = vrcp.pop %v4054
    %v4058 = vmul.f32 1.0, %v4057
    %v4059 = vrcp.pop %v4055
    %v4060 = vmul.f32 1.0, %v4059
    %v4061 = vrcp.pop %v4056
    %v4062 = vmul.f32 1.0, %v4061
    %v4063 = vtanh.pop %v4044
    %v4064 = vmul.f32 %v4060, %v3951
    %v4065 = vmul.f32 %v4058, %v4063
    %v4066 = vadd.f32 %v4064, %v4065
    %v4067 = vtanh.pop %v4066
    %v4068 = vmul.f32 %v4062, %v4067
    %v4069 = vld [vmem:[%s1768] sm:$0xff]
    %v4070 = vld [vmem:[%s1768 + $0x8] sm:$0xff]
    %v4071 = vld [vmem:[%s1768 + $0x10] sm:$0xff]
    %v4072 = vld [vmem:[%s1768 + $0x18] sm:$0xff]
    %v4073 = vpack.c.bf16 %v4068, %v4068
    %4074 = vmatprep.subr.bf16.mxu0 %v3551
    %4075 = vmatpush1.bf16.msra.mxu0 %v3550
    %4076 = vmatprep.subr.bf16.mxu0 %v3555
    %4077 = vmatpush1.bf16.msra.mxu0 %v3554
    %4078 = vmatprep.subr.bf16.mxu0 %v3559
    %4079 = vmatpush1.bf16.msra.mxu0 %v3558
    %4080 = vmatprep.subr.bf16.mxu0 %v3563
    %4081 = vmatpush1.bf16.msra.mxu0 %v3562
    %4082 = vmatprep.subr.bf16.mxu0 %v3567
    %4083 = vmatpush1.bf16.msra.mxu0 %v3566
    %4084 = vmatprep.subr.bf16.mxu0 %v3571
    %4085 = vmatpush1.bf16.msra.mxu0 %v3570
    %4086 = vmatprep.subr.bf16.mxu0 %v3575
    %4087 = vmatpush1.bf16.msra.mxu0 %v3574
    %4088 = vmatprep.subr.bf16.mxu0 %v3579
    %4089 = vmatpush1.bf16.msra.mxu0 %v3578
    %4090 = vmatprep.subr.bf16.mxu0 0
    %4091 = vmatpush1.bf16.msra.mxu0 0
    %4092 = vmatprep.subr.bf16.mxu0 0
    %4093 = vmatpush1.bf16.msra.mxu0 0
    %4094 = vmatprep.subr.bf16.mxu0 0
    %4095 = vmatpush1.bf16.msra.mxu0 0
    %4096 = vmatprep.subr.bf16.mxu0 0
    %4097 = vmatpush1.bf16.msra.mxu0 0
    %4098 = vmatprep.subr.bf16.mxu0 0
    %4099 = vmatpush1.bf16.msra.mxu0 0
    %4100 = vmatprep.subr.bf16.mxu0 0
    %4101 = vmatpush1.bf16.msra.mxu0 0
    %4102 = vmatprep.subr.bf16.mxu0 0
    %4103 = vmatpush1.bf16.msra.mxu0 0
    %4104 = vmatprep.subr.bf16.mxu0 0
    %4105 = vmatpush1.bf16.msra.mxu0 0
    %4106 = vmatprep.mubr.bf16.mxu0 0
    %4107 = vmatmul.mubr.bf16.gmra.mrb[0].mxu0 %v4073
    %v4108 = vpop.f32.mrb[0].mxu0
    %v4109 = vadd.f32 0.0, %v4108
    %v4110 = vpop.f32.mrb[0].mxu0
    %v4111 = vadd.f32 0.0, %v4110
    %v4112 = vpop.f32.mrb[0].mxu0
    %v4113 = vpop.f32.mrb[0].mxu0
    %4114 = vdwg.mxu0
    %4115 = vmatprep.subr.bf16.mxu0 %v3553
    %4116 = vmatpush1.bf16.msra.mxu0 %v3552
    %4117 = vmatprep.subr.bf16.mxu0 %v3557
    %4118 = vmatpush1.bf16.msra.mxu0 %v3556
    %4119 = vmatprep.subr.bf16.mxu0 %v3561
    %4120 = vmatpush1.bf16.msra.mxu0 %v3560
    %4121 = vmatprep.subr.bf16.mxu0 %v3565
    %4122 = vmatpush1.bf16.msra.mxu0 %v3564
    %4123 = vmatprep.subr.bf16.mxu0 %v3569
    %4124 = vmatpush1.bf16.msra.mxu0 %v3568
    %4125 = vmatprep.subr.bf16.mxu0 %v3573
    %4126 = vmatpush1.bf16.msra.mxu0 %v3572
    %4127 = vmatprep.subr.bf16.mxu0 %v3577
    %4128 = vmatpush1.bf16.msra.mxu0 %v3576
    %4129 = vmatprep.subr.bf16.mxu0 %v3581
    %4130 = vmatpush1.bf16.msra.mxu0 %v3580
    %4131 = vmatprep.subr.bf16.mxu0 0
    %4132 = vmatpush1.bf16.msra.mxu0 0
    %4133 = vmatprep.subr.bf16.mxu0 0
    %4134 = vmatpush1.bf16.msra.mxu0 0
    %4135 = vmatprep.subr.bf16.mxu0 0
    %4136 = vmatpush1.bf16.msra.mxu0 0
    %4137 = vmatprep.subr.bf16.mxu0 0
    %4138 = vmatpush1.bf16.msra.mxu0 0
    %4139 = vmatprep.subr.bf16.mxu0 0
    %4140 = vmatpush1.bf16.msra.mxu0 0
    %4141 = vmatprep.subr.bf16.mxu0 0
    %4142 = vmatpush1.bf16.msra.mxu0 0
    %4143 = vmatprep.subr.bf16.mxu0 0
    %4144 = vmatpush1.bf16.msra.mxu0 0
    %4145 = vmatprep.subr.bf16.mxu0 0
    %4146 = vmatpush1.bf16.msra.mxu0 0
    %4147 = vmatprep.mubr.bf16.mxu0 0
    %4148 = vmatmul.mubr.bf16.gmra.mrb[0].mxu0 %v4073
    %v4149 = vpop.f32.mrb[0].mxu0
    %v4150 = vadd.f32 0.0, %v4149
    %v4151 = vpop.f32.mrb[0].mxu0
    %v4152 = vadd.f32 0.0, %v4151
    %v4153 = vpop.f32.mrb[0].mxu0
    %v4154 = vpop.f32.mrb[0].mxu0
    %4155 = vdwg.mxu0
    %v4156 = vadd.f32 %v4069, %v4109
    %v4157 = vadd.f32 %v4070, %v4111
    %v4158 = vadd.f32 %v4071, %v4150
    %v4159 = vadd.f32 %v4072, %v4152
    %v4160 = vxor.u32 %v4156, 2147483648
    %v4161 = vxor.u32 %v4157, 2147483648
    %v4162 = vxor.u32 %v4158, 2147483648
    %v4163 = vmul.f32 %v4160, 1.442695
    %v4164 = vpow.pop %v4163
    %v4165 = vmul.f32 %v4161, 1.442695
    %v4166 = vpow.pop %v4165
    %v4167 = vmul.f32 %v4162, 1.442695
    %v4168 = vpow.pop %v4167
    %v4169 = vadd.f32 %v4164, 1.0
    %v4170 = vadd.f32 %v4166, 1.0
    %v4171 = vadd.f32 %v4168, 1.0
    %v4172 = vrcp.pop %v4169
    %v4173 = vmul.f32 1.0, %v4172
    %v4174 = vrcp.pop %v4170
    %v4175 = vmul.f32 1.0, %v4174
    %v4176 = vrcp.pop %v4171
    %v4177 = vmul.f32 1.0, %v4176
    %v4178 = vtanh.pop %v4159
    %v4179 = vmul.f32 %v4175, %v4066
    %v4180 = vmul.f32 %v4173, %v4178
    %v4181 = vadd.f32 %v4179, %v4180
    %v4182 = vtanh.pop %v4181
    %v4183 = vmul.f32 %v4177, %v4182
    %v4184 = vld [vmem:[%s2080] sm:$0xff]
    %v4185 = vld [vmem:[%s2080 + $0x8] sm:$0xff]
    %v4186 = vld [vmem:[%s2080 + $0x10] sm:$0xff]
    %v4187 = vld [vmem:[%s2080 + $0x18] sm:$0xff]
    %v4188 = vpack.c.bf16 %v4183, %v4183
    %4189 = vmatprep.subr.bf16.mxu0 %v3551
    %4190 = vmatpush1.bf16.msra.mxu0 %v3550
    %4191 = vmatprep.subr.bf16.mxu0 %v3555
    %4192 = vmatpush1.bf16.msra.mxu0 %v3554
    %4193 = vmatprep.subr.bf16.mxu0 %v3559
    %4194 = vmatpush1.bf16.msra.mxu0 %v3558
    %4195 = vmatprep.subr.bf16.mxu0 %v3563
    %4196 = vmatpush1.bf16.msra.mxu0 %v3562
    %4197 = vmatprep.subr.bf16.mxu0 %v3567
    %4198 = vmatpush1.bf16.msra.mxu0 %v3566
    %4199 = vmatprep.subr.bf16.mxu0 %v3571
    %4200 = vmatpush1.bf16.msra.mxu0 %v3570
    %4201 = vmatprep.subr.bf16.mxu0 %v3575
    %4202 = vmatpush1.bf16.msra.mxu0 %v3574
    %4203 = vmatprep.subr.bf16.mxu0 %v3579
    %4204 = vmatpush1.bf16.msra.mxu0 %v3578
    %4205 = vmatprep.subr.bf16.mxu0 0
    %4206 = vmatpush1.bf16.msra.mxu0 0
    %4207 = vmatprep.subr.bf16.mxu0 0
    %4208 = vmatpush1.bf16.msra.mxu0 0
    %4209 = vmatprep.subr.bf16.mxu0 0
    %4210 = vmatpush1.bf16.msra.mxu0 0
    %4211 = vmatprep.subr.bf16.mxu0 0
    %4212 = vmatpush1.bf16.msra.mxu0 0
    %4213 = vmatprep.subr.bf16.mxu0 0
    %4214 = vmatpush1.bf16.msra.mxu0 0
    %4215 = vmatprep.subr.bf16.mxu0 0
    %4216 = vmatpush1.bf16.msra.mxu0 0
    %4217 = vmatprep.subr.bf16.mxu0 0
    %4218 = vmatpush1.bf16.msra.mxu0 0
    %4219 = vmatprep.subr.bf16.mxu0 0
    %4220 = vmatpush1.bf16.msra.mxu0 0
    %4221 = vmatprep.mubr.bf16.mxu0 0
    %4222 = vmatmul.mubr.bf16.gmra.mrb[0].mxu0 %v4188
    %v4223 = vpop.f32.mrb[0].mxu0
    %v4224 = vadd.f32 0.0, %v4223
    %v4225 = vpop.f32.mrb[0].mxu0
    %v4226 = vadd.f32 0.0, %v4225
    %v4227 = vpop.f32.mrb[0].mxu0
    %v4228 = vpop.f32.mrb[0].mxu0
    %4229 = vdwg.mxu0
    %4230 = vmatprep.subr.bf16.mxu0 %v3553
    %4231 = vmatpush1.bf16.msra.mxu0 %v3552
    %4232 = vmatprep.subr.bf16.mxu0 %v3557
    %4233 = vmatpush1.bf16.msra.mxu0 %v3556
    %4234 = vmatprep.subr.bf16.mxu0 %v3561
    %4235 = vmatpush1.bf16.msra.mxu0 %v3560
    %4236 = vmatprep.subr.bf16.mxu0 %v3565
    %4237 = vmatpush1.bf16.msra.mxu0 %v3564
    %4238 = vmatprep.subr.bf16.mxu0 %v3569
    %4239 = vmatpush1.bf16.msra.mxu0 %v3568
    %4240 = vmatprep.subr.bf16.mxu0 %v3573
    %4241 = vmatpush1.bf16.msra.mxu0 %v3572
    %4242 = vmatprep.subr.bf16.mxu0 %v3577
    %4243 = vmatpush1.bf16.msra.mxu0 %v3576
    %4244 = vmatprep.subr.bf16.mxu0 %v3581
    %4245 = vmatpush1.bf16.msra.mxu0 %v3580
    %4246 = vmatprep.subr.bf16.mxu0 0
    %4247 = vmatpush1.bf16.msra.mxu0 0
    %4248 = vmatprep.subr.bf16.mxu0 0
    %4249 = vmatpush1.bf16.msra.mxu0 0
    %4250 = vmatprep.subr.bf16.mxu0 0
    %4251 = vmatpush1.bf16.msra.mxu0 0
    %4252 = vmatprep.subr.bf16.mxu0 0
    %4253 = vmatpush1.bf16.msra.mxu0 0
    %4254 = vmatprep.subr.bf16.mxu0 0
    %4255 = vmatpush1.bf16.msra.mxu0 0
    %4256 = vmatprep.subr.bf16.mxu0 0
    %4257 = vmatpush1.bf16.msra.mxu0 0
    %4258 = vmatprep.subr.bf16.mxu0 0
    %4259 = vmatpush1.bf16.msra.mxu0 0
    %4260 = vmatprep.subr.bf16.mxu0 0
    %4261 = vmatpush1.bf16.msra.mxu0 0
    %4262 = vmatprep.mubr.bf16.mxu0 0
    %4263 = vmatmul.mubr.bf16.gmra.mrb[0].mxu0 %v4188
    %v4264 = vpop.f32.mrb[0].mxu0
    %v4265 = vadd.f32 0.0, %v4264
    %v4266 = vpop.f32.mrb[0].mxu0
    %v4267 = vadd.f32 0.0, %v4266
    %v4268 = vpop.f32.mrb[0].mxu0
    %v4269 = vpop.f32.mrb[0].mxu0
    %4270 = vdwg.mxu0
    %v4271 = vadd.f32 %v4184, %v4224
    %v4272 = vadd.f32 %v4185, %v4226
    %v4273 = vadd.f32 %v4186, %v4265
    %v4274 = vadd.f32 %v4187, %v4267
    %v4275 = vxor.u32 %v4271, 2147483648
    %v4276 = vxor.u32 %v4272, 2147483648
    %v4277 = vxor.u32 %v4273, 2147483648
    %v4278 = vmul.f32 %v4275, 1.442695
    %v4279 = vpow.pop %v4278
    %v4280 = vmul.f32 %v4276, 1.442695
    %v4281 = vpow.pop %v4280
    %v4282 = vmul.f32 %v4277, 1.442695
    %v4283 = vpow.pop %v4282
    %v4284 = vadd.f32 %v4279, 1.0
    %v4285 = vadd.f32 %v4281, 1.0
    %v4286 = vadd.f32 %v4283, 1.0
    %v4287 = vrcp.pop %v4284
    %v4288 = vmul.f32 1.0, %v4287
    %v4289 = vrcp.pop %v4285
    %v4290 = vmul.f32 1.0, %v4289
    %v4291 = vrcp.pop %v4286
    %v4292 = vmul.f32 1.0, %v4291
    %v4293 = vtanh.pop %v4274
    %v4294 = vmul.f32 %v4290, %v4181
    %v4295 = vmul.f32 %v4288, %v4293
    %v4296 = vadd.f32 %v4294, %v4295
    %v4297 = vtanh.pop %v4296
    %v4298 = vmul.f32 %v4292, %v4297
    %v4299 = vld [vmem:[%s2392] sm:$0xff]
    %v4300 = vld [vmem:[%s2392 + $0x8] sm:$0xff]
    %v4301 = vld [vmem:[%s2392 + $0x10] sm:$0xff]
    %v4302 = vld [vmem:[%s2392 + $0x18] sm:$0xff]
    %v4303 = vpack.c.bf16 %v4298, %v4298
    %4304 = vmatprep.subr.bf16.mxu0 %v3551
    %4305 = vmatpush1.bf16.msra.mxu0 %v3550
    %4306 = vmatprep.subr.bf16.mxu0 %v3555
    %4307 = vmatpush1.bf16.msra.mxu0 %v3554
    %4308 = vmatprep.subr.bf16.mxu0 %v3559
    %4309 = vmatpush1.bf16.msra.mxu0 %v3558
    %4310 = vmatprep.subr.bf16.mxu0 %v3563
    %4311 = vmatpush1.bf16.msra.mxu0 %v3562
    %4312 = vmatprep.subr.bf16.mxu0 %v3567
    %4313 = vmatpush1.bf16.msra.mxu0 %v3566
    %4314 = vmatprep.subr.bf16.mxu0 %v3571
    %4315 = vmatpush1.bf16.msra.mxu0 %v3570
    %4316 = vmatprep.subr.bf16.mxu0 %v3575
    %4317 = vmatpush1.bf16.msra.mxu0 %v3574
    %4318 = vmatprep.subr.bf16.mxu0 %v3579
    %4319 = vmatpush1.bf16.msra.mxu0 %v3578
    %4320 = vmatprep.subr.bf16.mxu0 0
    %4321 = vmatpush1.bf16.msra.mxu0 0
    %4322 = vmatprep.subr.bf16.mxu0 0
    %4323 = vmatpush1.bf16.msra.mxu0 0
    %4324 = vmatprep.subr.bf16.mxu0 0
    %4325 = vmatpush1.bf16.msra.mxu0 0
    %4326 = vmatprep.subr.bf16.mxu0 0
    %4327 = vmatpush1.bf16.msra.mxu0 0
    %4328 = vmatprep.subr.bf16.mxu0 0
    %4329 = vmatpush1.bf16.msra.mxu0 0
    %4330 = vmatprep.subr.bf16.mxu0 0
    %4331 = vmatpush1.bf16.msra.mxu0 0
    %4332 = vmatprep.subr.bf16.mxu0 0
    %4333 = vmatpush1.bf16.msra.mxu0 0
    %4334 = vmatprep.subr.bf16.mxu0 0
    %4335 = vmatpush1.bf16.msra.mxu0 0
    %4336 = vmatprep.mubr.bf16.mxu0 0
    %4337 = vmatmul.mubr.bf16.gmra.mrb[0].mxu0 %v4303
    %v4338 = vpop.f32.mrb[0].mxu0
    %v4339 = vadd.f32 0.0, %v4338
    %v4340 = vpop.f32.mrb[0].mxu0
    %v4341 = vadd.f32 0.0, %v4340
    %v4342 = vpop.f32.mrb[0].mxu0
    %v4343 = vpop.f32.mrb[0].mxu0
    %4344 = vdwg.mxu0
    %4345 = vmatprep.subr.bf16.mxu0 %v3553
    %4346 = vmatpush1.bf16.msra.mxu0 %v3552
    %4347 = vmatprep.subr.bf16.mxu0 %v3557
    %4348 = vmatpush1.bf16.msra.mxu0 %v3556
    %4349 = vmatprep.subr.bf16.mxu0 %v3561
    %4350 = vmatpush1.bf16.msra.mxu0 %v3560
    %4351 = vmatprep.subr.bf16.mxu0 %v3565
    %4352 = vmatpush1.bf16.msra.mxu0 %v3564
    %4353 = vmatprep.subr.bf16.mxu0 %v3569
    %4354 = vmatpush1.bf16.msra.mxu0 %v3568
    %4355 = vmatprep.subr.bf16.mxu0 %v3573
    %4356 = vmatpush1.bf16.msra.mxu0 %v3572
    %4357 = vmatprep.subr.bf16.mxu0 %v3577
    %4358 = vmatpush1.bf16.msra.mxu0 %v3576
    %4359 = vmatprep.subr.bf16.mxu0 %v3581
    %4360 = vmatpush1.bf16.msra.mxu0 %v3580
    %4361 = vmatprep.subr.bf16.mxu0 0
    %4362 = vmatpush1.bf16.msra.mxu0 0
    %4363 = vmatprep.subr.bf16.mxu0 0
    %4364 = vmatpush1.bf16.msra.mxu0 0
    %4365 = vmatprep.subr.bf16.mxu0 0
    %4366 = vmatpush1.bf16.msra.mxu0 0
    %4367 = vmatprep.subr.bf16.mxu0 0
    %4368 = vmatpush1.bf16.msra.mxu0 0
    %4369 = vmatprep.subr.bf16.mxu0 0
    %4370 = vmatpush1.bf16.msra.mxu0 0
    %4371 = vmatprep.subr.bf16.mxu0 0
    %4372 = vmatpush1.bf16.msra.mxu0 0
    %4373 = vmatprep.subr.bf16.mxu0 0
    %4374 = vmatpush1.bf16.msra.mxu0 0
    %4375 = vmatprep.subr.bf16.mxu0 0
    %4376 = vmatpush1.bf16.msra.mxu0 0
    %4377 = vmatprep.mubr.bf16.mxu0 0
    %4378 = vmatmul.mubr.bf16.gmra.mrb[0].mxu0 %v4303
    %v4379 = vpop.f32.mrb[0].mxu0
    %v4380 = vadd.f32 0.0, %v4379
    %v4381 = vpop.f32.mrb[0].mxu0
    %v4382 = vadd.f32 0.0, %v4381
    %v4383 = vpop.f32.mrb[0].mxu0
    %v4384 = vpop.f32.mrb[0].mxu0
    %4385 = vdwg.mxu0
    %v4386 = vadd.f32 %v4299, %v4339
    %v4387 = vadd.f32 %v4300, %v4341
    %v4388 = vadd.f32 %v4301, %v4380
    %v4389 = vadd.f32 %v4302, %v4382
    %v4390 = vxor.u32 %v4386, 2147483648
    %v4391 = vxor.u32 %v4387, 2147483648
    %v4392 = vxor.u32 %v4388, 2147483648
    %v4393 = vmul.f32 %v4390, 1.442695
    %v4394 = vpow.pop %v4393
    %v4395 = vmul.f32 %v4391, 1.442695
    %v4396 = vpow.pop %v4395
    %v4397 = vmul.f32 %v4392, 1.442695
    %v4398 = vpow.pop %v4397
    %v4399 = vadd.f32 %v4394, 1.0
    %v4400 = vadd.f32 %v4396, 1.0
    %v4401 = vadd.f32 %v4398, 1.0
    %v4402 = vrcp.pop %v4399
    %v4403 = vmul.f32 1.0, %v4402
    %v4404 = vrcp.pop %v4400
    %v4405 = vmul.f32 1.0, %v4404
    %v4406 = vrcp.pop %v4401
    %v4407 = vmul.f32 1.0, %v4406
    %v4408 = vtanh.pop %v4389
    %v4409 = vmul.f32 %v4405, %v4296
    %v4410 = vmul.f32 %v4403, %v4408
    %v4411 = vadd.f32 %v4409, %v4410
    %v4412 = vtanh.pop %v4411
    %v4413 = vmul.f32 %v4407, %v4412
    %v4414 = vld [vmem:[%s2704] sm:$0xff]
    %v4415 = vld [vmem:[%s2704 + $0x8] sm:$0xff]
    %v4416 = vld [vmem:[%s2704 + $0x10] sm:$0xff]
    %v4417 = vld [vmem:[%s2704 + $0x18] sm:$0xff]
    %v4418 = vpack.c.bf16 %v4413, %v4413
    %4419 = vmatprep.subr.bf16.mxu0 %v3551
    %4420 = vmatpush1.bf16.msra.mxu0 %v3550
    %4421 = vmatprep.subr.bf16.mxu0 %v3555
    %4422 = vmatpush1.bf16.msra.mxu0 %v3554
    %4423 = vmatprep.subr.bf16.mxu0 %v3559
    %4424 = vmatpush1.bf16.msra.mxu0 %v3558
    %4425 = vmatprep.subr.bf16.mxu0 %v3563
    %4426 = vmatpush1.bf16.msra.mxu0 %v3562
    %4427 = vmatprep.subr.bf16.mxu0 %v3567
    %4428 = vmatpush1.bf16.msra.mxu0 %v3566
    %4429 = vmatprep.subr.bf16.mxu0 %v3571
    %4430 = vmatpush1.bf16.msra.mxu0 %v3570
    %4431 = vmatprep.subr.bf16.mxu0 %v3575
    %4432 = vmatpush1.bf16.msra.mxu0 %v3574
    %4433 = vmatprep.subr.bf16.mxu0 %v3579
    %4434 = vmatpush1.bf16.msra.mxu0 %v3578
    %4435 = vmatprep.subr.bf16.mxu0 0
    %4436 = vmatpush1.bf16.msra.mxu0 0
    %4437 = vmatprep.subr.bf16.mxu0 0
    %4438 = vmatpush1.bf16.msra.mxu0 0
    %4439 = vmatprep.subr.bf16.mxu0 0
    %4440 = vmatpush1.bf16.msra.mxu0 0
    %4441 = vmatprep.subr.bf16.mxu0 0
    %4442 = vmatpush1.bf16.msra.mxu0 0
    %4443 = vmatprep.subr.bf16.mxu0 0
    %4444 = vmatpush1.bf16.msra.mxu0 0
    %4445 = vmatprep.subr.bf16.mxu0 0
    %4446 = vmatpush1.bf16.msra.mxu0 0
    %4447 = vmatprep.subr.bf16.mxu0 0
    %4448 = vmatpush1.bf16.msra.mxu0 0
    %4449 = vmatprep.subr.bf16.mxu0 0
    %4450 = vmatpush1.bf16.msra.mxu0 0
    %4451 = vmatprep.mubr.bf16.mxu0 0
    %4452 = vmatmul.mubr.bf16.gmra.mrb[0].mxu0 %v4418
    %v4453 = vpop.f32.mrb[0].mxu0
    %v4454 = vadd.f32 0.0, %v4453
    %v4455 = vpop.f32.mrb[0].mxu0
    %v4456 = vadd.f32 0.0, %v4455
    %v4457 = vpop.f32.mrb[0].mxu0
    %v4458 = vpop.f32.mrb[0].mxu0
    %4459 = vdwg.mxu0
    %4460 = vmatprep.subr.bf16.mxu0 %v3553
    %4461 = vmatpush1.bf16.msra.mxu0 %v3552
    %4462 = vmatprep.subr.bf16.mxu0 %v3557
    %4463 = vmatpush1.bf16.msra.mxu0 %v3556
    %4464 = vmatprep.subr.bf16.mxu0 %v3561
    %4465 = vmatpush1.bf16.msra.mxu0 %v3560
    %4466 = vmatprep.subr.bf16.mxu0 %v3565
    %4467 = vmatpush1.bf16.msra.mxu0 %v3564
    %4468 = vmatprep.subr.bf16.mxu0 %v3569
    %4469 = vmatpush1.bf16.msra.mxu0 %v3568
    %4470 = vmatprep.subr.bf16.mxu0 %v3573
    %4471 = vmatpush1.bf16.msra.mxu0 %v3572
    %4472 = vmatprep.subr.bf16.mxu0 %v3577
    %4473 = vmatpush1.bf16.msra.mxu0 %v3576
    %4474 = vmatprep.subr.bf16.mxu0 %v3581
    %4475 = vmatpush1.bf16.msra.mxu0 %v3580
    %4476 = vmatprep.subr.bf16.mxu0 0
    %4477 = vmatpush1.bf16.msra.mxu0 0
    %4478 = vmatprep.subr.bf16.mxu0 0
    %4479 = vmatpush1.bf16.msra.mxu0 0
    %4480 = vmatprep.subr.bf16.mxu0 0
    %4481 = vmatpush1.bf16.msra.mxu0 0
    %4482 = vmatprep.subr.bf16.mxu0 0
    %4483 = vmatpush1.bf16.msra.mxu0 0
    %4484 = vmatprep.subr.bf16.mxu0 0
    %4485 = vmatpush1.bf16.msra.mxu0 0
    %4486 = vmatprep.subr.bf16.mxu0 0
    %4487 = vmatpush1.bf16.msra.mxu0 0
    %4488 = vmatprep.subr.bf16.mxu0 0
    %4489 = vmatpush1.bf16.msra.mxu0 0
    %4490 = vmatprep.subr.bf16.mxu0 0
    %4491 = vmatpush1.bf16.msra.mxu0 0
    %4492 = vmatprep.mubr.bf16.mxu0 0
    %4493 = vmatmul.mubr.bf16.gmra.mrb[0].mxu0 %v4418
    %v4494 = vpop.f32.mrb[0].mxu0
    %v4495 = vadd.f32 0.0, %v4494
    %v4496 = vpop.f32.mrb[0].mxu0
    %v4497 = vadd.f32 0.0, %v4496
    %v4498 = vpop.f32.mrb[0].mxu0
    %v4499 = vpop.f32.mrb[0].mxu0
    %4500 = vdwg.mxu0
    %v4501 = vadd.f32 %v4414, %v4454
    %v4502 = vadd.f32 %v4415, %v4456
    %v4503 = vadd.f32 %v4416, %v4495
    %v4504 = vadd.f32 %v4417, %v4497
    %v4505 = vxor.u32 %v4501, 2147483648
    %v4506 = vxor.u32 %v4502, 2147483648
    %v4507 = vxor.u32 %v4503, 2147483648
    %v4508 = vmul.f32 %v4505, 1.442695
    %v4509 = vpow.pop %v4508
    %v4510 = vmul.f32 %v4506, 1.442695
    %v4511 = vpow.pop %v4510
    %v4512 = vmul.f32 %v4507, 1.442695
    %v4513 = vpow.pop %v4512
    %v4514 = vadd.f32 %v4509, 1.0
    %v4515 = vadd.f32 %v4511, 1.0
    %v4516 = vadd.f32 %v4513, 1.0
    %v4517 = vrcp.pop %v4514
    %v4518 = vmul.f32 1.0, %v4517
    %v4519 = vrcp.pop %v4515
    %v4520 = vmul.f32 1.0, %v4519
    %v4521 = vrcp.pop %v4516
    %v4522 = vmul.f32 1.0, %v4521
    %v4523 = vtanh.pop %v4504
    %v4524 = vmul.f32 %v4520, %v4411
    %v4525 = vmul.f32 %v4518, %v4523
    %v4526 = vadd.f32 %v4524, %v4525
    %v4527 = vtanh.pop %v4526
    %v4528 = vmul.f32 %v4522, %v4527
    %v4529 = vpack.c.bf16 %v4528, %v4528
    %v4530 = vld [vmem:[#allocation13] sm:$0xf]
    %v4531 = vld [vmem:[#allocation13 + $0x4] sm:$0xf]
    %v4532 = vld [vmem:[#allocation13 + $0x8] sm:$0xf]
    %v4533 = vld [vmem:[#allocation13 + $0xc] sm:$0xf]
    %v4534 = vld [vmem:[#allocation13 + $0x10] sm:$0xf]
    %v4535 = vld [vmem:[#allocation13 + $0x14] sm:$0xf]
    %v4536 = vld [vmem:[#allocation13 + $0x18] sm:$0xf]
    %v4537 = vld [vmem:[#allocation13 + $0x1c] sm:$0xf]
    %v4538 = vld [vmem:[#allocation13 + $0x20] sm:$0xf]
    %v4539 = vld [vmem:[#allocation13 + $0x24] sm:$0xf]
    %v4540 = vld [vmem:[#allocation13 + $0x28] sm:$0xf]
    %v4541 = vld [vmem:[#allocation13 + $0x2c] sm:$0xf]
    %v4542 = vld [vmem:[#allocation13 + $0x30] sm:$0xf]
    %v4543 = vld [vmem:[#allocation13 + $0x34] sm:$0xf]
    %v4544 = vld [vmem:[#allocation13 + $0x38] sm:$0xf]
    %v4545 = vld [vmem:[#allocation13 + $0x3c] sm:$0xf]
    %v4546 = vld [vmem:[%s8] sm:$0x1]
    %v4548 = vlaneseq
    %v4549 = vshrl.u32 %v4548, 7
    %v4550 = vsub.s32 0, %v4549
    %v4551 = vrot.slane %v4546, %v4550
    %v4569 = vunpack.c.l.b16 %v4530
    %v4570 = vunpack.c.l.b16 %v4531
    %v4571 = vunpack.c.l.b16 %v4532
    %v4572 = vunpack.c.l.b16 %v4533
    %v4573 = vunpack.c.l.b16 %v4534
    %v4574 = vunpack.c.l.b16 %v4535
    %v4575 = vunpack.c.l.b16 %v4536
    %v4576 = vunpack.c.l.b16 %v4537
    %v4577 = vunpack.c.l.b16 %v4538
    %v4578 = vunpack.c.l.b16 %v4539
    %v4579 = vunpack.c.l.b16 %v4540
    %v4580 = vunpack.c.l.b16 %v4541
    %v4581 = vunpack.c.l.b16 %v4542
    %v4582 = vunpack.c.l.b16 %v4543
    %v4583 = vunpack.c.l.b16 %v4544
    %v4584 = vunpack.c.l.b16 %v4545
    %v4585 = vpack.c.b16 %v4570, %v4569
    %v4586 = vpack.c.b16 %v4572, %v4571
    %v4587 = vpack.c.b16 %v4574, %v4573
    %v4588 = vpack.c.b16 %v4576, %v4575
    %v4589 = vpack.c.b16 %v4578, %v4577
    %v4590 = vpack.c.b16 %v4580, %v4579
    %v4591 = vpack.c.b16 %v4582, %v4581
    %v4592 = vpack.c.b16 %v4584, %v4583
    %4601 = vmatprep.subr.bf16.mxu0 0
    %4602 = vmatpush1.bf16.msra.mxu0 %v4585
    %4603 = vmatprep.subr.bf16.mxu0 0
    %4604 = vmatpush1.bf16.msra.mxu0 %v4586
    %4605 = vmatprep.subr.bf16.mxu0 0
    %4606 = vmatpush1.bf16.msra.mxu0 %v4587
    %4607 = vmatprep.subr.bf16.mxu0 0
    %4608 = vmatpush1.bf16.msra.mxu0 %v4588
    %4609 = vmatprep.subr.bf16.mxu0 0
    %4610 = vmatpush1.bf16.msra.mxu0 %v4589
    %4611 = vmatprep.subr.bf16.mxu0 0
    %4612 = vmatpush1.bf16.msra.mxu0 %v4590
    %4613 = vmatprep.subr.bf16.mxu0 0
    %4614 = vmatpush1.bf16.msra.mxu0 %v4591
    %4615 = vmatprep.subr.bf16.mxu0 0
    %4616 = vmatpush1.bf16.msra.mxu0 %v4592
    %4617 = vmatprep.subr.bf16.mxu0 0
    %4618 = vmatpush1.bf16.msra.mxu0 0
    %4619 = vmatprep.subr.bf16.mxu0 0
    %4620 = vmatpush1.bf16.msra.mxu0 0
    %4621 = vmatprep.subr.bf16.mxu0 0
    %4622 = vmatpush1.bf16.msra.mxu0 0
    %4623 = vmatprep.subr.bf16.mxu0 0
    %4624 = vmatpush1.bf16.msra.mxu0 0
    %4625 = vmatprep.subr.bf16.mxu0 0
    %4626 = vmatpush1.bf16.msra.mxu0 0
    %4627 = vmatprep.subr.bf16.mxu0 0
    %4628 = vmatpush1.bf16.msra.mxu0 0
    %4629 = vmatprep.subr.bf16.mxu0 0
    %4630 = vmatpush1.bf16.msra.mxu0 0
    %4631 = vmatprep.subr.bf16.mxu0 0
    %4632 = vmatpush1.bf16.msra.mxu0 0
    %4633 = vmatprep.mubr.bf16.mxu0 0
    %4634 = vmatmul.mubr.bf16.gmra.mrb[0].mxu0 %v4529
    %v4635 = vpop.f32.mrb[0].mxu0
    %v4636 = vadd.f32 %v4551, %v4635
    %v4637 = vpop.f32.mrb[0].mxu0
    %v4638 = vpop.f32.mrb[0].mxu0
    %v4639 = vpop.f32.mrb[0].mxu0
    %4640 = vdwg.mxu0
    %4641 = vst [vmem:[#allocation15] sm:$0xff] %v4636
    // Predicated region
    $region62: #{tpu_custom_call.1} parent=1 // pred_check
      _
    $region63: #{tpu_custom_call.1} parent=1 // pred_check_branch
      %4643 = sbr.rel (0) target = $region65
    $region64: #{tpu_custom_call.1} parent=1 // pred_region
      %s4645 = ssub.s32 128, 128
      %4646 = vsyncadd [#allocation6], %s4645
      %s4648 = sshll.u32 [#allocation15], 4
      %s4649 = int_to_ptr.vmem [resolvable:$true] %s4648
      %4651 = dma.vmem_to_hbm [thread:$0]  %s4649, 128, %s9, [#allocation6]
    $region65: #{tpu_custom_call.1} parent=1 // pred_fallthru
      _
    // Predicated region
    $region66: #{tpu_custom_call.1} parent=1 // pred_check
      _
    $region67: #{tpu_custom_call.1} parent=1 // pred_check_branch
      %4653 = sbr.rel (0) target = $region69
    $region68: #{tpu_custom_call.1} parent=1 // pred_region
      %4654 = dma.done [#allocation6], 128
    $region69: #{tpu_custom_call.1} parent=1 // pred_fallthru
      _
    %4655 = vsyncpa [#allocation5], 1
    %4656 = vsyncpa [#allocation8], 1
    %4657 = vsyncpa [#allocation11], 1
    %4658 = vsyncpa [#allocation14], 1
    %4659 = vsyncpa [#allocation6], 1

</llo_original>
